<compile_context>
chip_gen: v7x
topology: tpu7x:2x2x1
jax: 0.10.0
libtpu: 0.0.40
codegen_flags: <defaults>
</compile_context>

<pallas_src>
import math

import jax
import jax.numpy as jnp
from jax.experimental import pallas as pl
from jax.experimental.pallas import tpu as pltpu


def _round_up(x: int, m: int) -> int:
    return ((x + m - 1) // m) * m


def _make_kernel(half_dim: int, emb_scale: float, slice_stores: bool):
    def kernel(time_ref, out_ref):
        # time_ref: (TB, 1) f32; out_ref: (TB, 2*half_dim)
        # Frequency row computed in-kernel: half_dim exps/step is noise vs TB*dim sin/cos.
        ids = jax.lax.broadcasted_iota(jnp.int32, (1, half_dim), 1).astype(jnp.float32)
        freqs = jnp.exp(ids * (-emb_scale))                  # (1, half_dim)
        args = time_ref[...] * freqs                         # (TB, half_dim) VPU outer product
        if slice_stores:
            # half_dim % 128 == 0: two lane-aligned unmasked stores, no concat temp.
            out_ref[:, :half_dim] = jnp.sin(args).astype(out_ref.dtype)
            out_ref[:, half_dim:] = jnp.cos(args).astype(out_ref.dtype)
        else:
            emb = jnp.concatenate([jnp.sin(args), jnp.cos(args)], axis=-1)
            out_ref[...] = emb.astype(out_ref.dtype)
    return kernel


def _reference(time: jax.Array, dim: int) -> jax.Array:
    """Pure-jnp equivalent of the torch module (also used as the small-problem fallback)."""
    half_dim = dim // 2
    scale = math.log(10000.0) / (half_dim - 1)
    freqs = jnp.exp(jnp.arange(half_dim, dtype=jnp.float32) * -scale)
    args = time.astype(jnp.float32)[:, None] * freqs[None, :]
    return jnp.concatenate([jnp.sin(args), jnp.cos(args)], axis=-1)


def _pick_tile(b: int, dim: int, block_b) -> int:
    row_bytes = dim * 4                                   # f32 output row
    target_rows = max(512, (1 << 20) // row_bytes)        # >= ~1 MiB of output per grid step
    cap_rows = max(8, (2 << 20) // row_bytes)             # <= ~4 MiB double-buffered output (v7x-safe)
    tb = min(target_rows, cap_rows)
    if block_b is not None:
        tb = min(tb, block_b)
    if b >= 16:
        # Guarantee >= 2 grid steps so ("parallel",) shards across both TensorCores on v7x.
        tb = min(tb, _round_up(pl.cdiv(b, 2), 8))
    tb = max(8, min(tb, _round_up(b, 8)))
    return _round_up(tb, 8)


def sinusoidal_position_embeddings(
    time: jax.Array,
    dim: int,
    *,
    out_dtype=jnp.float32,
    block_b=None,
    force_kernel: bool = False,
) -> jax.Array:
    """JAX/Pallas equivalent of SinusoidalPositionEmbeddings(dim)(time)."""
    assert time.ndim == 1, "time must be a 1-D tensor of timesteps"
    assert dim % 2 == 0, "dim must be even (module concatenates sin|cos halves)"
    half_dim = dim // 2
    assert half_dim > 1, "dim must be >= 4 (half_dim-1 in the freq scale must be nonzero)"
    b = time.shape[0]

    # Fallback: tiny problems (single-step grid, dispatch-dominated) or narrow last dim
    # (every store half-masked on the lane axis) are faster as plain jnp.
    if not force_kernel and (b * dim <= 65536 or dim < 128):
        return _reference(time, dim).astype(out_dtype)

    tb = _pick_tile(b, dim, block_b)
    time_2d = time.astype(jnp.float32).reshape(b, 1)
    kernel = _make_kernel(
        half_dim,
        math.log(10000.0) / (half_dim - 1),
        slice_stores=(half_dim % 128 == 0),
    )

    # Ragged tail handled by the grid itself (no pad + slice copy): last block's
    # out-of-bounds rows are masked on store; OOB time reads never reach valid rows.
    return pl.pallas_call(
        kernel,
        out_shape=jax.ShapeDtypeStruct((b, dim), out_dtype),
        grid=(pl.cdiv(b, tb),),
        in_specs=[pl.BlockSpec((tb, 1), lambda i: (i, 0))],
        out_specs=pl.BlockSpec((tb, dim), lambda i: (i, 0)),
        compiler_params=pltpu.CompilerParams(
            dimension_semantics=("parallel",),            # megacore sharding on v7x
        ),
    )(time_2d)


if __name__ == "__main__":
    key = jax.random.PRNGKey(0)
    k1, k2 = jax.random.split(key)

    # Case 1: typical diffusion time-embedding call (B=8, dim=256) -> jnp fallback path.
    t1 = jax.random.randint(k1, (8,), minval=0, maxval=1000).astype(jnp.float32)
    o1 = jax.block_until_ready(sinusoidal_position_embeddings(t1, 256))
    assert o1.shape == (8, 256)
    assert jnp.allclose(o1, _reference(t1, 256), atol=1e-5), "mismatch (case 1)"

    # Case 2: Pallas kernel path (B*dim > 64K): ragged batch -> 2-step grid with masked
    # tail block and lane-aligned slice stores (half_dim = 128).
    t2 = jax.random.randint(k2, (300,), minval=0, maxval=1000).astype(jnp.float32)
    o2 = jax.block_until_ready(sinusoidal_position_embeddings(t2, 256))
    assert o2.shape == (300, 256)
    assert jnp.allclose(o2, _reference(t2, 256), atol=5e-4), "mismatch (case 2)"

    # Case 3: non-128-aligned half_dim (dim=192) exercises the concat store path (forced).
    t3 = jax.random.randint(k1, (128,), minval=0, maxval=1000).astype(jnp.float32)
    o3 = jax.block_until_ready(
        sinusoidal_position_embeddings(t3, 192, force_kernel=True))
    assert o3.shape == (128, 192)
    assert jnp.allclose(o3, _reference(t3, 192), atol=5e-4), "mismatch (case 3)"

    # Case 4: narrow dim routes to the fallback (avoids half-masked lane stores).
    o4 = jax.block_until_ready(sinusoidal_position_embeddings(t2, 64))
    assert o4.shape == (300, 64)
    assert jnp.allclose(o4, _reference(t2, 64), atol=1e-5), "mismatch (case 4)"

    # Case 5: bf16 output (halves HBM writeback on store-bound v5e).
    o5 = jax.block_until_ready(
        sinusoidal_position_embeddings(t2, 256, out_dtype=jnp.bfloat16))
    assert o5.dtype == jnp.bfloat16
    assert jnp.allclose(o5.astype(jnp.float32), _reference(t2, 256), atol=2e-2), \
        "mismatch (case 5)"

    print("KERNEL_OK")
</pallas_src>

<mosaic_0001>
module attributes {stable_mosaic.version = 11 : i64} {
  func.func @kernel(%arg0: i32, %arg1: memref<152x1xf32, #tpu.memory_space<vmem>>, %arg2: memref<152x256xf32, #tpu.memory_space<vmem>>) attributes {dimension_semantics = [#tpu.dimension_semantics<parallel>], iteration_bounds = array<i64: 2>, scalar_prefetch = 0 : i64, scratch_operands = 0 : i64, tpu.core_type = #tpu.core_type<tc>, window_params = [{transform_indices = @transform_0, window_bounds = array<i64: 152, 1>}, {transform_indices = @transform_1, window_bounds = array<i64: 152, 256>}]} {
    %0 = tpu.iota {dimensions = array<i32: 1>} : vector<1x128xi32>
    %1 = arith.sitofp %0 : vector<1x128xi32> to vector<1x128xf32>
    %cst = arith.constant -0.0725223646 : f32
    %2 = vector.broadcast %cst : f32 to vector<1x128xf32>
    %3 = arith.mulf %1, %2 : vector<1x128xf32>
    %4 = math.exp %3 : vector<1x128xf32>
    %c0 = arith.constant 0 : index
    %c0_0 = arith.constant 0 : index
    %5 = vector.load %arg1[%c0, %c0_0] : memref<152x1xf32, #tpu.memory_space<vmem>>, vector<152x1xf32>
    %6 = vector.broadcast %5 : vector<152x1xf32> to vector<152x128xf32>
    %7 = vector.broadcast %4 : vector<1x128xf32> to vector<152x128xf32>
    %8 = arith.mulf %6, %7 : vector<152x128xf32>
    %9 = math.sin %8 : vector<152x128xf32>
    %c0_1 = arith.constant 0 : index
    %c0_2 = arith.constant 0 : index
    %10 = vector.load %arg2[%c0_1, %c0_2] : memref<152x256xf32, #tpu.memory_space<vmem>>, vector<152x128xf32>
    tpu.vector_store %arg2[%c0_1, %c0_2], %9 {strides = array<i32>} : memref<152x256xf32, #tpu.memory_space<vmem>>, vector<152x128xf32>,
    %11 = math.cos %8 : vector<152x128xf32>
    %c0_3 = arith.constant 0 : index
    %c128 = arith.constant 128 : index
    %12 = vector.load %arg2[%c0_3, %c128] : memref<152x256xf32, #tpu.memory_space<vmem>>, vector<152x128xf32>
    tpu.vector_store %arg2[%c0_3, %c128], %11 {strides = array<i32>} : memref<152x256xf32, #tpu.memory_space<vmem>>, vector<152x128xf32>,
    return
  }
  func.func @transform_0(%arg0: i32) -> (i32, i32) {
    %c0_i32 = arith.constant 0 : i32
    %c0_i32_0 = arith.constant 0 : i32
    return %arg0, %c0_i32 : i32, i32
  }
  func.func @transform_1(%arg0: i32) -> (i32, i32) {
    %c0_i32 = arith.constant 0 : i32
    %c0_i32_0 = arith.constant 0 : i32
    return %arg0, %c0_i32 : i32, i32
  }
}

</mosaic_0001>

<llo_original>
// kernel: tpu_custom_call.1
$region0: #{tpu_custom_call.1}
  #allocation0 [shape = 'u32[]', space=smem, size = 0x4, offset = 0x4, fixed_abs, tag = 'smem constant byte address 0x4 - core index']
  #allocation1 [shape = 'u32[144,128]{1,0:T(1,128)}', space=vmem, size = 0x12000, scoped, tag = 'internal scratch']
  %s0 = inlined_call_operand.vmem [shape: f32[300,1], index: 0, kind: input, shape index: {}]
  %s1 = inlined_call_operand.hbm [shape: f32[300,256], index: 1, kind: output, shape index: {}]
  %s2 = sld [smem:[#allocation0]]
  $region37: #{tpu_custom_call.1} parent=0
    _
  %s4 = ssub.s32 1, %s2
  %s5 = scalar_select 0, %s4, %s2
  $region1: #{tpu_custom_call.1} parent=0
    #allocation2 [shape = 'u8[311296]{0}', space=vmem, size = 0x4c000, scoped, tag = 'output window, operand 0']
    #allocation3 [shape = 's32[2]{0}', space=sflag, size = 0x8, scoped, tag = 'scoped memory for tpu_custom_call.1']
    %6 = vsyncpa [#allocation3], 0
    %s7 = scalar_lea.sflag [#allocation3], 1
    %8 = vsyncpa %s7, 0
    loop: start=0, step=1, limit=4
    $region2: #{tpu_custom_call.1} parent=1 // loop_pre_header
      _
    $region3: #{tpu_custom_call.1} parent=1 // loop_header
      %s10 = sphi 0, %s14
      %p11 = scmp.ge.s32.totalorder %s10, 4
      %s20 = sphi 0, %s22
      %s23 = sphi 0, %s20
      %s24 = sphi 0, %s23
      %s40 = sphi 0, %s24
      %s46 = sphi 0, %s48
      %s49 = sphi 0, %s46
      %s50 = sphi 0, %s49
      %s66 = sphi 0, %s50
    $region4: #{tpu_custom_call.1} parent=1 // loop_header_branch
      %13 = sbr.rel (%p11) target = $region8
    $region5: #{tpu_custom_call.1} parent=1 // loop_body
      %s15 = ssub.s32 %s10, 1
      %s16 = ssub.s32 %s10, 2
      %s17 = sadd.s32 %s10, 1
      %s18 = ssub.s32 %s10, %s17
      %p19 = scmp.eq.s32.totalorder %s18, 0
      %s21 = sadd.s32 %s20, 1
      %s22 = scalar_select %p19, %s20, %s21
      %p25 = pneg %p19
      %p26 = scmp.eq.s32.totalorder %s10, 1
      %p27 = por %p25, %p26
      %p28 = scmp.ne.s32.totalorder %s20, %s23
      %p29 = scmp.eq.s32.totalorder %s10, 0
      %p30 = por %p28, %p29
      %p31 = scmp.ne.s32.totalorder %s20, %s23
      %p32 = scmp.eq.s32.totalorder %s15, 1
      %p33 = por %p31, %p32
      %p34 = scmp.ne.s32.totalorder %s23, %s24
      %p35 = scmp.eq.s32.totalorder %s15, 0
      %p36 = por %p34, %p35
      %p37 = scmp.ne.s32.totalorder %s23, %s24
      %p38 = scmp.eq.s32.totalorder %s16, 1
      %p39 = por %p37, %p38
      %p41 = scmp.ne.s32.totalorder %s24, %s40
      %p42 = scmp.eq.s32.totalorder %s16, 0
      %p43 = por %p41, %p42
      %s44 = ssub.s32 %s10, %s17
      %p45 = scmp.eq.s32.totalorder %s44, 0
      %s47 = sadd.s32 %s46, 1
      %s48 = scalar_select %p45, %s46, %s47
      %p51 = pneg %p45
      %p52 = scmp.eq.s32.totalorder %s10, 1
      %p53 = por %p51, %p52
      %p54 = scmp.ne.s32.totalorder %s46, %s49
      %p55 = scmp.eq.s32.totalorder %s10, 0
      %p56 = por %p54, %p55
      %p57 = scmp.ne.s32.totalorder %s46, %s49
      %p58 = scmp.eq.s32.totalorder %s15, 1
      %p59 = por %p57, %p58
      %p60 = scmp.ne.s32.totalorder %s49, %s50
      %p61 = scmp.eq.s32.totalorder %s15, 0
      %p62 = por %p60, %p61
      %p63 = scmp.ne.s32.totalorder %s49, %s50
      %p64 = scmp.eq.s32.totalorder %s16, 1
      %p65 = por %p63, %p64
      %p67 = scmp.ne.s32.totalorder %s50, %s66
      %p68 = scmp.eq.s32.totalorder %s16, 0
      %p69 = por %p67, %p68
      %p70 = scmp.le.s32.totalorder 1, %s10
      %p71 = scmp.lt.s32.totalorder %s10, 3
      %p72 = pnand %p70, %p71
      %p73 = pneg %p72
      // Predicated region
      $region9: #{tpu_custom_call.1} parent=5 // pred_check
        _
      $region10: #{tpu_custom_call.1} parent=5 // pred_check_branch
        %75 = sbr.rel (%p72) target = $region12
      $region11: #{tpu_custom_call.1} parent=5 // pred_region
        %s76 = ssub.s32 %s10, 1
      $region12: #{tpu_custom_call.1} parent=5 // pred_fallthru
        _
      %p77 = scmp.lt.s32.totalorder %s10, 2
      // Predicated region
      $region13: #{tpu_custom_call.1} parent=5 // pred_check
        %p78 = pneg %p77
      $region14: #{tpu_custom_call.1} parent=5 // pred_check_branch
        %80 = sbr.rel (%p78) target = $region16
      $region15: #{tpu_custom_call.1} parent=5 // pred_region
        // Predicated region
        $region17: #{tpu_custom_call.1} parent=15 // pred_check
          %p81 = pneg %p30
        $region18: #{tpu_custom_call.1} parent=15 // pred_check_branch
          %83 = sbr.rel (%p81) target = $region20
        $region19: #{tpu_custom_call.1} parent=15 // pred_region
          %s84 = smul.u32 19, %s10
          %p85 = scmp.lt.s32.totalorder %s84, 37
          %s86 = scalar_select %p85, %s84, 37
          %s87 = smul.addr %s86, 8
          %s88 = scalar_lea.vmem %s0, %s87
          %s89 = smul.u32 19, %s10
        $region20: #{tpu_custom_call.1} parent=15 // pred_fallthru
          _
      $region16: #{tpu_custom_call.1} parent=5 // pred_fallthru
        _
      %p90 = scmp.le.s32.totalorder 1, %s10
      %p91 = scmp.lt.s32.totalorder %s10, 3
      %p92 = pnand %p90, %p91
      %p93 = pneg %p92
      // Predicated region
      $region21: #{tpu_custom_call.1} parent=5 // pred_check
        _
      $region22: #{tpu_custom_call.1} parent=5 // pred_check_branch
        %95 = sbr.rel (%p92) target = $region24
      $region23: #{tpu_custom_call.1} parent=5 // pred_region
        %s96 = ssub.s32 %s10, 1
        %s97 = smul.u32 19, %s15
        %p98 = scmp.lt.s32.totalorder %s97, 37
        %s99 = scalar_select %p98, %s97, 37
        %s100 = smul.addr %s99, 8
        %s101 = scalar_lea.vmem %s0, %s100
        %p102 = pneg %p36
        %p103 = pneg %p33
        %p104 = pneg %p62
        %p105 = pneg %p59
        %s106 = sand.u32 %s49, 1
        %s107 = scalar_lea.sflag [#allocation3], %s106
        %s108 = sand.u32 %s49, 1
        %s109 = smul.addr %s108, 304
        %s110 = scalar_lea.vmem [#allocation2], %s109
        %s111 = smul.u32 19, %s15
        %p112 = scmp.lt.s32.totalorder %s111, 37
        %s113 = scalar_select %p112, %s111, 37
        %s114 = smul.addr %s113, 8
        %s115 = scalar_lea.vmem %s0, %s114
        %s116 = smul.u32 19, %s15
        %s117 = smul.u32 19, %s15
        %v118 = vlaneseq
        %v119 = vand.u32 %v118, 127
        %v120 = vcvt.s32.f32 %v119
        %v121 = vmul.f32 %v120, -0.072522365
        %v122 = vmul.f32 %v121, 1.442695
        %v123 = vpow.pop %v122
        %v124 = vld [vmem:[%s115] sm:$0xff]
        %v125 = vld [vmem:[%s115 + $0x8] sm:$0xff]
        %v126 = vld [vmem:[%s115 + $0x10] sm:$0xff]
        %v127 = vld [vmem:[%s115 + $0x18] sm:$0xff]
        %v128 = vld [vmem:[%s115 + $0x20] sm:$0xff]
        %v129 = vld [vmem:[%s115 + $0x28] sm:$0xff]
        %v130 = vld [vmem:[%s115 + $0x30] sm:$0xff]
        %v131 = vld [vmem:[%s115 + $0x38] sm:$0xff]
        %v132 = vld [vmem:[%s115 + $0x40] sm:$0xff]
        %v133 = vld [vmem:[%s115 + $0x48] sm:$0xff]
        %v134 = vld [vmem:[%s115 + $0x50] sm:$0xff]
        %v135 = vld [vmem:[%s115 + $0x58] sm:$0xff]
        %v136 = vld [vmem:[%s115 + $0x60] sm:$0xff]
        %v137 = vld [vmem:[%s115 + $0x68] sm:$0xff]
        %v138 = vld [vmem:[%s115 + $0x70] sm:$0xff]
        %v139 = vld [vmem:[%s115 + $0x78] sm:$0xff]
        %v140 = vld [vmem:[%s115 + $0x80] sm:$0xff]
        %v141 = vld [vmem:[%s115 + $0x88] sm:$0xff]
        %v142 = vld [vmem:[%s115 + $0x90] sm:$0xff]
        %144 = vset.pattern.permute.xlu0 0
        %145 = vperm.xlu0 %144, %v124
        %v146 = vpop.permute.xlu0 %145
        %149 = vset.pattern.permute.xlu0 0
        %150 = vperm.xlu0 %149, %v125
        %v151 = vpop.permute.xlu0 %150
        %154 = vset.pattern.permute.xlu0 0
        %155 = vperm.xlu0 %154, %v126
        %v156 = vpop.permute.xlu0 %155
        %159 = vset.pattern.permute.xlu0 0
        %160 = vperm.xlu0 %159, %v127
        %v161 = vpop.permute.xlu0 %160
        %164 = vset.pattern.permute.xlu0 0
        %165 = vperm.xlu0 %164, %v128
        %v166 = vpop.permute.xlu0 %165
        %169 = vset.pattern.permute.xlu0 0
        %170 = vperm.xlu0 %169, %v129
        %v171 = vpop.permute.xlu0 %170
        %174 = vset.pattern.permute.xlu0 0
        %175 = vperm.xlu0 %174, %v130
        %v176 = vpop.permute.xlu0 %175
        %179 = vset.pattern.permute.xlu0 0
        %180 = vperm.xlu0 %179, %v131
        %v181 = vpop.permute.xlu0 %180
        %184 = vset.pattern.permute.xlu0 0
        %185 = vperm.xlu0 %184, %v132
        %v186 = vpop.permute.xlu0 %185
        %189 = vset.pattern.permute.xlu0 0
        %190 = vperm.xlu0 %189, %v133
        %v191 = vpop.permute.xlu0 %190
        %194 = vset.pattern.permute.xlu0 0
        %195 = vperm.xlu0 %194, %v134
        %v196 = vpop.permute.xlu0 %195
        %199 = vset.pattern.permute.xlu0 0
        %200 = vperm.xlu0 %199, %v135
        %v201 = vpop.permute.xlu0 %200
        %204 = vset.pattern.permute.xlu0 0
        %205 = vperm.xlu0 %204, %v136
        %v206 = vpop.permute.xlu0 %205
        %209 = vset.pattern.permute.xlu0 0
        %210 = vperm.xlu0 %209, %v137
        %v211 = vpop.permute.xlu0 %210
        %214 = vset.pattern.permute.xlu0 0
        %215 = vperm.xlu0 %214, %v138
        %v216 = vpop.permute.xlu0 %215
        %219 = vset.pattern.permute.xlu0 0
        %220 = vperm.xlu0 %219, %v139
        %v221 = vpop.permute.xlu0 %220
        %224 = vset.pattern.permute.xlu0 0
        %225 = vperm.xlu0 %224, %v140
        %v226 = vpop.permute.xlu0 %225
        %229 = vset.pattern.permute.xlu0 0
        %230 = vperm.xlu0 %229, %v141
        %v231 = vpop.permute.xlu0 %230
        %234 = vset.pattern.permute.xlu0 0
        %235 = vperm.xlu0 %234, %v142
        %v236 = vpop.permute.xlu0 %235
        %v238 = vmul.f32 %v146, %v123
        %v239 = vmul.f32 %v151, %v123
        %v240 = vmul.f32 %v156, %v123
        %v241 = vmul.f32 %v161, %v123
        %v242 = vmul.f32 %v166, %v123
        %v243 = vmul.f32 %v171, %v123
        %v244 = vmul.f32 %v176, %v123
        %v245 = vmul.f32 %v181, %v123
        %v246 = vmul.f32 %v186, %v123
        %v247 = vmul.f32 %v191, %v123
        %v248 = vmul.f32 %v196, %v123
        %v249 = vmul.f32 %v201, %v123
        %v250 = vmul.f32 %v206, %v123
        %v251 = vmul.f32 %v211, %v123
        %v252 = vmul.f32 %v216, %v123
        %v253 = vmul.f32 %v221, %v123
        %v254 = vmul.f32 %v226, %v123
        %v255 = vmul.f32 %v231, %v123
        %v256 = vmul.f32 %v236, %v123
        %v257 = vand.u32 2147483647, %v238
        %vm258 = vcmp.le.f32.partialorder %v257, 0.7853982
        %vm259 = vcmp.lt.s32.totalorder %v238, 0
        %v260 = vand.u32 %v238, 2139095040
        %v261 = vshrl.u32 %v260, 23
        %v262 = vsub.s32 %v261, 127
        %v263 = vand.u32 2147483647, %v238
        %v264 = vand.u32 %v263, 8388607
        %v265 = vor.u32 %v264, 8388608
        %v266 = vsub.s32 0, %v265
        %v267 = vadd.s32 %v262, 1
        %vm268 = vcmp.gt.s32.totalorder %v267, 0
        %v269 = vsel %vm268, %v267, 0
        %v270 = vshrl.u32 %v269, 5
        %v271 = vand.u32 %v269, 31
        %v272 = vsub.s32 32, %v271
        %v273 = vshrl.u32 683565275, %v272
        %v274 = vshll.u32 683565275, %v271
        %v275 = vshrl.u32 2475754826, %v272
        %v276 = vor.u32 %v274, %v275
        %v277 = vshll.u32 2475754826, %v271
        %v278 = vshrl.u32 2131351028, %v272
        %v279 = vor.u32 %v277, %v278
        %v280 = vshll.u32 2131351028, %v271
        %v281 = vshrl.u32 2102212464, %v272
        %v282 = vor.u32 %v280, %v281
        %v283 = vshll.u32 2102212464, %v271
        %v284 = vshrl.u32 920167782, %v272
        %v285 = vor.u32 %v283, %v284
        %v286 = vshll.u32 920167782, %v271
        %v287 = vshrl.u32 1326507024, %v272
        %v288 = vor.u32 %v286, %v287
        %vm289 = vcmp.lt.s32.totalorder %v270, 1
        %vm290 = vcmp.lt.s32.totalorder %v270, 2
        %vm291 = vcmp.lt.s32.totalorder %v270, 3
        %vm292 = vcmp.lt.s32.totalorder %v270, 4
        %v293 = vsel %vm289, %v273, %v276
        %v294 = vsel %vm292, %v282, 2102212464
        %v295 = vsel %vm291, %v279, %v294
        %v296 = vsel %vm290, %v293, %v295
        %v297 = vsel %vm289, %v276, %v279
        %v298 = vsel %vm292, %v285, 920167782
        %v299 = vsel %vm291, %v282, %v298
        %v300 = vsel %vm290, %v297, %v299
        %v301 = vsel %vm289, %v279, %v282
        %v302 = vsel %vm292, %v288, 1326507024
        %v303 = vsel %vm291, %v285, %v302
        %v304 = vsel %vm290, %v301, %v303
        %v305 = vshll.u32 %v265, 8
        %v306 = vmul.u32.u64.compose %v305, %v304
        %v307 = vextract.low.u32 %v306
        %v308 = vextract.high.u32 %v306
        %v309 = vmul.u32.u64.compose %v305, %v300
        %v310 = vextract.low.u32 %v309
        %v311 = vextract.high.u32 %v309
        %v312 = vmul.u32 %v305, %v296
        %v313 = vadd.s32 %v308, %v310
        %vm314 = vc.u32 %v308, %v310
        %v315 = vadd.s32 %v311, 1
        %v316 = vsel %vm314, %v315, %v311
        %v317 = vadd.s32 %v312, %v316
        %v318 = vadd.s32 %v317, 536870912
        %v319 = vshrl.u32 %v318, 30
        %v320 = vshll.u32 %v319, 30
        %v321 = vsub.s32 %v317, %v320
        %vm322 = vcmp.lt.s32.totalorder %v321, 0
        %v323 = vsub.s32 0, %v321
        %v324 = vsel %vm322, %v323, %v321
        %v325 = vclz %v324
        %v326 = vsub.s32 %v325, 2
        %vm327 = vcmp.gt.s32.totalorder 0, %v326
        %v328 = vsel %vm327, 0, %v326
        %v329 = vsub.s32 32, %v328
        %v330 = vshll.u32 %v321, %v328
        %v331 = vshrl.u32 %v313, %v329
        %v332 = vor.u32 %v330, %v331
        %v333 = vsub.s32 4294967266, %v328
        %v334 = vadd.s32 %v333, 127
        %v335 = vshll.u32 %v334, 23
        %v336 = vor.u32 4788187, %v335
        %v337 = vand.u32 2147483647, %v336
        %v339 = vcvt.s32.f32 %v332
        %v340 = vmul.f32 %v339, %v337
        %v341 = vxor.u32 %v340, 2147483648
        %v342 = vsel %vm259, %v341, %v340
        %v343 = vsub.s32 4, %v319
        %v344 = vsel %vm259, %v343, %v319
        %v345 = vsel %vm258, %v238, %v342
        %v346 = vsel %vm258, 0, %v344
        %v347 = vcosq.f32.pop %v345
        %v348 = vsinq.f32.pop %v345
        %vm349 = vweird.f32 %v238
        %v350 = vadd.s32 %v346, 3
        %v351 = vand.u32 %v350, 3
        %vm352 = vcmp.lt.s32.totalorder %v351, 2
        %vm353 = vcmp.eq.s32.totalorder %v351, 0
        %v354 = vxor.u32 %v348, 2147483648
        %v355 = vsel %vm353, %v347, %v354
        %vm356 = vcmp.eq.s32.totalorder %v351, 2
        %v357 = vxor.u32 %v347, 2147483648
        %v358 = vsel %vm356, %v357, %v348
        %v359 = vsel %vm352, %v355, %v358
        %v360 = vsel %vm349, nan, %v359
        %v361 = vand.u32 2147483647, %v239
        %vm362 = vcmp.le.f32.partialorder %v361, 0.7853982
        %vm363 = vcmp.lt.s32.totalorder %v239, 0
        %v364 = vand.u32 %v239, 2139095040
        %v365 = vshrl.u32 %v364, 23
        %v366 = vsub.s32 %v365, 127
        %v367 = vand.u32 2147483647, %v239
        %v368 = vand.u32 %v367, 8388607
        %v369 = vor.u32 %v368, 8388608
        %v370 = vsub.s32 0, %v369
        %v371 = vadd.s32 %v366, 1
        %vm372 = vcmp.gt.s32.totalorder %v371, 0
        %v373 = vsel %vm372, %v371, 0
        %v374 = vshrl.u32 %v373, 5
        %v375 = vand.u32 %v373, 31
        %v376 = vsub.s32 32, %v375
        %v377 = vshrl.u32 683565275, %v376
        %v378 = vshll.u32 683565275, %v375
        %v379 = vshrl.u32 2475754826, %v376
        %v380 = vor.u32 %v378, %v379
        %v381 = vshll.u32 2475754826, %v375
        %v382 = vshrl.u32 2131351028, %v376
        %v383 = vor.u32 %v381, %v382
        %v384 = vshll.u32 2131351028, %v375
        %v385 = vshrl.u32 2102212464, %v376
        %v386 = vor.u32 %v384, %v385
        %v387 = vshll.u32 2102212464, %v375
        %v388 = vshrl.u32 920167782, %v376
        %v389 = vor.u32 %v387, %v388
        %v390 = vshll.u32 920167782, %v375
        %v391 = vshrl.u32 1326507024, %v376
        %v392 = vor.u32 %v390, %v391
        %vm393 = vcmp.lt.s32.totalorder %v374, 1
        %vm394 = vcmp.lt.s32.totalorder %v374, 2
        %vm395 = vcmp.lt.s32.totalorder %v374, 3
        %vm396 = vcmp.lt.s32.totalorder %v374, 4
        %v397 = vsel %vm393, %v377, %v380
        %v398 = vsel %vm396, %v386, 2102212464
        %v399 = vsel %vm395, %v383, %v398
        %v400 = vsel %vm394, %v397, %v399
        %v401 = vsel %vm393, %v380, %v383
        %v402 = vsel %vm396, %v389, 920167782
        %v403 = vsel %vm395, %v386, %v402
        %v404 = vsel %vm394, %v401, %v403
        %v405 = vsel %vm393, %v383, %v386
        %v406 = vsel %vm396, %v392, 1326507024
        %v407 = vsel %vm395, %v389, %v406
        %v408 = vsel %vm394, %v405, %v407
        %v409 = vshll.u32 %v369, 8
        %v410 = vmul.u32.u64.compose %v409, %v408
        %v411 = vextract.low.u32 %v410
        %v412 = vextract.high.u32 %v410
        %v413 = vmul.u32.u64.compose %v409, %v404
        %v414 = vextract.low.u32 %v413
        %v415 = vextract.high.u32 %v413
        %v416 = vmul.u32 %v409, %v400
        %v417 = vadd.s32 %v412, %v414
        %vm418 = vc.u32 %v412, %v414
        %v419 = vadd.s32 %v415, 1
        %v420 = vsel %vm418, %v419, %v415
        %v421 = vadd.s32 %v416, %v420
        %v422 = vadd.s32 %v421, 536870912
        %v423 = vshrl.u32 %v422, 30
        %v424 = vshll.u32 %v423, 30
        %v425 = vsub.s32 %v421, %v424
        %vm426 = vcmp.lt.s32.totalorder %v425, 0
        %v427 = vsub.s32 0, %v425
        %v428 = vsel %vm426, %v427, %v425
        %v429 = vclz %v428
        %v430 = vsub.s32 %v429, 2
        %vm431 = vcmp.gt.s32.totalorder 0, %v430
        %v432 = vsel %vm431, 0, %v430
        %v433 = vsub.s32 32, %v432
        %v434 = vshll.u32 %v425, %v432
        %v435 = vshrl.u32 %v417, %v433
        %v436 = vor.u32 %v434, %v435
        %v437 = vsub.s32 4294967266, %v432
        %v438 = vadd.s32 %v437, 127
        %v439 = vshll.u32 %v438, 23
        %v440 = vor.u32 4788187, %v439
        %v441 = vand.u32 2147483647, %v440
        %v443 = vcvt.s32.f32 %v436
        %v444 = vmul.f32 %v443, %v441
        %v445 = vxor.u32 %v444, 2147483648
        %v446 = vsel %vm363, %v445, %v444
        %v447 = vsub.s32 4, %v423
        %v448 = vsel %vm363, %v447, %v423
        %v449 = vsel %vm362, %v239, %v446
        %v450 = vsel %vm362, 0, %v448
        %v451 = vcosq.f32.pop %v449
        %v452 = vsinq.f32.pop %v449
        %vm453 = vweird.f32 %v239
        %v454 = vadd.s32 %v450, 3
        %v455 = vand.u32 %v454, 3
        %vm456 = vcmp.lt.s32.totalorder %v455, 2
        %vm457 = vcmp.eq.s32.totalorder %v455, 0
        %v458 = vxor.u32 %v452, 2147483648
        %v459 = vsel %vm457, %v451, %v458
        %vm460 = vcmp.eq.s32.totalorder %v455, 2
        %v461 = vxor.u32 %v451, 2147483648
        %v462 = vsel %vm460, %v461, %v452
        %v463 = vsel %vm456, %v459, %v462
        %v464 = vsel %vm453, nan, %v463
        %v465 = vand.u32 2147483647, %v240
        %vm466 = vcmp.le.f32.partialorder %v465, 0.7853982
        %vm467 = vcmp.lt.s32.totalorder %v240, 0
        %v468 = vand.u32 %v240, 2139095040
        %v469 = vshrl.u32 %v468, 23
        %v470 = vsub.s32 %v469, 127
        %v471 = vand.u32 2147483647, %v240
        %v472 = vand.u32 %v471, 8388607
        %v473 = vor.u32 %v472, 8388608
        %v474 = vsub.s32 0, %v473
        %v475 = vadd.s32 %v470, 1
        %vm476 = vcmp.gt.s32.totalorder %v475, 0
        %v477 = vsel %vm476, %v475, 0
        %v478 = vshrl.u32 %v477, 5
        %v479 = vand.u32 %v477, 31
        %v480 = vsub.s32 32, %v479
        %v481 = vshrl.u32 683565275, %v480
        %v482 = vshll.u32 683565275, %v479
        %v483 = vshrl.u32 2475754826, %v480
        %v484 = vor.u32 %v482, %v483
        %v485 = vshll.u32 2475754826, %v479
        %v486 = vshrl.u32 2131351028, %v480
        %v487 = vor.u32 %v485, %v486
        %v488 = vshll.u32 2131351028, %v479
        %v489 = vshrl.u32 2102212464, %v480
        %v490 = vor.u32 %v488, %v489
        %v491 = vshll.u32 2102212464, %v479
        %v492 = vshrl.u32 920167782, %v480
        %v493 = vor.u32 %v491, %v492
        %v494 = vshll.u32 920167782, %v479
        %v495 = vshrl.u32 1326507024, %v480
        %v496 = vor.u32 %v494, %v495
        %vm497 = vcmp.lt.s32.totalorder %v478, 1
        %vm498 = vcmp.lt.s32.totalorder %v478, 2
        %vm499 = vcmp.lt.s32.totalorder %v478, 3
        %vm500 = vcmp.lt.s32.totalorder %v478, 4
        %v501 = vsel %vm497, %v481, %v484
        %v502 = vsel %vm500, %v490, 2102212464
        %v503 = vsel %vm499, %v487, %v502
        %v504 = vsel %vm498, %v501, %v503
        %v505 = vsel %vm497, %v484, %v487
        %v506 = vsel %vm500, %v493, 920167782
        %v507 = vsel %vm499, %v490, %v506
        %v508 = vsel %vm498, %v505, %v507
        %v509 = vsel %vm497, %v487, %v490
        %v510 = vsel %vm500, %v496, 1326507024
        %v511 = vsel %vm499, %v493, %v510
        %v512 = vsel %vm498, %v509, %v511
        %v513 = vshll.u32 %v473, 8
        %v514 = vmul.u32.u64.compose %v513, %v512
        %v515 = vextract.low.u32 %v514
        %v516 = vextract.high.u32 %v514
        %v517 = vmul.u32.u64.compose %v513, %v508
        %v518 = vextract.low.u32 %v517
        %v519 = vextract.high.u32 %v517
        %v520 = vmul.u32 %v513, %v504
        %v521 = vadd.s32 %v516, %v518
        %vm522 = vc.u32 %v516, %v518
        %v523 = vadd.s32 %v519, 1
        %v524 = vsel %vm522, %v523, %v519
        %v525 = vadd.s32 %v520, %v524
        %v526 = vadd.s32 %v525, 536870912
        %v527 = vshrl.u32 %v526, 30
        %v528 = vshll.u32 %v527, 30
        %v529 = vsub.s32 %v525, %v528
        %vm530 = vcmp.lt.s32.totalorder %v529, 0
        %v531 = vsub.s32 0, %v529
        %v532 = vsel %vm530, %v531, %v529
        %v533 = vclz %v532
        %v534 = vsub.s32 %v533, 2
        %vm535 = vcmp.gt.s32.totalorder 0, %v534
        %v536 = vsel %vm535, 0, %v534
        %v537 = vsub.s32 32, %v536
        %v538 = vshll.u32 %v529, %v536
        %v539 = vshrl.u32 %v521, %v537
        %v540 = vor.u32 %v538, %v539
        %v541 = vsub.s32 4294967266, %v536
        %v542 = vadd.s32 %v541, 127
        %v543 = vshll.u32 %v542, 23
        %v544 = vor.u32 4788187, %v543
        %v545 = vand.u32 2147483647, %v544
        %v547 = vcvt.s32.f32 %v540
        %v548 = vmul.f32 %v547, %v545
        %v549 = vxor.u32 %v548, 2147483648
        %v550 = vsel %vm467, %v549, %v548
        %v551 = vsub.s32 4, %v527
        %v552 = vsel %vm467, %v551, %v527
        %v553 = vsel %vm466, %v240, %v550
        %v554 = vsel %vm466, 0, %v552
        %v555 = vcosq.f32.pop %v553
        %v556 = vsinq.f32.pop %v553
        %vm557 = vweird.f32 %v240
        %v558 = vadd.s32 %v554, 3
        %v559 = vand.u32 %v558, 3
        %vm560 = vcmp.lt.s32.totalorder %v559, 2
        %vm561 = vcmp.eq.s32.totalorder %v559, 0
        %v562 = vxor.u32 %v556, 2147483648
        %v563 = vsel %vm561, %v555, %v562
        %vm564 = vcmp.eq.s32.totalorder %v559, 2
        %v565 = vxor.u32 %v555, 2147483648
        %v566 = vsel %vm564, %v565, %v556
        %v567 = vsel %vm560, %v563, %v566
        %v568 = vsel %vm557, nan, %v567
        %v569 = vand.u32 2147483647, %v241
        %vm570 = vcmp.le.f32.partialorder %v569, 0.7853982
        %vm571 = vcmp.lt.s32.totalorder %v241, 0
        %v572 = vand.u32 %v241, 2139095040
        %v573 = vshrl.u32 %v572, 23
        %v574 = vsub.s32 %v573, 127
        %v575 = vand.u32 2147483647, %v241
        %v576 = vand.u32 %v575, 8388607
        %v577 = vor.u32 %v576, 8388608
        %v578 = vsub.s32 0, %v577
        %v579 = vadd.s32 %v574, 1
        %vm580 = vcmp.gt.s32.totalorder %v579, 0
        %v581 = vsel %vm580, %v579, 0
        %v582 = vshrl.u32 %v581, 5
        %v583 = vand.u32 %v581, 31
        %v584 = vsub.s32 32, %v583
        %v585 = vshrl.u32 683565275, %v584
        %v586 = vshll.u32 683565275, %v583
        %v587 = vshrl.u32 2475754826, %v584
        %v588 = vor.u32 %v586, %v587
        %v589 = vshll.u32 2475754826, %v583
        %v590 = vshrl.u32 2131351028, %v584
        %v591 = vor.u32 %v589, %v590
        %v592 = vshll.u32 2131351028, %v583
        %v593 = vshrl.u32 2102212464, %v584
        %v594 = vor.u32 %v592, %v593
        %v595 = vshll.u32 2102212464, %v583
        %v596 = vshrl.u32 920167782, %v584
        %v597 = vor.u32 %v595, %v596
        %v598 = vshll.u32 920167782, %v583
        %v599 = vshrl.u32 1326507024, %v584
        %v600 = vor.u32 %v598, %v599
        %vm601 = vcmp.lt.s32.totalorder %v582, 1
        %vm602 = vcmp.lt.s32.totalorder %v582, 2
        %vm603 = vcmp.lt.s32.totalorder %v582, 3
        %vm604 = vcmp.lt.s32.totalorder %v582, 4
        %v605 = vsel %vm601, %v585, %v588
        %v606 = vsel %vm604, %v594, 2102212464
        %v607 = vsel %vm603, %v591, %v606
        %v608 = vsel %vm602, %v605, %v607
        %v609 = vsel %vm601, %v588, %v591
        %v610 = vsel %vm604, %v597, 920167782
        %v611 = vsel %vm603, %v594, %v610
        %v612 = vsel %vm602, %v609, %v611
        %v613 = vsel %vm601, %v591, %v594
        %v614 = vsel %vm604, %v600, 1326507024
        %v615 = vsel %vm603, %v597, %v614
        %v616 = vsel %vm602, %v613, %v615
        %v617 = vshll.u32 %v577, 8
        %v618 = vmul.u32.u64.compose %v617, %v616
        %v619 = vextract.low.u32 %v618
        %v620 = vextract.high.u32 %v618
        %v621 = vmul.u32.u64.compose %v617, %v612
        %v622 = vextract.low.u32 %v621
        %v623 = vextract.high.u32 %v621
        %v624 = vmul.u32 %v617, %v608
        %v625 = vadd.s32 %v620, %v622
        %vm626 = vc.u32 %v620, %v622
        %v627 = vadd.s32 %v623, 1
        %v628 = vsel %vm626, %v627, %v623
        %v629 = vadd.s32 %v624, %v628
        %v630 = vadd.s32 %v629, 536870912
        %v631 = vshrl.u32 %v630, 30
        %v632 = vshll.u32 %v631, 30
        %v633 = vsub.s32 %v629, %v632
        %vm634 = vcmp.lt.s32.totalorder %v633, 0
        %v635 = vsub.s32 0, %v633
        %v636 = vsel %vm634, %v635, %v633
        %v637 = vclz %v636
        %v638 = vsub.s32 %v637, 2
        %vm639 = vcmp.gt.s32.totalorder 0, %v638
        %v640 = vsel %vm639, 0, %v638
        %v641 = vsub.s32 32, %v640
        %v642 = vshll.u32 %v633, %v640
        %v643 = vshrl.u32 %v625, %v641
        %v644 = vor.u32 %v642, %v643
        %v645 = vsub.s32 4294967266, %v640
        %v646 = vadd.s32 %v645, 127
        %v647 = vshll.u32 %v646, 23
        %v648 = vor.u32 4788187, %v647
        %v649 = vand.u32 2147483647, %v648
        %v651 = vcvt.s32.f32 %v644
        %v652 = vmul.f32 %v651, %v649
        %v653 = vxor.u32 %v652, 2147483648
        %v654 = vsel %vm571, %v653, %v652
        %v655 = vsub.s32 4, %v631
        %v656 = vsel %vm571, %v655, %v631
        %v657 = vsel %vm570, %v241, %v654
        %v658 = vsel %vm570, 0, %v656
        %v659 = vcosq.f32.pop %v657
        %v660 = vsinq.f32.pop %v657
        %vm661 = vweird.f32 %v241
        %v662 = vadd.s32 %v658, 3
        %v663 = vand.u32 %v662, 3
        %vm664 = vcmp.lt.s32.totalorder %v663, 2
        %vm665 = vcmp.eq.s32.totalorder %v663, 0
        %v666 = vxor.u32 %v660, 2147483648
        %v667 = vsel %vm665, %v659, %v666
        %vm668 = vcmp.eq.s32.totalorder %v663, 2
        %v669 = vxor.u32 %v659, 2147483648
        %v670 = vsel %vm668, %v669, %v660
        %v671 = vsel %vm664, %v667, %v670
        %v672 = vsel %vm661, nan, %v671
        %v673 = vand.u32 2147483647, %v242
        %vm674 = vcmp.le.f32.partialorder %v673, 0.7853982
        %vm675 = vcmp.lt.s32.totalorder %v242, 0
        %v676 = vand.u32 %v242, 2139095040
        %v677 = vshrl.u32 %v676, 23
        %v678 = vsub.s32 %v677, 127
        %v679 = vand.u32 2147483647, %v242
        %v680 = vand.u32 %v679, 8388607
        %v681 = vor.u32 %v680, 8388608
        %v682 = vsub.s32 0, %v681
        %v683 = vadd.s32 %v678, 1
        %vm684 = vcmp.gt.s32.totalorder %v683, 0
        %v685 = vsel %vm684, %v683, 0
        %v686 = vshrl.u32 %v685, 5
        %v687 = vand.u32 %v685, 31
        %v688 = vsub.s32 32, %v687
        %v689 = vshrl.u32 683565275, %v688
        %v690 = vshll.u32 683565275, %v687
        %v691 = vshrl.u32 2475754826, %v688
        %v692 = vor.u32 %v690, %v691
        %v693 = vshll.u32 2475754826, %v687
        %v694 = vshrl.u32 2131351028, %v688
        %v695 = vor.u32 %v693, %v694
        %v696 = vshll.u32 2131351028, %v687
        %v697 = vshrl.u32 2102212464, %v688
        %v698 = vor.u32 %v696, %v697
        %v699 = vshll.u32 2102212464, %v687
        %v700 = vshrl.u32 920167782, %v688
        %v701 = vor.u32 %v699, %v700
        %v702 = vshll.u32 920167782, %v687
        %v703 = vshrl.u32 1326507024, %v688
        %v704 = vor.u32 %v702, %v703
        %vm705 = vcmp.lt.s32.totalorder %v686, 1
        %vm706 = vcmp.lt.s32.totalorder %v686, 2
        %vm707 = vcmp.lt.s32.totalorder %v686, 3
        %vm708 = vcmp.lt.s32.totalorder %v686, 4
        %v709 = vsel %vm705, %v689, %v692
        %v710 = vsel %vm708, %v698, 2102212464
        %v711 = vsel %vm707, %v695, %v710
        %v712 = vsel %vm706, %v709, %v711
        %v713 = vsel %vm705, %v692, %v695
        %v714 = vsel %vm708, %v701, 920167782
        %v715 = vsel %vm707, %v698, %v714
        %v716 = vsel %vm706, %v713, %v715
        %v717 = vsel %vm705, %v695, %v698
        %v718 = vsel %vm708, %v704, 1326507024
        %v719 = vsel %vm707, %v701, %v718
        %v720 = vsel %vm706, %v717, %v719
        %v721 = vshll.u32 %v681, 8
        %v722 = vmul.u32.u64.compose %v721, %v720
        %v723 = vextract.low.u32 %v722
        %v724 = vextract.high.u32 %v722
        %v725 = vmul.u32.u64.compose %v721, %v716
        %v726 = vextract.low.u32 %v725
        %v727 = vextract.high.u32 %v725
        %v728 = vmul.u32 %v721, %v712
        %v729 = vadd.s32 %v724, %v726
        %vm730 = vc.u32 %v724, %v726
        %v731 = vadd.s32 %v727, 1
        %v732 = vsel %vm730, %v731, %v727
        %v733 = vadd.s32 %v728, %v732
        %v734 = vadd.s32 %v733, 536870912
        %v735 = vshrl.u32 %v734, 30
        %v736 = vshll.u32 %v735, 30
        %v737 = vsub.s32 %v733, %v736
        %vm738 = vcmp.lt.s32.totalorder %v737, 0
        %v739 = vsub.s32 0, %v737
        %v740 = vsel %vm738, %v739, %v737
        %v741 = vclz %v740
        %v742 = vsub.s32 %v741, 2
        %vm743 = vcmp.gt.s32.totalorder 0, %v742
        %v744 = vsel %vm743, 0, %v742
        %v745 = vsub.s32 32, %v744
        %v746 = vshll.u32 %v737, %v744
        %v747 = vshrl.u32 %v729, %v745
        %v748 = vor.u32 %v746, %v747
        %v749 = vsub.s32 4294967266, %v744
        %v750 = vadd.s32 %v749, 127
        %v751 = vshll.u32 %v750, 23
        %v752 = vor.u32 4788187, %v751
        %v753 = vand.u32 2147483647, %v752
        %v755 = vcvt.s32.f32 %v748
        %v756 = vmul.f32 %v755, %v753
        %v757 = vxor.u32 %v756, 2147483648
        %v758 = vsel %vm675, %v757, %v756
        %v759 = vsub.s32 4, %v735
        %v760 = vsel %vm675, %v759, %v735
        %v761 = vsel %vm674, %v242, %v758
        %v762 = vsel %vm674, 0, %v760
        %v763 = vcosq.f32.pop %v761
        %v764 = vsinq.f32.pop %v761
        %vm765 = vweird.f32 %v242
        %v766 = vadd.s32 %v762, 3
        %v767 = vand.u32 %v766, 3
        %vm768 = vcmp.lt.s32.totalorder %v767, 2
        %vm769 = vcmp.eq.s32.totalorder %v767, 0
        %v770 = vxor.u32 %v764, 2147483648
        %v771 = vsel %vm769, %v763, %v770
        %vm772 = vcmp.eq.s32.totalorder %v767, 2
        %v773 = vxor.u32 %v763, 2147483648
        %v774 = vsel %vm772, %v773, %v764
        %v775 = vsel %vm768, %v771, %v774
        %v776 = vsel %vm765, nan, %v775
        %v777 = vand.u32 2147483647, %v243
        %vm778 = vcmp.le.f32.partialorder %v777, 0.7853982
        %vm779 = vcmp.lt.s32.totalorder %v243, 0
        %v780 = vand.u32 %v243, 2139095040
        %v781 = vshrl.u32 %v780, 23
        %v782 = vsub.s32 %v781, 127
        %v783 = vand.u32 2147483647, %v243
        %v784 = vand.u32 %v783, 8388607
        %v785 = vor.u32 %v784, 8388608
        %v786 = vsub.s32 0, %v785
        %v787 = vadd.s32 %v782, 1
        %vm788 = vcmp.gt.s32.totalorder %v787, 0
        %v789 = vsel %vm788, %v787, 0
        %v790 = vshrl.u32 %v789, 5
        %v791 = vand.u32 %v789, 31
        %v792 = vsub.s32 32, %v791
        %v793 = vshrl.u32 683565275, %v792
        %v794 = vshll.u32 683565275, %v791
        %v795 = vshrl.u32 2475754826, %v792
        %v796 = vor.u32 %v794, %v795
        %v797 = vshll.u32 2475754826, %v791
        %v798 = vshrl.u32 2131351028, %v792
        %v799 = vor.u32 %v797, %v798
        %v800 = vshll.u32 2131351028, %v791
        %v801 = vshrl.u32 2102212464, %v792
        %v802 = vor.u32 %v800, %v801
        %v803 = vshll.u32 2102212464, %v791
        %v804 = vshrl.u32 920167782, %v792
        %v805 = vor.u32 %v803, %v804
        %v806 = vshll.u32 920167782, %v791
        %v807 = vshrl.u32 1326507024, %v792
        %v808 = vor.u32 %v806, %v807
        %vm809 = vcmp.lt.s32.totalorder %v790, 1
        %vm810 = vcmp.lt.s32.totalorder %v790, 2
        %vm811 = vcmp.lt.s32.totalorder %v790, 3
        %vm812 = vcmp.lt.s32.totalorder %v790, 4
        %v813 = vsel %vm809, %v793, %v796
        %v814 = vsel %vm812, %v802, 2102212464
        %v815 = vsel %vm811, %v799, %v814
        %v816 = vsel %vm810, %v813, %v815
        %v817 = vsel %vm809, %v796, %v799
        %v818 = vsel %vm812, %v805, 920167782
        %v819 = vsel %vm811, %v802, %v818
        %v820 = vsel %vm810, %v817, %v819
        %v821 = vsel %vm809, %v799, %v802
        %v822 = vsel %vm812, %v808, 1326507024
        %v823 = vsel %vm811, %v805, %v822
        %v824 = vsel %vm810, %v821, %v823
        %v825 = vshll.u32 %v785, 8
        %v826 = vmul.u32.u64.compose %v825, %v824
        %v827 = vextract.low.u32 %v826
        %v828 = vextract.high.u32 %v826
        %v829 = vmul.u32.u64.compose %v825, %v820
        %v830 = vextract.low.u32 %v829
        %v831 = vextract.high.u32 %v829
        %v832 = vmul.u32 %v825, %v816
        %v833 = vadd.s32 %v828, %v830
        %vm834 = vc.u32 %v828, %v830
        %v835 = vadd.s32 %v831, 1
        %v836 = vsel %vm834, %v835, %v831
        %v837 = vadd.s32 %v832, %v836
        %v838 = vadd.s32 %v837, 536870912
        %v839 = vshrl.u32 %v838, 30
        %v840 = vshll.u32 %v839, 30
        %v841 = vsub.s32 %v837, %v840
        %vm842 = vcmp.lt.s32.totalorder %v841, 0
        %v843 = vsub.s32 0, %v841
        %v844 = vsel %vm842, %v843, %v841
        %v845 = vclz %v844
        %v846 = vsub.s32 %v845, 2
        %vm847 = vcmp.gt.s32.totalorder 0, %v846
        %v848 = vsel %vm847, 0, %v846
        %v849 = vsub.s32 32, %v848
        %v850 = vshll.u32 %v841, %v848
        %v851 = vshrl.u32 %v833, %v849
        %v852 = vor.u32 %v850, %v851
        %v853 = vsub.s32 4294967266, %v848
        %v854 = vadd.s32 %v853, 127
        %v855 = vshll.u32 %v854, 23
        %v856 = vor.u32 4788187, %v855
        %v857 = vand.u32 2147483647, %v856
        %v859 = vcvt.s32.f32 %v852
        %v860 = vmul.f32 %v859, %v857
        %v861 = vxor.u32 %v860, 2147483648
        %v862 = vsel %vm779, %v861, %v860
        %v863 = vsub.s32 4, %v839
        %v864 = vsel %vm779, %v863, %v839
        %v865 = vsel %vm778, %v243, %v862
        %v866 = vsel %vm778, 0, %v864
        %v867 = vcosq.f32.pop %v865
        %v868 = vsinq.f32.pop %v865
        %vm869 = vweird.f32 %v243
        %v870 = vadd.s32 %v866, 3
        %v871 = vand.u32 %v870, 3
        %vm872 = vcmp.lt.s32.totalorder %v871, 2
        %vm873 = vcmp.eq.s32.totalorder %v871, 0
        %v874 = vxor.u32 %v868, 2147483648
        %v875 = vsel %vm873, %v867, %v874
        %vm876 = vcmp.eq.s32.totalorder %v871, 2
        %v877 = vxor.u32 %v867, 2147483648
        %v878 = vsel %vm876, %v877, %v868
        %v879 = vsel %vm872, %v875, %v878
        %v880 = vsel %vm869, nan, %v879
        %v881 = vand.u32 2147483647, %v244
        %vm882 = vcmp.le.f32.partialorder %v881, 0.7853982
        %vm883 = vcmp.lt.s32.totalorder %v244, 0
        %v884 = vand.u32 %v244, 2139095040
        %v885 = vshrl.u32 %v884, 23
        %v886 = vsub.s32 %v885, 127
        %v887 = vand.u32 2147483647, %v244
        %v888 = vand.u32 %v887, 8388607
        %v889 = vor.u32 %v888, 8388608
        %v890 = vsub.s32 0, %v889
        %v891 = vadd.s32 %v886, 1
        %vm892 = vcmp.gt.s32.totalorder %v891, 0
        %v893 = vsel %vm892, %v891, 0
        %v894 = vshrl.u32 %v893, 5
        %v895 = vand.u32 %v893, 31
        %v896 = vsub.s32 32, %v895
        %v897 = vshrl.u32 683565275, %v896
        %v898 = vshll.u32 683565275, %v895
        %v899 = vshrl.u32 2475754826, %v896
        %v900 = vor.u32 %v898, %v899
        %v901 = vshll.u32 2475754826, %v895
        %v902 = vshrl.u32 2131351028, %v896
        %v903 = vor.u32 %v901, %v902
        %v904 = vshll.u32 2131351028, %v895
        %v905 = vshrl.u32 2102212464, %v896
        %v906 = vor.u32 %v904, %v905
        %v907 = vshll.u32 2102212464, %v895
        %v908 = vshrl.u32 920167782, %v896
        %v909 = vor.u32 %v907, %v908
        %v910 = vshll.u32 920167782, %v895
        %v911 = vshrl.u32 1326507024, %v896
        %v912 = vor.u32 %v910, %v911
        %vm913 = vcmp.lt.s32.totalorder %v894, 1
        %vm914 = vcmp.lt.s32.totalorder %v894, 2
        %vm915 = vcmp.lt.s32.totalorder %v894, 3
        %vm916 = vcmp.lt.s32.totalorder %v894, 4
        %v917 = vsel %vm913, %v897, %v900
        %v918 = vsel %vm916, %v906, 2102212464
        %v919 = vsel %vm915, %v903, %v918
        %v920 = vsel %vm914, %v917, %v919
        %v921 = vsel %vm913, %v900, %v903
        %v922 = vsel %vm916, %v909, 920167782
        %v923 = vsel %vm915, %v906, %v922
        %v924 = vsel %vm914, %v921, %v923
        %v925 = vsel %vm913, %v903, %v906
        %v926 = vsel %vm916, %v912, 1326507024
        %v927 = vsel %vm915, %v909, %v926
        %v928 = vsel %vm914, %v925, %v927
        %v929 = vshll.u32 %v889, 8
        %v930 = vmul.u32.u64.compose %v929, %v928
        %v931 = vextract.low.u32 %v930
        %v932 = vextract.high.u32 %v930
        %v933 = vmul.u32.u64.compose %v929, %v924
        %v934 = vextract.low.u32 %v933
        %v935 = vextract.high.u32 %v933
        %v936 = vmul.u32 %v929, %v920
        %v937 = vadd.s32 %v932, %v934
        %vm938 = vc.u32 %v932, %v934
        %v939 = vadd.s32 %v935, 1
        %v940 = vsel %vm938, %v939, %v935
        %v941 = vadd.s32 %v936, %v940
        %v942 = vadd.s32 %v941, 536870912
        %v943 = vshrl.u32 %v942, 30
        %v944 = vshll.u32 %v943, 30
        %v945 = vsub.s32 %v941, %v944
        %vm946 = vcmp.lt.s32.totalorder %v945, 0
        %v947 = vsub.s32 0, %v945
        %v948 = vsel %vm946, %v947, %v945
        %v949 = vclz %v948
        %v950 = vsub.s32 %v949, 2
        %vm951 = vcmp.gt.s32.totalorder 0, %v950
        %v952 = vsel %vm951, 0, %v950
        %v953 = vsub.s32 32, %v952
        %v954 = vshll.u32 %v945, %v952
        %v955 = vshrl.u32 %v937, %v953
        %v956 = vor.u32 %v954, %v955
        %v957 = vsub.s32 4294967266, %v952
        %v958 = vadd.s32 %v957, 127
        %v959 = vshll.u32 %v958, 23
        %v960 = vor.u32 4788187, %v959
        %v961 = vand.u32 2147483647, %v960
        %v963 = vcvt.s32.f32 %v956
        %v964 = vmul.f32 %v963, %v961
        %v965 = vxor.u32 %v964, 2147483648
        %v966 = vsel %vm883, %v965, %v964
        %v967 = vsub.s32 4, %v943
        %v968 = vsel %vm883, %v967, %v943
        %v969 = vsel %vm882, %v244, %v966
        %v970 = vsel %vm882, 0, %v968
        %v971 = vcosq.f32.pop %v969
        %v972 = vsinq.f32.pop %v969
        %vm973 = vweird.f32 %v244
        %v974 = vadd.s32 %v970, 3
        %v975 = vand.u32 %v974, 3
        %vm976 = vcmp.lt.s32.totalorder %v975, 2
        %vm977 = vcmp.eq.s32.totalorder %v975, 0
        %v978 = vxor.u32 %v972, 2147483648
        %v979 = vsel %vm977, %v971, %v978
        %vm980 = vcmp.eq.s32.totalorder %v975, 2
        %v981 = vxor.u32 %v971, 2147483648
        %v982 = vsel %vm980, %v981, %v972
        %v983 = vsel %vm976, %v979, %v982
        %v984 = vsel %vm973, nan, %v983
        %v985 = vand.u32 2147483647, %v245
        %vm986 = vcmp.le.f32.partialorder %v985, 0.7853982
        %vm987 = vcmp.lt.s32.totalorder %v245, 0
        %v988 = vand.u32 %v245, 2139095040
        %v989 = vshrl.u32 %v988, 23
        %v990 = vsub.s32 %v989, 127
        %v991 = vand.u32 2147483647, %v245
        %v992 = vand.u32 %v991, 8388607
        %v993 = vor.u32 %v992, 8388608
        %v994 = vsub.s32 0, %v993
        %v995 = vadd.s32 %v990, 1
        %vm996 = vcmp.gt.s32.totalorder %v995, 0
        %v997 = vsel %vm996, %v995, 0
        %v998 = vshrl.u32 %v997, 5
        %v999 = vand.u32 %v997, 31
        %v1000 = vsub.s32 32, %v999
        %v1001 = vshrl.u32 683565275, %v1000
        %v1002 = vshll.u32 683565275, %v999
        %v1003 = vshrl.u32 2475754826, %v1000
        %v1004 = vor.u32 %v1002, %v1003
        %v1005 = vshll.u32 2475754826, %v999
        %v1006 = vshrl.u32 2131351028, %v1000
        %v1007 = vor.u32 %v1005, %v1006
        %v1008 = vshll.u32 2131351028, %v999
        %v1009 = vshrl.u32 2102212464, %v1000
        %v1010 = vor.u32 %v1008, %v1009
        %v1011 = vshll.u32 2102212464, %v999
        %v1012 = vshrl.u32 920167782, %v1000
        %v1013 = vor.u32 %v1011, %v1012
        %v1014 = vshll.u32 920167782, %v999
        %v1015 = vshrl.u32 1326507024, %v1000
        %v1016 = vor.u32 %v1014, %v1015
        %vm1017 = vcmp.lt.s32.totalorder %v998, 1
        %vm1018 = vcmp.lt.s32.totalorder %v998, 2
        %vm1019 = vcmp.lt.s32.totalorder %v998, 3
        %vm1020 = vcmp.lt.s32.totalorder %v998, 4
        %v1021 = vsel %vm1017, %v1001, %v1004
        %v1022 = vsel %vm1020, %v1010, 2102212464
        %v1023 = vsel %vm1019, %v1007, %v1022
        %v1024 = vsel %vm1018, %v1021, %v1023
        %v1025 = vsel %vm1017, %v1004, %v1007
        %v1026 = vsel %vm1020, %v1013, 920167782
        %v1027 = vsel %vm1019, %v1010, %v1026
        %v1028 = vsel %vm1018, %v1025, %v1027
        %v1029 = vsel %vm1017, %v1007, %v1010
        %v1030 = vsel %vm1020, %v1016, 1326507024
        %v1031 = vsel %vm1019, %v1013, %v1030
        %v1032 = vsel %vm1018, %v1029, %v1031
        %v1033 = vshll.u32 %v993, 8
        %v1034 = vmul.u32.u64.compose %v1033, %v1032
        %v1035 = vextract.low.u32 %v1034
        %v1036 = vextract.high.u32 %v1034
        %v1037 = vmul.u32.u64.compose %v1033, %v1028
        %v1038 = vextract.low.u32 %v1037
        %v1039 = vextract.high.u32 %v1037
        %v1040 = vmul.u32 %v1033, %v1024
        %v1041 = vadd.s32 %v1036, %v1038
        %vm1042 = vc.u32 %v1036, %v1038
        %v1043 = vadd.s32 %v1039, 1
        %v1044 = vsel %vm1042, %v1043, %v1039
        %v1045 = vadd.s32 %v1040, %v1044
        %v1046 = vadd.s32 %v1045, 536870912
        %v1047 = vshrl.u32 %v1046, 30
        %v1048 = vshll.u32 %v1047, 30
        %v1049 = vsub.s32 %v1045, %v1048
        %vm1050 = vcmp.lt.s32.totalorder %v1049, 0
        %v1051 = vsub.s32 0, %v1049
        %v1052 = vsel %vm1050, %v1051, %v1049
        %v1053 = vclz %v1052
        %v1054 = vsub.s32 %v1053, 2
        %vm1055 = vcmp.gt.s32.totalorder 0, %v1054
        %v1056 = vsel %vm1055, 0, %v1054
        %v1057 = vsub.s32 32, %v1056
        %v1058 = vshll.u32 %v1049, %v1056
        %v1059 = vshrl.u32 %v1041, %v1057
        %v1060 = vor.u32 %v1058, %v1059
        %v1061 = vsub.s32 4294967266, %v1056
        %v1062 = vadd.s32 %v1061, 127
        %v1063 = vshll.u32 %v1062, 23
        %v1064 = vor.u32 4788187, %v1063
        %v1065 = vand.u32 2147483647, %v1064
        %v1067 = vcvt.s32.f32 %v1060
        %v1068 = vmul.f32 %v1067, %v1065
        %v1069 = vxor.u32 %v1068, 2147483648
        %v1070 = vsel %vm987, %v1069, %v1068
        %v1071 = vsub.s32 4, %v1047
        %v1072 = vsel %vm987, %v1071, %v1047
        %v1073 = vsel %vm986, %v245, %v1070
        %v1074 = vsel %vm986, 0, %v1072
        %v1075 = vcosq.f32.pop %v1073
        %v1076 = vsinq.f32.pop %v1073
        %vm1077 = vweird.f32 %v245
        %v1078 = vadd.s32 %v1074, 3
        %v1079 = vand.u32 %v1078, 3
        %vm1080 = vcmp.lt.s32.totalorder %v1079, 2
        %vm1081 = vcmp.eq.s32.totalorder %v1079, 0
        %v1082 = vxor.u32 %v1076, 2147483648
        %v1083 = vsel %vm1081, %v1075, %v1082
        %vm1084 = vcmp.eq.s32.totalorder %v1079, 2
        %v1085 = vxor.u32 %v1075, 2147483648
        %v1086 = vsel %vm1084, %v1085, %v1076
        %v1087 = vsel %vm1080, %v1083, %v1086
        %v1088 = vsel %vm1077, nan, %v1087
        %v1089 = vand.u32 2147483647, %v246
        %vm1090 = vcmp.le.f32.partialorder %v1089, 0.7853982
        %vm1091 = vcmp.lt.s32.totalorder %v246, 0
        %v1092 = vand.u32 %v246, 2139095040
        %v1093 = vshrl.u32 %v1092, 23
        %v1094 = vsub.s32 %v1093, 127
        %v1095 = vand.u32 2147483647, %v246
        %v1096 = vand.u32 %v1095, 8388607
        %v1097 = vor.u32 %v1096, 8388608
        %v1098 = vsub.s32 0, %v1097
        %v1099 = vadd.s32 %v1094, 1
        %vm1100 = vcmp.gt.s32.totalorder %v1099, 0
        %v1101 = vsel %vm1100, %v1099, 0
        %v1102 = vshrl.u32 %v1101, 5
        %v1103 = vand.u32 %v1101, 31
        %v1104 = vsub.s32 32, %v1103
        %v1105 = vshrl.u32 683565275, %v1104
        %v1106 = vshll.u32 683565275, %v1103
        %v1107 = vshrl.u32 2475754826, %v1104
        %v1108 = vor.u32 %v1106, %v1107
        %v1109 = vshll.u32 2475754826, %v1103
        %v1110 = vshrl.u32 2131351028, %v1104
        %v1111 = vor.u32 %v1109, %v1110
        %v1112 = vshll.u32 2131351028, %v1103
        %v1113 = vshrl.u32 2102212464, %v1104
        %v1114 = vor.u32 %v1112, %v1113
        %v1115 = vshll.u32 2102212464, %v1103
        %v1116 = vshrl.u32 920167782, %v1104
        %v1117 = vor.u32 %v1115, %v1116
        %v1118 = vshll.u32 920167782, %v1103
        %v1119 = vshrl.u32 1326507024, %v1104
        %v1120 = vor.u32 %v1118, %v1119
        %vm1121 = vcmp.lt.s32.totalorder %v1102, 1
        %vm1122 = vcmp.lt.s32.totalorder %v1102, 2
        %vm1123 = vcmp.lt.s32.totalorder %v1102, 3
        %vm1124 = vcmp.lt.s32.totalorder %v1102, 4
        %v1125 = vsel %vm1121, %v1105, %v1108
        %v1126 = vsel %vm1124, %v1114, 2102212464
        %v1127 = vsel %vm1123, %v1111, %v1126
        %v1128 = vsel %vm1122, %v1125, %v1127
        %v1129 = vsel %vm1121, %v1108, %v1111
        %v1130 = vsel %vm1124, %v1117, 920167782
        %v1131 = vsel %vm1123, %v1114, %v1130
        %v1132 = vsel %vm1122, %v1129, %v1131
        %v1133 = vsel %vm1121, %v1111, %v1114
        %v1134 = vsel %vm1124, %v1120, 1326507024
        %v1135 = vsel %vm1123, %v1117, %v1134
        %v1136 = vsel %vm1122, %v1133, %v1135
        %v1137 = vshll.u32 %v1097, 8
        %v1138 = vmul.u32.u64.compose %v1137, %v1136
        %v1139 = vextract.low.u32 %v1138
        %v1140 = vextract.high.u32 %v1138
        %v1141 = vmul.u32.u64.compose %v1137, %v1132
        %v1142 = vextract.low.u32 %v1141
        %v1143 = vextract.high.u32 %v1141
        %v1144 = vmul.u32 %v1137, %v1128
        %v1145 = vadd.s32 %v1140, %v1142
        %vm1146 = vc.u32 %v1140, %v1142
        %v1147 = vadd.s32 %v1143, 1
        %v1148 = vsel %vm1146, %v1147, %v1143
        %v1149 = vadd.s32 %v1144, %v1148
        %v1150 = vadd.s32 %v1149, 536870912
        %v1151 = vshrl.u32 %v1150, 30
        %v1152 = vshll.u32 %v1151, 30
        %v1153 = vsub.s32 %v1149, %v1152
        %vm1154 = vcmp.lt.s32.totalorder %v1153, 0
        %v1155 = vsub.s32 0, %v1153
        %v1156 = vsel %vm1154, %v1155, %v1153
        %v1157 = vclz %v1156
        %v1158 = vsub.s32 %v1157, 2
        %vm1159 = vcmp.gt.s32.totalorder 0, %v1158
        %v1160 = vsel %vm1159, 0, %v1158
        %v1161 = vsub.s32 32, %v1160
        %v1162 = vshll.u32 %v1153, %v1160
        %v1163 = vshrl.u32 %v1145, %v1161
        %v1164 = vor.u32 %v1162, %v1163
        %v1165 = vsub.s32 4294967266, %v1160
        %v1166 = vadd.s32 %v1165, 127
        %v1167 = vshll.u32 %v1166, 23
        %v1168 = vor.u32 4788187, %v1167
        %v1169 = vand.u32 2147483647, %v1168
        %v1171 = vcvt.s32.f32 %v1164
        %v1172 = vmul.f32 %v1171, %v1169
        %v1173 = vxor.u32 %v1172, 2147483648
        %v1174 = vsel %vm1091, %v1173, %v1172
        %v1175 = vsub.s32 4, %v1151
        %v1176 = vsel %vm1091, %v1175, %v1151
        %v1177 = vsel %vm1090, %v246, %v1174
        %v1178 = vsel %vm1090, 0, %v1176
        %v1179 = vcosq.f32.pop %v1177
        %v1180 = vsinq.f32.pop %v1177
        %vm1181 = vweird.f32 %v246
        %v1182 = vadd.s32 %v1178, 3
        %v1183 = vand.u32 %v1182, 3
        %vm1184 = vcmp.lt.s32.totalorder %v1183, 2
        %vm1185 = vcmp.eq.s32.totalorder %v1183, 0
        %v1186 = vxor.u32 %v1180, 2147483648
        %v1187 = vsel %vm1185, %v1179, %v1186
        %vm1188 = vcmp.eq.s32.totalorder %v1183, 2
        %v1189 = vxor.u32 %v1179, 2147483648
        %v1190 = vsel %vm1188, %v1189, %v1180
        %v1191 = vsel %vm1184, %v1187, %v1190
        %v1192 = vsel %vm1181, nan, %v1191
        %v1193 = vand.u32 2147483647, %v247
        %vm1194 = vcmp.le.f32.partialorder %v1193, 0.7853982
        %vm1195 = vcmp.lt.s32.totalorder %v247, 0
        %v1196 = vand.u32 %v247, 2139095040
        %v1197 = vshrl.u32 %v1196, 23
        %v1198 = vsub.s32 %v1197, 127
        %v1199 = vand.u32 2147483647, %v247
        %v1200 = vand.u32 %v1199, 8388607
        %v1201 = vor.u32 %v1200, 8388608
        %v1202 = vsub.s32 0, %v1201
        %v1203 = vadd.s32 %v1198, 1
        %vm1204 = vcmp.gt.s32.totalorder %v1203, 0
        %v1205 = vsel %vm1204, %v1203, 0
        %v1206 = vshrl.u32 %v1205, 5
        %v1207 = vand.u32 %v1205, 31
        %v1208 = vsub.s32 32, %v1207
        %v1209 = vshrl.u32 683565275, %v1208
        %v1210 = vshll.u32 683565275, %v1207
        %v1211 = vshrl.u32 2475754826, %v1208
        %v1212 = vor.u32 %v1210, %v1211
        %v1213 = vshll.u32 2475754826, %v1207
        %v1214 = vshrl.u32 2131351028, %v1208
        %v1215 = vor.u32 %v1213, %v1214
        %v1216 = vshll.u32 2131351028, %v1207
        %v1217 = vshrl.u32 2102212464, %v1208
        %v1218 = vor.u32 %v1216, %v1217
        %v1219 = vshll.u32 2102212464, %v1207
        %v1220 = vshrl.u32 920167782, %v1208
        %v1221 = vor.u32 %v1219, %v1220
        %v1222 = vshll.u32 920167782, %v1207
        %v1223 = vshrl.u32 1326507024, %v1208
        %v1224 = vor.u32 %v1222, %v1223
        %vm1225 = vcmp.lt.s32.totalorder %v1206, 1
        %vm1226 = vcmp.lt.s32.totalorder %v1206, 2
        %vm1227 = vcmp.lt.s32.totalorder %v1206, 3
        %vm1228 = vcmp.lt.s32.totalorder %v1206, 4
        %v1229 = vsel %vm1225, %v1209, %v1212
        %v1230 = vsel %vm1228, %v1218, 2102212464
        %v1231 = vsel %vm1227, %v1215, %v1230
        %v1232 = vsel %vm1226, %v1229, %v1231
        %v1233 = vsel %vm1225, %v1212, %v1215
        %v1234 = vsel %vm1228, %v1221, 920167782
        %v1235 = vsel %vm1227, %v1218, %v1234
        %v1236 = vsel %vm1226, %v1233, %v1235
        %v1237 = vsel %vm1225, %v1215, %v1218
        %v1238 = vsel %vm1228, %v1224, 1326507024
        %v1239 = vsel %vm1227, %v1221, %v1238
        %v1240 = vsel %vm1226, %v1237, %v1239
        %v1241 = vshll.u32 %v1201, 8
        %v1242 = vmul.u32.u64.compose %v1241, %v1240
        %v1243 = vextract.low.u32 %v1242
        %v1244 = vextract.high.u32 %v1242
        %v1245 = vmul.u32.u64.compose %v1241, %v1236
        %v1246 = vextract.low.u32 %v1245
        %v1247 = vextract.high.u32 %v1245
        %v1248 = vmul.u32 %v1241, %v1232
        %v1249 = vadd.s32 %v1244, %v1246
        %vm1250 = vc.u32 %v1244, %v1246
        %v1251 = vadd.s32 %v1247, 1
        %v1252 = vsel %vm1250, %v1251, %v1247
        %v1253 = vadd.s32 %v1248, %v1252
        %v1254 = vadd.s32 %v1253, 536870912
        %v1255 = vshrl.u32 %v1254, 30
        %v1256 = vshll.u32 %v1255, 30
        %v1257 = vsub.s32 %v1253, %v1256
        %vm1258 = vcmp.lt.s32.totalorder %v1257, 0
        %v1259 = vsub.s32 0, %v1257
        %v1260 = vsel %vm1258, %v1259, %v1257
        %v1261 = vclz %v1260
        %v1262 = vsub.s32 %v1261, 2
        %vm1263 = vcmp.gt.s32.totalorder 0, %v1262
        %v1264 = vsel %vm1263, 0, %v1262
        %v1265 = vsub.s32 32, %v1264
        %v1266 = vshll.u32 %v1257, %v1264
        %v1267 = vshrl.u32 %v1249, %v1265
        %v1268 = vor.u32 %v1266, %v1267
        %v1269 = vsub.s32 4294967266, %v1264
        %v1270 = vadd.s32 %v1269, 127
        %v1271 = vshll.u32 %v1270, 23
        %v1272 = vor.u32 4788187, %v1271
        %v1273 = vand.u32 2147483647, %v1272
        %v1275 = vcvt.s32.f32 %v1268
        %v1276 = vmul.f32 %v1275, %v1273
        %v1277 = vxor.u32 %v1276, 2147483648
        %v1278 = vsel %vm1195, %v1277, %v1276
        %v1279 = vsub.s32 4, %v1255
        %v1280 = vsel %vm1195, %v1279, %v1255
        %v1281 = vsel %vm1194, %v247, %v1278
        %v1282 = vsel %vm1194, 0, %v1280
        %v1283 = vcosq.f32.pop %v1281
        %v1284 = vsinq.f32.pop %v1281
        %vm1285 = vweird.f32 %v247
        %v1286 = vadd.s32 %v1282, 3
        %v1287 = vand.u32 %v1286, 3
        %vm1288 = vcmp.lt.s32.totalorder %v1287, 2
        %vm1289 = vcmp.eq.s32.totalorder %v1287, 0
        %v1290 = vxor.u32 %v1284, 2147483648
        %v1291 = vsel %vm1289, %v1283, %v1290
        %vm1292 = vcmp.eq.s32.totalorder %v1287, 2
        %v1293 = vxor.u32 %v1283, 2147483648
        %v1294 = vsel %vm1292, %v1293, %v1284
        %v1295 = vsel %vm1288, %v1291, %v1294
        %v1296 = vsel %vm1285, nan, %v1295
        %v1297 = vand.u32 2147483647, %v248
        %vm1298 = vcmp.le.f32.partialorder %v1297, 0.7853982
        %vm1299 = vcmp.lt.s32.totalorder %v248, 0
        %v1300 = vand.u32 %v248, 2139095040
        %v1301 = vshrl.u32 %v1300, 23
        %v1302 = vsub.s32 %v1301, 127
        %v1303 = vand.u32 2147483647, %v248
        %v1304 = vand.u32 %v1303, 8388607
        %v1305 = vor.u32 %v1304, 8388608
        %v1306 = vsub.s32 0, %v1305
        %v1307 = vadd.s32 %v1302, 1
        %vm1308 = vcmp.gt.s32.totalorder %v1307, 0
        %v1309 = vsel %vm1308, %v1307, 0
        %v1310 = vshrl.u32 %v1309, 5
        %v1311 = vand.u32 %v1309, 31
        %v1312 = vsub.s32 32, %v1311
        %v1313 = vshrl.u32 683565275, %v1312
        %v1314 = vshll.u32 683565275, %v1311
        %v1315 = vshrl.u32 2475754826, %v1312
        %v1316 = vor.u32 %v1314, %v1315
        %v1317 = vshll.u32 2475754826, %v1311
        %v1318 = vshrl.u32 2131351028, %v1312
        %v1319 = vor.u32 %v1317, %v1318
        %v1320 = vshll.u32 2131351028, %v1311
        %v1321 = vshrl.u32 2102212464, %v1312
        %v1322 = vor.u32 %v1320, %v1321
        %v1323 = vshll.u32 2102212464, %v1311
        %v1324 = vshrl.u32 920167782, %v1312
        %v1325 = vor.u32 %v1323, %v1324
        %v1326 = vshll.u32 920167782, %v1311
        %v1327 = vshrl.u32 1326507024, %v1312
        %v1328 = vor.u32 %v1326, %v1327
        %vm1329 = vcmp.lt.s32.totalorder %v1310, 1
        %vm1330 = vcmp.lt.s32.totalorder %v1310, 2
        %vm1331 = vcmp.lt.s32.totalorder %v1310, 3
        %vm1332 = vcmp.lt.s32.totalorder %v1310, 4
        %v1333 = vsel %vm1329, %v1313, %v1316
        %v1334 = vsel %vm1332, %v1322, 2102212464
        %v1335 = vsel %vm1331, %v1319, %v1334
        %v1336 = vsel %vm1330, %v1333, %v1335
        %v1337 = vsel %vm1329, %v1316, %v1319
        %v1338 = vsel %vm1332, %v1325, 920167782
        %v1339 = vsel %vm1331, %v1322, %v1338
        %v1340 = vsel %vm1330, %v1337, %v1339
        %v1341 = vsel %vm1329, %v1319, %v1322
        %v1342 = vsel %vm1332, %v1328, 1326507024
        %v1343 = vsel %vm1331, %v1325, %v1342
        %v1344 = vsel %vm1330, %v1341, %v1343
        %v1345 = vshll.u32 %v1305, 8
        %v1346 = vmul.u32.u64.compose %v1345, %v1344
        %v1347 = vextract.low.u32 %v1346
        %v1348 = vextract.high.u32 %v1346
        %v1349 = vmul.u32.u64.compose %v1345, %v1340
        %v1350 = vextract.low.u32 %v1349
        %v1351 = vextract.high.u32 %v1349
        %v1352 = vmul.u32 %v1345, %v1336
        %v1353 = vadd.s32 %v1348, %v1350
        %vm1354 = vc.u32 %v1348, %v1350
        %v1355 = vadd.s32 %v1351, 1
        %v1356 = vsel %vm1354, %v1355, %v1351
        %v1357 = vadd.s32 %v1352, %v1356
        %v1358 = vadd.s32 %v1357, 536870912
        %v1359 = vshrl.u32 %v1358, 30
        %v1360 = vshll.u32 %v1359, 30
        %v1361 = vsub.s32 %v1357, %v1360
        %vm1362 = vcmp.lt.s32.totalorder %v1361, 0
        %v1363 = vsub.s32 0, %v1361
        %v1364 = vsel %vm1362, %v1363, %v1361
        %v1365 = vclz %v1364
        %v1366 = vsub.s32 %v1365, 2
        %vm1367 = vcmp.gt.s32.totalorder 0, %v1366
        %v1368 = vsel %vm1367, 0, %v1366
        %v1369 = vsub.s32 32, %v1368
        %v1370 = vshll.u32 %v1361, %v1368
        %v1371 = vshrl.u32 %v1353, %v1369
        %v1372 = vor.u32 %v1370, %v1371
        %v1373 = vsub.s32 4294967266, %v1368
        %v1374 = vadd.s32 %v1373, 127
        %v1375 = vshll.u32 %v1374, 23
        %v1376 = vor.u32 4788187, %v1375
        %v1377 = vand.u32 2147483647, %v1376
        %v1379 = vcvt.s32.f32 %v1372
        %v1380 = vmul.f32 %v1379, %v1377
        %v1381 = vxor.u32 %v1380, 2147483648
        %v1382 = vsel %vm1299, %v1381, %v1380
        %v1383 = vsub.s32 4, %v1359
        %v1384 = vsel %vm1299, %v1383, %v1359
        %v1385 = vsel %vm1298, %v248, %v1382
        %v1386 = vsel %vm1298, 0, %v1384
        %v1387 = vcosq.f32.pop %v1385
        %v1388 = vsinq.f32.pop %v1385
        %vm1389 = vweird.f32 %v248
        %v1390 = vadd.s32 %v1386, 3
        %v1391 = vand.u32 %v1390, 3
        %vm1392 = vcmp.lt.s32.totalorder %v1391, 2
        %vm1393 = vcmp.eq.s32.totalorder %v1391, 0
        %v1394 = vxor.u32 %v1388, 2147483648
        %v1395 = vsel %vm1393, %v1387, %v1394
        %vm1396 = vcmp.eq.s32.totalorder %v1391, 2
        %v1397 = vxor.u32 %v1387, 2147483648
        %v1398 = vsel %vm1396, %v1397, %v1388
        %v1399 = vsel %vm1392, %v1395, %v1398
        %v1400 = vsel %vm1389, nan, %v1399
        %v1401 = vand.u32 2147483647, %v249
        %vm1402 = vcmp.le.f32.partialorder %v1401, 0.7853982
        %vm1403 = vcmp.lt.s32.totalorder %v249, 0
        %v1404 = vand.u32 %v249, 2139095040
        %v1405 = vshrl.u32 %v1404, 23
        %v1406 = vsub.s32 %v1405, 127
        %v1407 = vand.u32 2147483647, %v249
        %v1408 = vand.u32 %v1407, 8388607
        %v1409 = vor.u32 %v1408, 8388608
        %v1410 = vsub.s32 0, %v1409
        %v1411 = vadd.s32 %v1406, 1
        %vm1412 = vcmp.gt.s32.totalorder %v1411, 0
        %v1413 = vsel %vm1412, %v1411, 0
        %v1414 = vshrl.u32 %v1413, 5
        %v1415 = vand.u32 %v1413, 31
        %v1416 = vsub.s32 32, %v1415
        %v1417 = vshrl.u32 683565275, %v1416
        %v1418 = vshll.u32 683565275, %v1415
        %v1419 = vshrl.u32 2475754826, %v1416
        %v1420 = vor.u32 %v1418, %v1419
        %v1421 = vshll.u32 2475754826, %v1415
        %v1422 = vshrl.u32 2131351028, %v1416
        %v1423 = vor.u32 %v1421, %v1422
        %v1424 = vshll.u32 2131351028, %v1415
        %v1425 = vshrl.u32 2102212464, %v1416
        %v1426 = vor.u32 %v1424, %v1425
        %v1427 = vshll.u32 2102212464, %v1415
        %v1428 = vshrl.u32 920167782, %v1416
        %v1429 = vor.u32 %v1427, %v1428
        %v1430 = vshll.u32 920167782, %v1415
        %v1431 = vshrl.u32 1326507024, %v1416
        %v1432 = vor.u32 %v1430, %v1431
        %vm1433 = vcmp.lt.s32.totalorder %v1414, 1
        %vm1434 = vcmp.lt.s32.totalorder %v1414, 2
        %vm1435 = vcmp.lt.s32.totalorder %v1414, 3
        %vm1436 = vcmp.lt.s32.totalorder %v1414, 4
        %v1437 = vsel %vm1433, %v1417, %v1420
        %v1438 = vsel %vm1436, %v1426, 2102212464
        %v1439 = vsel %vm1435, %v1423, %v1438
        %v1440 = vsel %vm1434, %v1437, %v1439
        %v1441 = vsel %vm1433, %v1420, %v1423
        %v1442 = vsel %vm1436, %v1429, 920167782
        %v1443 = vsel %vm1435, %v1426, %v1442
        %v1444 = vsel %vm1434, %v1441, %v1443
        %v1445 = vsel %vm1433, %v1423, %v1426
        %v1446 = vsel %vm1436, %v1432, 1326507024
        %v1447 = vsel %vm1435, %v1429, %v1446
        %v1448 = vsel %vm1434, %v1445, %v1447
        %v1449 = vshll.u32 %v1409, 8
        %v1450 = vmul.u32.u64.compose %v1449, %v1448
        %v1451 = vextract.low.u32 %v1450
        %v1452 = vextract.high.u32 %v1450
        %v1453 = vmul.u32.u64.compose %v1449, %v1444
        %v1454 = vextract.low.u32 %v1453
        %v1455 = vextract.high.u32 %v1453
        %v1456 = vmul.u32 %v1449, %v1440
        %v1457 = vadd.s32 %v1452, %v1454
        %vm1458 = vc.u32 %v1452, %v1454
        %v1459 = vadd.s32 %v1455, 1
        %v1460 = vsel %vm1458, %v1459, %v1455
        %v1461 = vadd.s32 %v1456, %v1460
        %v1462 = vadd.s32 %v1461, 536870912
        %v1463 = vshrl.u32 %v1462, 30
        %v1464 = vshll.u32 %v1463, 30
        %v1465 = vsub.s32 %v1461, %v1464
        %vm1466 = vcmp.lt.s32.totalorder %v1465, 0
        %v1467 = vsub.s32 0, %v1465
        %v1468 = vsel %vm1466, %v1467, %v1465
        %v1469 = vclz %v1468
        %v1470 = vsub.s32 %v1469, 2
        %vm1471 = vcmp.gt.s32.totalorder 0, %v1470
        %v1472 = vsel %vm1471, 0, %v1470
        %v1473 = vsub.s32 32, %v1472
        %v1474 = vshll.u32 %v1465, %v1472
        %v1475 = vshrl.u32 %v1457, %v1473
        %v1476 = vor.u32 %v1474, %v1475
        %v1477 = vsub.s32 4294967266, %v1472
        %v1478 = vadd.s32 %v1477, 127
        %v1479 = vshll.u32 %v1478, 23
        %v1480 = vor.u32 4788187, %v1479
        %v1481 = vand.u32 2147483647, %v1480
        %v1483 = vcvt.s32.f32 %v1476
        %v1484 = vmul.f32 %v1483, %v1481
        %v1485 = vxor.u32 %v1484, 2147483648
        %v1486 = vsel %vm1403, %v1485, %v1484
        %v1487 = vsub.s32 4, %v1463
        %v1488 = vsel %vm1403, %v1487, %v1463
        %v1489 = vsel %vm1402, %v249, %v1486
        %v1490 = vsel %vm1402, 0, %v1488
        %v1491 = vcosq.f32.pop %v1489
        %v1492 = vsinq.f32.pop %v1489
        %vm1493 = vweird.f32 %v249
        %v1494 = vadd.s32 %v1490, 3
        %v1495 = vand.u32 %v1494, 3
        %vm1496 = vcmp.lt.s32.totalorder %v1495, 2
        %vm1497 = vcmp.eq.s32.totalorder %v1495, 0
        %v1498 = vxor.u32 %v1492, 2147483648
        %v1499 = vsel %vm1497, %v1491, %v1498
        %vm1500 = vcmp.eq.s32.totalorder %v1495, 2
        %v1501 = vxor.u32 %v1491, 2147483648
        %v1502 = vsel %vm1500, %v1501, %v1492
        %v1503 = vsel %vm1496, %v1499, %v1502
        %v1504 = vsel %vm1493, nan, %v1503
        %v1505 = vand.u32 2147483647, %v250
        %vm1506 = vcmp.le.f32.partialorder %v1505, 0.7853982
        %vm1507 = vcmp.lt.s32.totalorder %v250, 0
        %v1508 = vand.u32 %v250, 2139095040
        %v1509 = vshrl.u32 %v1508, 23
        %v1510 = vsub.s32 %v1509, 127
        %v1511 = vand.u32 2147483647, %v250
        %v1512 = vand.u32 %v1511, 8388607
        %v1513 = vor.u32 %v1512, 8388608
        %v1514 = vsub.s32 0, %v1513
        %v1515 = vadd.s32 %v1510, 1
        %vm1516 = vcmp.gt.s32.totalorder %v1515, 0
        %v1517 = vsel %vm1516, %v1515, 0
        %v1518 = vshrl.u32 %v1517, 5
        %v1519 = vand.u32 %v1517, 31
        %v1520 = vsub.s32 32, %v1519
        %v1521 = vshrl.u32 683565275, %v1520
        %v1522 = vshll.u32 683565275, %v1519
        %v1523 = vshrl.u32 2475754826, %v1520
        %v1524 = vor.u32 %v1522, %v1523
        %v1525 = vshll.u32 2475754826, %v1519
        %v1526 = vshrl.u32 2131351028, %v1520
        %v1527 = vor.u32 %v1525, %v1526
        %v1528 = vshll.u32 2131351028, %v1519
        %v1529 = vshrl.u32 2102212464, %v1520
        %v1530 = vor.u32 %v1528, %v1529
        %v1531 = vshll.u32 2102212464, %v1519
        %v1532 = vshrl.u32 920167782, %v1520
        %v1533 = vor.u32 %v1531, %v1532
        %v1534 = vshll.u32 920167782, %v1519
        %v1535 = vshrl.u32 1326507024, %v1520
        %v1536 = vor.u32 %v1534, %v1535
        %vm1537 = vcmp.lt.s32.totalorder %v1518, 1
        %vm1538 = vcmp.lt.s32.totalorder %v1518, 2
        %vm1539 = vcmp.lt.s32.totalorder %v1518, 3
        %vm1540 = vcmp.lt.s32.totalorder %v1518, 4
        %v1541 = vsel %vm1537, %v1521, %v1524
        %v1542 = vsel %vm1540, %v1530, 2102212464
        %v1543 = vsel %vm1539, %v1527, %v1542
        %v1544 = vsel %vm1538, %v1541, %v1543
        %v1545 = vsel %vm1537, %v1524, %v1527
        %v1546 = vsel %vm1540, %v1533, 920167782
        %v1547 = vsel %vm1539, %v1530, %v1546
        %v1548 = vsel %vm1538, %v1545, %v1547
        %v1549 = vsel %vm1537, %v1527, %v1530
        %v1550 = vsel %vm1540, %v1536, 1326507024
        %v1551 = vsel %vm1539, %v1533, %v1550
        %v1552 = vsel %vm1538, %v1549, %v1551
        %v1553 = vshll.u32 %v1513, 8
        %v1554 = vmul.u32.u64.compose %v1553, %v1552
        %v1555 = vextract.low.u32 %v1554
        %v1556 = vextract.high.u32 %v1554
        %v1557 = vmul.u32.u64.compose %v1553, %v1548
        %v1558 = vextract.low.u32 %v1557
        %v1559 = vextract.high.u32 %v1557
        %v1560 = vmul.u32 %v1553, %v1544
        %v1561 = vadd.s32 %v1556, %v1558
        %vm1562 = vc.u32 %v1556, %v1558
        %v1563 = vadd.s32 %v1559, 1
        %v1564 = vsel %vm1562, %v1563, %v1559
        %v1565 = vadd.s32 %v1560, %v1564
        %v1566 = vadd.s32 %v1565, 536870912
        %v1567 = vshrl.u32 %v1566, 30
        %v1568 = vshll.u32 %v1567, 30
        %v1569 = vsub.s32 %v1565, %v1568
        %vm1570 = vcmp.lt.s32.totalorder %v1569, 0
        %v1571 = vsub.s32 0, %v1569
        %v1572 = vsel %vm1570, %v1571, %v1569
        %v1573 = vclz %v1572
        %v1574 = vsub.s32 %v1573, 2
        %vm1575 = vcmp.gt.s32.totalorder 0, %v1574
        %v1576 = vsel %vm1575, 0, %v1574
        %v1577 = vsub.s32 32, %v1576
        %v1578 = vshll.u32 %v1569, %v1576
        %v1579 = vshrl.u32 %v1561, %v1577
        %v1580 = vor.u32 %v1578, %v1579
        %v1581 = vsub.s32 4294967266, %v1576
        %v1582 = vadd.s32 %v1581, 127
        %v1583 = vshll.u32 %v1582, 23
        %v1584 = vor.u32 4788187, %v1583
        %v1585 = vand.u32 2147483647, %v1584
        %v1587 = vcvt.s32.f32 %v1580
        %v1588 = vmul.f32 %v1587, %v1585
        %v1589 = vxor.u32 %v1588, 2147483648
        %v1590 = vsel %vm1507, %v1589, %v1588
        %v1591 = vsub.s32 4, %v1567
        %v1592 = vsel %vm1507, %v1591, %v1567
        %v1593 = vsel %vm1506, %v250, %v1590
        %v1594 = vsel %vm1506, 0, %v1592
        %v1595 = vcosq.f32.pop %v1593
        %v1596 = vsinq.f32.pop %v1593
        %vm1597 = vweird.f32 %v250
        %v1598 = vadd.s32 %v1594, 3
        %v1599 = vand.u32 %v1598, 3
        %vm1600 = vcmp.lt.s32.totalorder %v1599, 2
        %vm1601 = vcmp.eq.s32.totalorder %v1599, 0
        %v1602 = vxor.u32 %v1596, 2147483648
        %v1603 = vsel %vm1601, %v1595, %v1602
        %vm1604 = vcmp.eq.s32.totalorder %v1599, 2
        %v1605 = vxor.u32 %v1595, 2147483648
        %v1606 = vsel %vm1604, %v1605, %v1596
        %v1607 = vsel %vm1600, %v1603, %v1606
        %v1608 = vsel %vm1597, nan, %v1607
        %v1609 = vand.u32 2147483647, %v251
        %vm1610 = vcmp.le.f32.partialorder %v1609, 0.7853982
        %vm1611 = vcmp.lt.s32.totalorder %v251, 0
        %v1612 = vand.u32 %v251, 2139095040
        %v1613 = vshrl.u32 %v1612, 23
        %v1614 = vsub.s32 %v1613, 127
        %v1615 = vand.u32 2147483647, %v251
        %v1616 = vand.u32 %v1615, 8388607
        %v1617 = vor.u32 %v1616, 8388608
        %v1618 = vsub.s32 0, %v1617
        %v1619 = vadd.s32 %v1614, 1
        %vm1620 = vcmp.gt.s32.totalorder %v1619, 0
        %v1621 = vsel %vm1620, %v1619, 0
        %v1622 = vshrl.u32 %v1621, 5
        %v1623 = vand.u32 %v1621, 31
        %v1624 = vsub.s32 32, %v1623
        %v1625 = vshrl.u32 683565275, %v1624
        %v1626 = vshll.u32 683565275, %v1623
        %v1627 = vshrl.u32 2475754826, %v1624
        %v1628 = vor.u32 %v1626, %v1627
        %v1629 = vshll.u32 2475754826, %v1623
        %v1630 = vshrl.u32 2131351028, %v1624
        %v1631 = vor.u32 %v1629, %v1630
        %v1632 = vshll.u32 2131351028, %v1623
        %v1633 = vshrl.u32 2102212464, %v1624
        %v1634 = vor.u32 %v1632, %v1633
        %v1635 = vshll.u32 2102212464, %v1623
        %v1636 = vshrl.u32 920167782, %v1624
        %v1637 = vor.u32 %v1635, %v1636
        %v1638 = vshll.u32 920167782, %v1623
        %v1639 = vshrl.u32 1326507024, %v1624
        %v1640 = vor.u32 %v1638, %v1639
        %vm1641 = vcmp.lt.s32.totalorder %v1622, 1
        %vm1642 = vcmp.lt.s32.totalorder %v1622, 2
        %vm1643 = vcmp.lt.s32.totalorder %v1622, 3
        %vm1644 = vcmp.lt.s32.totalorder %v1622, 4
        %v1645 = vsel %vm1641, %v1625, %v1628
        %v1646 = vsel %vm1644, %v1634, 2102212464
        %v1647 = vsel %vm1643, %v1631, %v1646
        %v1648 = vsel %vm1642, %v1645, %v1647
        %v1649 = vsel %vm1641, %v1628, %v1631
        %v1650 = vsel %vm1644, %v1637, 920167782
        %v1651 = vsel %vm1643, %v1634, %v1650
        %v1652 = vsel %vm1642, %v1649, %v1651
        %v1653 = vsel %vm1641, %v1631, %v1634
        %v1654 = vsel %vm1644, %v1640, 1326507024
        %v1655 = vsel %vm1643, %v1637, %v1654
        %v1656 = vsel %vm1642, %v1653, %v1655
        %v1657 = vshll.u32 %v1617, 8
        %v1658 = vmul.u32.u64.compose %v1657, %v1656
        %v1659 = vextract.low.u32 %v1658
        %v1660 = vextract.high.u32 %v1658
        %v1661 = vmul.u32.u64.compose %v1657, %v1652
        %v1662 = vextract.low.u32 %v1661
        %v1663 = vextract.high.u32 %v1661
        %v1664 = vmul.u32 %v1657, %v1648
        %v1665 = vadd.s32 %v1660, %v1662
        %vm1666 = vc.u32 %v1660, %v1662
        %v1667 = vadd.s32 %v1663, 1
        %v1668 = vsel %vm1666, %v1667, %v1663
        %v1669 = vadd.s32 %v1664, %v1668
        %v1670 = vadd.s32 %v1669, 536870912
        %v1671 = vshrl.u32 %v1670, 30
        %v1672 = vshll.u32 %v1671, 30
        %v1673 = vsub.s32 %v1669, %v1672
        %vm1674 = vcmp.lt.s32.totalorder %v1673, 0
        %v1675 = vsub.s32 0, %v1673
        %v1676 = vsel %vm1674, %v1675, %v1673
        %v1677 = vclz %v1676
        %v1678 = vsub.s32 %v1677, 2
        %vm1679 = vcmp.gt.s32.totalorder 0, %v1678
        %v1680 = vsel %vm1679, 0, %v1678
        %v1681 = vsub.s32 32, %v1680
        %v1682 = vshll.u32 %v1673, %v1680
        %v1683 = vshrl.u32 %v1665, %v1681
        %v1684 = vor.u32 %v1682, %v1683
        %v1685 = vsub.s32 4294967266, %v1680
        %v1686 = vadd.s32 %v1685, 127
        %v1687 = vshll.u32 %v1686, 23
        %v1688 = vor.u32 4788187, %v1687
        %v1689 = vand.u32 2147483647, %v1688
        %v1691 = vcvt.s32.f32 %v1684
        %v1692 = vmul.f32 %v1691, %v1689
        %v1693 = vxor.u32 %v1692, 2147483648
        %v1694 = vsel %vm1611, %v1693, %v1692
        %v1695 = vsub.s32 4, %v1671
        %v1696 = vsel %vm1611, %v1695, %v1671
        %v1697 = vsel %vm1610, %v251, %v1694
        %v1698 = vsel %vm1610, 0, %v1696
        %v1699 = vcosq.f32.pop %v1697
        %v1700 = vsinq.f32.pop %v1697
        %vm1701 = vweird.f32 %v251
        %v1702 = vadd.s32 %v1698, 3
        %v1703 = vand.u32 %v1702, 3
        %vm1704 = vcmp.lt.s32.totalorder %v1703, 2
        %vm1705 = vcmp.eq.s32.totalorder %v1703, 0
        %v1706 = vxor.u32 %v1700, 2147483648
        %v1707 = vsel %vm1705, %v1699, %v1706
        %vm1708 = vcmp.eq.s32.totalorder %v1703, 2
        %v1709 = vxor.u32 %v1699, 2147483648
        %v1710 = vsel %vm1708, %v1709, %v1700
        %v1711 = vsel %vm1704, %v1707, %v1710
        %v1712 = vsel %vm1701, nan, %v1711
        %v1713 = vand.u32 2147483647, %v252
        %vm1714 = vcmp.le.f32.partialorder %v1713, 0.7853982
        %vm1715 = vcmp.lt.s32.totalorder %v252, 0
        %v1716 = vand.u32 %v252, 2139095040
        %v1717 = vshrl.u32 %v1716, 23
        %v1718 = vsub.s32 %v1717, 127
        %v1719 = vand.u32 2147483647, %v252
        %v1720 = vand.u32 %v1719, 8388607
        %v1721 = vor.u32 %v1720, 8388608
        %v1722 = vsub.s32 0, %v1721
        %v1723 = vadd.s32 %v1718, 1
        %vm1724 = vcmp.gt.s32.totalorder %v1723, 0
        %v1725 = vsel %vm1724, %v1723, 0
        %v1726 = vshrl.u32 %v1725, 5
        %v1727 = vand.u32 %v1725, 31
        %v1728 = vsub.s32 32, %v1727
        %v1729 = vshrl.u32 683565275, %v1728
        %v1730 = vshll.u32 683565275, %v1727
        %v1731 = vshrl.u32 2475754826, %v1728
        %v1732 = vor.u32 %v1730, %v1731
        %v1733 = vshll.u32 2475754826, %v1727
        %v1734 = vshrl.u32 2131351028, %v1728
        %v1735 = vor.u32 %v1733, %v1734
        %v1736 = vshll.u32 2131351028, %v1727
        %v1737 = vshrl.u32 2102212464, %v1728
        %v1738 = vor.u32 %v1736, %v1737
        %v1739 = vshll.u32 2102212464, %v1727
        %v1740 = vshrl.u32 920167782, %v1728
        %v1741 = vor.u32 %v1739, %v1740
        %v1742 = vshll.u32 920167782, %v1727
        %v1743 = vshrl.u32 1326507024, %v1728
        %v1744 = vor.u32 %v1742, %v1743
        %vm1745 = vcmp.lt.s32.totalorder %v1726, 1
        %vm1746 = vcmp.lt.s32.totalorder %v1726, 2
        %vm1747 = vcmp.lt.s32.totalorder %v1726, 3
        %vm1748 = vcmp.lt.s32.totalorder %v1726, 4
        %v1749 = vsel %vm1745, %v1729, %v1732
        %v1750 = vsel %vm1748, %v1738, 2102212464
        %v1751 = vsel %vm1747, %v1735, %v1750
        %v1752 = vsel %vm1746, %v1749, %v1751
        %v1753 = vsel %vm1745, %v1732, %v1735
        %v1754 = vsel %vm1748, %v1741, 920167782
        %v1755 = vsel %vm1747, %v1738, %v1754
        %v1756 = vsel %vm1746, %v1753, %v1755
        %v1757 = vsel %vm1745, %v1735, %v1738
        %v1758 = vsel %vm1748, %v1744, 1326507024
        %v1759 = vsel %vm1747, %v1741, %v1758
        %v1760 = vsel %vm1746, %v1757, %v1759
        %v1761 = vshll.u32 %v1721, 8
        %v1762 = vmul.u32.u64.compose %v1761, %v1760
        %v1763 = vextract.low.u32 %v1762
        %v1764 = vextract.high.u32 %v1762
        %v1765 = vmul.u32.u64.compose %v1761, %v1756
        %v1766 = vextract.low.u32 %v1765
        %v1767 = vextract.high.u32 %v1765
        %v1768 = vmul.u32 %v1761, %v1752
        %v1769 = vadd.s32 %v1764, %v1766
        %vm1770 = vc.u32 %v1764, %v1766
        %v1771 = vadd.s32 %v1767, 1
        %v1772 = vsel %vm1770, %v1771, %v1767
        %v1773 = vadd.s32 %v1768, %v1772
        %v1774 = vadd.s32 %v1773, 536870912
        %v1775 = vshrl.u32 %v1774, 30
        %v1776 = vshll.u32 %v1775, 30
        %v1777 = vsub.s32 %v1773, %v1776
        %vm1778 = vcmp.lt.s32.totalorder %v1777, 0
        %v1779 = vsub.s32 0, %v1777
        %v1780 = vsel %vm1778, %v1779, %v1777
        %v1781 = vclz %v1780
        %v1782 = vsub.s32 %v1781, 2
        %vm1783 = vcmp.gt.s32.totalorder 0, %v1782
        %v1784 = vsel %vm1783, 0, %v1782
        %v1785 = vsub.s32 32, %v1784
        %v1786 = vshll.u32 %v1777, %v1784
        %v1787 = vshrl.u32 %v1769, %v1785
        %v1788 = vor.u32 %v1786, %v1787
        %v1789 = vsub.s32 4294967266, %v1784
        %v1790 = vadd.s32 %v1789, 127
        %v1791 = vshll.u32 %v1790, 23
        %v1792 = vor.u32 4788187, %v1791
        %v1793 = vand.u32 2147483647, %v1792
        %v1795 = vcvt.s32.f32 %v1788
        %v1796 = vmul.f32 %v1795, %v1793
        %v1797 = vxor.u32 %v1796, 2147483648
        %v1798 = vsel %vm1715, %v1797, %v1796
        %v1799 = vsub.s32 4, %v1775
        %v1800 = vsel %vm1715, %v1799, %v1775
        %v1801 = vsel %vm1714, %v252, %v1798
        %v1802 = vsel %vm1714, 0, %v1800
        %v1803 = vcosq.f32.pop %v1801
        %v1804 = vsinq.f32.pop %v1801
        %vm1805 = vweird.f32 %v252
        %v1806 = vadd.s32 %v1802, 3
        %v1807 = vand.u32 %v1806, 3
        %vm1808 = vcmp.lt.s32.totalorder %v1807, 2
        %vm1809 = vcmp.eq.s32.totalorder %v1807, 0
        %v1810 = vxor.u32 %v1804, 2147483648
        %v1811 = vsel %vm1809, %v1803, %v1810
        %vm1812 = vcmp.eq.s32.totalorder %v1807, 2
        %v1813 = vxor.u32 %v1803, 2147483648
        %v1814 = vsel %vm1812, %v1813, %v1804
        %v1815 = vsel %vm1808, %v1811, %v1814
        %v1816 = vsel %vm1805, nan, %v1815
        %v1817 = vand.u32 2147483647, %v253
        %vm1818 = vcmp.le.f32.partialorder %v1817, 0.7853982
        %vm1819 = vcmp.lt.s32.totalorder %v253, 0
        %v1820 = vand.u32 %v253, 2139095040
        %v1821 = vshrl.u32 %v1820, 23
        %v1822 = vsub.s32 %v1821, 127
        %v1823 = vand.u32 2147483647, %v253
        %v1824 = vand.u32 %v1823, 8388607
        %v1825 = vor.u32 %v1824, 8388608
        %v1826 = vsub.s32 0, %v1825
        %v1827 = vadd.s32 %v1822, 1
        %vm1828 = vcmp.gt.s32.totalorder %v1827, 0
        %v1829 = vsel %vm1828, %v1827, 0
        %v1830 = vshrl.u32 %v1829, 5
        %v1831 = vand.u32 %v1829, 31
        %v1832 = vsub.s32 32, %v1831
        %v1833 = vshrl.u32 683565275, %v1832
        %v1834 = vshll.u32 683565275, %v1831
        %v1835 = vshrl.u32 2475754826, %v1832
        %v1836 = vor.u32 %v1834, %v1835
        %v1837 = vshll.u32 2475754826, %v1831
        %v1838 = vshrl.u32 2131351028, %v1832
        %v1839 = vor.u32 %v1837, %v1838
        %v1840 = vshll.u32 2131351028, %v1831
        %v1841 = vshrl.u32 2102212464, %v1832
        %v1842 = vor.u32 %v1840, %v1841
        %v1843 = vshll.u32 2102212464, %v1831
        %v1844 = vshrl.u32 920167782, %v1832
        %v1845 = vor.u32 %v1843, %v1844
        %v1846 = vshll.u32 920167782, %v1831
        %v1847 = vshrl.u32 1326507024, %v1832
        %v1848 = vor.u32 %v1846, %v1847
        %vm1849 = vcmp.lt.s32.totalorder %v1830, 1
        %vm1850 = vcmp.lt.s32.totalorder %v1830, 2
        %vm1851 = vcmp.lt.s32.totalorder %v1830, 3
        %vm1852 = vcmp.lt.s32.totalorder %v1830, 4
        %v1853 = vsel %vm1849, %v1833, %v1836
        %v1854 = vsel %vm1852, %v1842, 2102212464
        %v1855 = vsel %vm1851, %v1839, %v1854
        %v1856 = vsel %vm1850, %v1853, %v1855
        %v1857 = vsel %vm1849, %v1836, %v1839
        %v1858 = vsel %vm1852, %v1845, 920167782
        %v1859 = vsel %vm1851, %v1842, %v1858
        %v1860 = vsel %vm1850, %v1857, %v1859
        %v1861 = vsel %vm1849, %v1839, %v1842
        %v1862 = vsel %vm1852, %v1848, 1326507024
        %v1863 = vsel %vm1851, %v1845, %v1862
        %v1864 = vsel %vm1850, %v1861, %v1863
        %v1865 = vshll.u32 %v1825, 8
        %v1866 = vmul.u32.u64.compose %v1865, %v1864
        %v1867 = vextract.low.u32 %v1866
        %v1868 = vextract.high.u32 %v1866
        %v1869 = vmul.u32.u64.compose %v1865, %v1860
        %v1870 = vextract.low.u32 %v1869
        %v1871 = vextract.high.u32 %v1869
        %v1872 = vmul.u32 %v1865, %v1856
        %v1873 = vadd.s32 %v1868, %v1870
        %vm1874 = vc.u32 %v1868, %v1870
        %v1875 = vadd.s32 %v1871, 1
        %v1876 = vsel %vm1874, %v1875, %v1871
        %v1877 = vadd.s32 %v1872, %v1876
        %v1878 = vadd.s32 %v1877, 536870912
        %v1879 = vshrl.u32 %v1878, 30
        %v1880 = vshll.u32 %v1879, 30
        %v1881 = vsub.s32 %v1877, %v1880
        %vm1882 = vcmp.lt.s32.totalorder %v1881, 0
        %v1883 = vsub.s32 0, %v1881
        %v1884 = vsel %vm1882, %v1883, %v1881
        %v1885 = vclz %v1884
        %v1886 = vsub.s32 %v1885, 2
        %vm1887 = vcmp.gt.s32.totalorder 0, %v1886
        %v1888 = vsel %vm1887, 0, %v1886
        %v1889 = vsub.s32 32, %v1888
        %v1890 = vshll.u32 %v1881, %v1888
        %v1891 = vshrl.u32 %v1873, %v1889
        %v1892 = vor.u32 %v1890, %v1891
        %v1893 = vsub.s32 4294967266, %v1888
        %v1894 = vadd.s32 %v1893, 127
        %v1895 = vshll.u32 %v1894, 23
        %v1896 = vor.u32 4788187, %v1895
        %v1897 = vand.u32 2147483647, %v1896
        %v1899 = vcvt.s32.f32 %v1892
        %v1900 = vmul.f32 %v1899, %v1897
        %v1901 = vxor.u32 %v1900, 2147483648
        %v1902 = vsel %vm1819, %v1901, %v1900
        %v1903 = vsub.s32 4, %v1879
        %v1904 = vsel %vm1819, %v1903, %v1879
        %v1905 = vsel %vm1818, %v253, %v1902
        %v1906 = vsel %vm1818, 0, %v1904
        %v1907 = vcosq.f32.pop %v1905
        %v1908 = vsinq.f32.pop %v1905
        %vm1909 = vweird.f32 %v253
        %v1910 = vadd.s32 %v1906, 3
        %v1911 = vand.u32 %v1910, 3
        %vm1912 = vcmp.lt.s32.totalorder %v1911, 2
        %vm1913 = vcmp.eq.s32.totalorder %v1911, 0
        %v1914 = vxor.u32 %v1908, 2147483648
        %v1915 = vsel %vm1913, %v1907, %v1914
        %vm1916 = vcmp.eq.s32.totalorder %v1911, 2
        %v1917 = vxor.u32 %v1907, 2147483648
        %v1918 = vsel %vm1916, %v1917, %v1908
        %v1919 = vsel %vm1912, %v1915, %v1918
        %v1920 = vsel %vm1909, nan, %v1919
        %v1921 = vand.u32 2147483647, %v254
        %vm1922 = vcmp.le.f32.partialorder %v1921, 0.7853982
        %vm1923 = vcmp.lt.s32.totalorder %v254, 0
        %v1924 = vand.u32 %v254, 2139095040
        %v1925 = vshrl.u32 %v1924, 23
        %v1926 = vsub.s32 %v1925, 127
        %v1927 = vand.u32 2147483647, %v254
        %v1928 = vand.u32 %v1927, 8388607
        %v1929 = vor.u32 %v1928, 8388608
        %v1930 = vsub.s32 0, %v1929
        %v1931 = vadd.s32 %v1926, 1
        %vm1932 = vcmp.gt.s32.totalorder %v1931, 0
        %v1933 = vsel %vm1932, %v1931, 0
        %v1934 = vshrl.u32 %v1933, 5
        %v1935 = vand.u32 %v1933, 31
        %v1936 = vsub.s32 32, %v1935
        %v1937 = vshrl.u32 683565275, %v1936
        %v1938 = vshll.u32 683565275, %v1935
        %v1939 = vshrl.u32 2475754826, %v1936
        %v1940 = vor.u32 %v1938, %v1939
        %v1941 = vshll.u32 2475754826, %v1935
        %v1942 = vshrl.u32 2131351028, %v1936
        %v1943 = vor.u32 %v1941, %v1942
        %v1944 = vshll.u32 2131351028, %v1935
        %v1945 = vshrl.u32 2102212464, %v1936
        %v1946 = vor.u32 %v1944, %v1945
        %v1947 = vshll.u32 2102212464, %v1935
        %v1948 = vshrl.u32 920167782, %v1936
        %v1949 = vor.u32 %v1947, %v1948
        %v1950 = vshll.u32 920167782, %v1935
        %v1951 = vshrl.u32 1326507024, %v1936
        %v1952 = vor.u32 %v1950, %v1951
        %vm1953 = vcmp.lt.s32.totalorder %v1934, 1
        %vm1954 = vcmp.lt.s32.totalorder %v1934, 2
        %vm1955 = vcmp.lt.s32.totalorder %v1934, 3
        %vm1956 = vcmp.lt.s32.totalorder %v1934, 4
        %v1957 = vsel %vm1953, %v1937, %v1940
        %v1958 = vsel %vm1956, %v1946, 2102212464
        %v1959 = vsel %vm1955, %v1943, %v1958
        %v1960 = vsel %vm1954, %v1957, %v1959
        %v1961 = vsel %vm1953, %v1940, %v1943
        %v1962 = vsel %vm1956, %v1949, 920167782
        %v1963 = vsel %vm1955, %v1946, %v1962
        %v1964 = vsel %vm1954, %v1961, %v1963
        %v1965 = vsel %vm1953, %v1943, %v1946
        %v1966 = vsel %vm1956, %v1952, 1326507024
        %v1967 = vsel %vm1955, %v1949, %v1966
        %v1968 = vsel %vm1954, %v1965, %v1967
        %v1969 = vshll.u32 %v1929, 8
        %v1970 = vmul.u32.u64.compose %v1969, %v1968
        %v1971 = vextract.low.u32 %v1970
        %v1972 = vextract.high.u32 %v1970
        %v1973 = vmul.u32.u64.compose %v1969, %v1964
        %v1974 = vextract.low.u32 %v1973
        %v1975 = vextract.high.u32 %v1973
        %v1976 = vmul.u32 %v1969, %v1960
        %v1977 = vadd.s32 %v1972, %v1974
        %vm1978 = vc.u32 %v1972, %v1974
        %v1979 = vadd.s32 %v1975, 1
        %v1980 = vsel %vm1978, %v1979, %v1975
        %v1981 = vadd.s32 %v1976, %v1980
        %v1982 = vadd.s32 %v1981, 536870912
        %v1983 = vshrl.u32 %v1982, 30
        %v1984 = vshll.u32 %v1983, 30
        %v1985 = vsub.s32 %v1981, %v1984
        %vm1986 = vcmp.lt.s32.totalorder %v1985, 0
        %v1987 = vsub.s32 0, %v1985
        %v1988 = vsel %vm1986, %v1987, %v1985
        %v1989 = vclz %v1988
        %v1990 = vsub.s32 %v1989, 2
        %vm1991 = vcmp.gt.s32.totalorder 0, %v1990
        %v1992 = vsel %vm1991, 0, %v1990
        %v1993 = vsub.s32 32, %v1992
        %v1994 = vshll.u32 %v1985, %v1992
        %v1995 = vshrl.u32 %v1977, %v1993
        %v1996 = vor.u32 %v1994, %v1995
        %v1997 = vsub.s32 4294967266, %v1992
        %v1998 = vadd.s32 %v1997, 127
        %v1999 = vshll.u32 %v1998, 23
        %v2000 = vor.u32 4788187, %v1999
        %v2001 = vand.u32 2147483647, %v2000
        %v2003 = vcvt.s32.f32 %v1996
        %v2004 = vmul.f32 %v2003, %v2001
        %v2005 = vxor.u32 %v2004, 2147483648
        %v2006 = vsel %vm1923, %v2005, %v2004
        %v2007 = vsub.s32 4, %v1983
        %v2008 = vsel %vm1923, %v2007, %v1983
        %v2009 = vsel %vm1922, %v254, %v2006
        %v2010 = vsel %vm1922, 0, %v2008
        %v2011 = vcosq.f32.pop %v2009
        %v2012 = vsinq.f32.pop %v2009
        %vm2013 = vweird.f32 %v254
        %v2014 = vadd.s32 %v2010, 3
        %v2015 = vand.u32 %v2014, 3
        %vm2016 = vcmp.lt.s32.totalorder %v2015, 2
        %vm2017 = vcmp.eq.s32.totalorder %v2015, 0
        %v2018 = vxor.u32 %v2012, 2147483648
        %v2019 = vsel %vm2017, %v2011, %v2018
        %vm2020 = vcmp.eq.s32.totalorder %v2015, 2
        %v2021 = vxor.u32 %v2011, 2147483648
        %v2022 = vsel %vm2020, %v2021, %v2012
        %v2023 = vsel %vm2016, %v2019, %v2022
        %v2024 = vsel %vm2013, nan, %v2023
        %v2025 = vand.u32 2147483647, %v255
        %vm2026 = vcmp.le.f32.partialorder %v2025, 0.7853982
        %vm2027 = vcmp.lt.s32.totalorder %v255, 0
        %v2028 = vand.u32 %v255, 2139095040
        %v2029 = vshrl.u32 %v2028, 23
        %v2030 = vsub.s32 %v2029, 127
        %v2031 = vand.u32 2147483647, %v255
        %v2032 = vand.u32 %v2031, 8388607
        %v2033 = vor.u32 %v2032, 8388608
        %v2034 = vsub.s32 0, %v2033
        %v2035 = vadd.s32 %v2030, 1
        %vm2036 = vcmp.gt.s32.totalorder %v2035, 0
        %v2037 = vsel %vm2036, %v2035, 0
        %v2038 = vshrl.u32 %v2037, 5
        %v2039 = vand.u32 %v2037, 31
        %v2040 = vsub.s32 32, %v2039
        %v2041 = vshrl.u32 683565275, %v2040
        %v2042 = vshll.u32 683565275, %v2039
        %v2043 = vshrl.u32 2475754826, %v2040
        %v2044 = vor.u32 %v2042, %v2043
        %v2045 = vshll.u32 2475754826, %v2039
        %v2046 = vshrl.u32 2131351028, %v2040
        %v2047 = vor.u32 %v2045, %v2046
        %v2048 = vshll.u32 2131351028, %v2039
        %v2049 = vshrl.u32 2102212464, %v2040
        %v2050 = vor.u32 %v2048, %v2049
        %v2051 = vshll.u32 2102212464, %v2039
        %v2052 = vshrl.u32 920167782, %v2040
        %v2053 = vor.u32 %v2051, %v2052
        %v2054 = vshll.u32 920167782, %v2039
        %v2055 = vshrl.u32 1326507024, %v2040
        %v2056 = vor.u32 %v2054, %v2055
        %vm2057 = vcmp.lt.s32.totalorder %v2038, 1
        %vm2058 = vcmp.lt.s32.totalorder %v2038, 2
        %vm2059 = vcmp.lt.s32.totalorder %v2038, 3
        %vm2060 = vcmp.lt.s32.totalorder %v2038, 4
        %v2061 = vsel %vm2057, %v2041, %v2044
        %v2062 = vsel %vm2060, %v2050, 2102212464
        %v2063 = vsel %vm2059, %v2047, %v2062
        %v2064 = vsel %vm2058, %v2061, %v2063
        %v2065 = vsel %vm2057, %v2044, %v2047
        %v2066 = vsel %vm2060, %v2053, 920167782
        %v2067 = vsel %vm2059, %v2050, %v2066
        %v2068 = vsel %vm2058, %v2065, %v2067
        %v2069 = vsel %vm2057, %v2047, %v2050
        %v2070 = vsel %vm2060, %v2056, 1326507024
        %v2071 = vsel %vm2059, %v2053, %v2070
        %v2072 = vsel %vm2058, %v2069, %v2071
        %v2073 = vshll.u32 %v2033, 8
        %v2074 = vmul.u32.u64.compose %v2073, %v2072
        %v2075 = vextract.low.u32 %v2074
        %v2076 = vextract.high.u32 %v2074
        %v2077 = vmul.u32.u64.compose %v2073, %v2068
        %v2078 = vextract.low.u32 %v2077
        %v2079 = vextract.high.u32 %v2077
        %v2080 = vmul.u32 %v2073, %v2064
        %v2081 = vadd.s32 %v2076, %v2078
        %vm2082 = vc.u32 %v2076, %v2078
        %v2083 = vadd.s32 %v2079, 1
        %v2084 = vsel %vm2082, %v2083, %v2079
        %v2085 = vadd.s32 %v2080, %v2084
        %v2086 = vadd.s32 %v2085, 536870912
        %v2087 = vshrl.u32 %v2086, 30
        %v2088 = vshll.u32 %v2087, 30
        %v2089 = vsub.s32 %v2085, %v2088
        %vm2090 = vcmp.lt.s32.totalorder %v2089, 0
        %v2091 = vsub.s32 0, %v2089
        %v2092 = vsel %vm2090, %v2091, %v2089
        %v2093 = vclz %v2092
        %v2094 = vsub.s32 %v2093, 2
        %vm2095 = vcmp.gt.s32.totalorder 0, %v2094
        %v2096 = vsel %vm2095, 0, %v2094
        %v2097 = vsub.s32 32, %v2096
        %v2098 = vshll.u32 %v2089, %v2096
        %v2099 = vshrl.u32 %v2081, %v2097
        %v2100 = vor.u32 %v2098, %v2099
        %v2101 = vsub.s32 4294967266, %v2096
        %v2102 = vadd.s32 %v2101, 127
        %v2103 = vshll.u32 %v2102, 23
        %v2104 = vor.u32 4788187, %v2103
        %v2105 = vand.u32 2147483647, %v2104
        %v2107 = vcvt.s32.f32 %v2100
        %v2108 = vmul.f32 %v2107, %v2105
        %v2109 = vxor.u32 %v2108, 2147483648
        %v2110 = vsel %vm2027, %v2109, %v2108
        %v2111 = vsub.s32 4, %v2087
        %v2112 = vsel %vm2027, %v2111, %v2087
        %v2113 = vsel %vm2026, %v255, %v2110
        %v2114 = vsel %vm2026, 0, %v2112
        %v2115 = vcosq.f32.pop %v2113
        %v2116 = vsinq.f32.pop %v2113
        %vm2117 = vweird.f32 %v255
        %v2118 = vadd.s32 %v2114, 3
        %v2119 = vand.u32 %v2118, 3
        %vm2120 = vcmp.lt.s32.totalorder %v2119, 2
        %vm2121 = vcmp.eq.s32.totalorder %v2119, 0
        %v2122 = vxor.u32 %v2116, 2147483648
        %v2123 = vsel %vm2121, %v2115, %v2122
        %vm2124 = vcmp.eq.s32.totalorder %v2119, 2
        %v2125 = vxor.u32 %v2115, 2147483648
        %v2126 = vsel %vm2124, %v2125, %v2116
        %v2127 = vsel %vm2120, %v2123, %v2126
        %v2128 = vsel %vm2117, nan, %v2127
        %v2129 = vand.u32 2147483647, %v256
        %vm2130 = vcmp.le.f32.partialorder %v2129, 0.7853982
        %vm2131 = vcmp.lt.s32.totalorder %v256, 0
        %v2132 = vand.u32 %v256, 2139095040
        %v2133 = vshrl.u32 %v2132, 23
        %v2134 = vsub.s32 %v2133, 127
        %v2135 = vand.u32 2147483647, %v256
        %v2136 = vand.u32 %v2135, 8388607
        %v2137 = vor.u32 %v2136, 8388608
        %v2138 = vsub.s32 0, %v2137
        %v2139 = vadd.s32 %v2134, 1
        %vm2140 = vcmp.gt.s32.totalorder %v2139, 0
        %v2141 = vsel %vm2140, %v2139, 0
        %v2142 = vshrl.u32 %v2141, 5
        %v2143 = vand.u32 %v2141, 31
        %v2144 = vsub.s32 32, %v2143
        %v2145 = vshrl.u32 683565275, %v2144
        %v2146 = vshll.u32 683565275, %v2143
        %v2147 = vshrl.u32 2475754826, %v2144
        %v2148 = vor.u32 %v2146, %v2147
        %v2149 = vshll.u32 2475754826, %v2143
        %v2150 = vshrl.u32 2131351028, %v2144
        %v2151 = vor.u32 %v2149, %v2150
        %v2152 = vshll.u32 2131351028, %v2143
        %v2153 = vshrl.u32 2102212464, %v2144
        %v2154 = vor.u32 %v2152, %v2153
        %v2155 = vshll.u32 2102212464, %v2143
        %v2156 = vshrl.u32 920167782, %v2144
        %v2157 = vor.u32 %v2155, %v2156
        %v2158 = vshll.u32 920167782, %v2143
        %v2159 = vshrl.u32 1326507024, %v2144
        %v2160 = vor.u32 %v2158, %v2159
        %vm2161 = vcmp.lt.s32.totalorder %v2142, 1
        %vm2162 = vcmp.lt.s32.totalorder %v2142, 2
        %vm2163 = vcmp.lt.s32.totalorder %v2142, 3
        %vm2164 = vcmp.lt.s32.totalorder %v2142, 4
        %v2165 = vsel %vm2161, %v2145, %v2148
        %v2166 = vsel %vm2164, %v2154, 2102212464
        %v2167 = vsel %vm2163, %v2151, %v2166
        %v2168 = vsel %vm2162, %v2165, %v2167
        %v2169 = vsel %vm2161, %v2148, %v2151
        %v2170 = vsel %vm2164, %v2157, 920167782
        %v2171 = vsel %vm2163, %v2154, %v2170
        %v2172 = vsel %vm2162, %v2169, %v2171
        %v2173 = vsel %vm2161, %v2151, %v2154
        %v2174 = vsel %vm2164, %v2160, 1326507024
        %v2175 = vsel %vm2163, %v2157, %v2174
        %v2176 = vsel %vm2162, %v2173, %v2175
        %v2177 = vshll.u32 %v2137, 8
        %v2178 = vmul.u32.u64.compose %v2177, %v2176
        %v2179 = vextract.low.u32 %v2178
        %v2180 = vextract.high.u32 %v2178
        %v2181 = vmul.u32.u64.compose %v2177, %v2172
        %v2182 = vextract.low.u32 %v2181
        %v2183 = vextract.high.u32 %v2181
        %v2184 = vmul.u32 %v2177, %v2168
        %v2185 = vadd.s32 %v2180, %v2182
        %vm2186 = vc.u32 %v2180, %v2182
        %v2187 = vadd.s32 %v2183, 1
        %v2188 = vsel %vm2186, %v2187, %v2183
        %v2189 = vadd.s32 %v2184, %v2188
        %v2190 = vadd.s32 %v2189, 536870912
        %v2191 = vshrl.u32 %v2190, 30
        %v2192 = vshll.u32 %v2191, 30
        %v2193 = vsub.s32 %v2189, %v2192
        %vm2194 = vcmp.lt.s32.totalorder %v2193, 0
        %v2195 = vsub.s32 0, %v2193
        %v2196 = vsel %vm2194, %v2195, %v2193
        %v2197 = vclz %v2196
        %v2198 = vsub.s32 %v2197, 2
        %vm2199 = vcmp.gt.s32.totalorder 0, %v2198
        %v2200 = vsel %vm2199, 0, %v2198
        %v2201 = vsub.s32 32, %v2200
        %v2202 = vshll.u32 %v2193, %v2200
        %v2203 = vshrl.u32 %v2185, %v2201
        %v2204 = vor.u32 %v2202, %v2203
        %v2205 = vsub.s32 4294967266, %v2200
        %v2206 = vadd.s32 %v2205, 127
        %v2207 = vshll.u32 %v2206, 23
        %v2208 = vor.u32 4788187, %v2207
        %v2209 = vand.u32 2147483647, %v2208
        %v2211 = vcvt.s32.f32 %v2204
        %v2212 = vmul.f32 %v2211, %v2209
        %v2213 = vxor.u32 %v2212, 2147483648
        %v2214 = vsel %vm2131, %v2213, %v2212
        %v2215 = vsub.s32 4, %v2191
        %v2216 = vsel %vm2131, %v2215, %v2191
        %v2217 = vsel %vm2130, %v256, %v2214
        %v2218 = vsel %vm2130, 0, %v2216
        %v2219 = vcosq.f32.pop %v2217
        %v2220 = vsinq.f32.pop %v2217
        %vm2221 = vweird.f32 %v256
        %v2222 = vadd.s32 %v2218, 3
        %v2223 = vand.u32 %v2222, 3
        %vm2224 = vcmp.lt.s32.totalorder %v2223, 2
        %vm2225 = vcmp.eq.s32.totalorder %v2223, 0
        %v2226 = vxor.u32 %v2220, 2147483648
        %v2227 = vsel %vm2225, %v2219, %v2226
        %vm2228 = vcmp.eq.s32.totalorder %v2223, 2
        %v2229 = vxor.u32 %v2219, 2147483648
        %v2230 = vsel %vm2228, %v2229, %v2220
        %v2231 = vsel %vm2224, %v2227, %v2230
        %v2232 = vsel %vm2221, nan, %v2231
        %2233 = vst [vmem:[%s110] sm:$0xff] %v360
        %2234 = vst [vmem:[%s110 + $0x10] sm:$0xff] %v464
        %2235 = vst [vmem:[%s110 + $0x20] sm:$0xff] %v568
        %2236 = vst [vmem:[%s110 + $0x30] sm:$0xff] %v672
        %2237 = vst [vmem:[%s110 + $0x40] sm:$0xff] %v776
        %2238 = vst [vmem:[%s110 + $0x50] sm:$0xff] %v880
        %2239 = vst [vmem:[%s110 + $0x60] sm:$0xff] %v984
        %2240 = vst [vmem:[%s110 + $0x70] sm:$0xff] %v1088
        %2241 = vst [vmem:[%s110 + $0x80] sm:$0xff] %v1192
        %2242 = vst [vmem:[%s110 + $0x90] sm:$0xff] %v1296
        %2243 = vst [vmem:[%s110 + $0xa0] sm:$0xff] %v1400
        %2244 = vst [vmem:[%s110 + $0xb0] sm:$0xff] %v1504
        %2245 = vst [vmem:[%s110 + $0xc0] sm:$0xff] %v1608
        %2246 = vst [vmem:[%s110 + $0xd0] sm:$0xff] %v1712
        %2247 = vst [vmem:[%s110 + $0xe0] sm:$0xff] %v1816
        %2248 = vst [vmem:[%s110 + $0xf0] sm:$0xff] %v1920
        %2249 = vst [vmem:[%s110 + $0x100] sm:$0xff] %v2024
        %2250 = vst [vmem:[%s110 + $0x110] sm:$0xff] %v2128
        %2251 = vst [vmem:[%s110 + $0x120] sm:$0xff] %v2232
        %v2252 = vand.u32 2147483647, %v238
        %vm2253 = vcmp.le.f32.partialorder %v2252, 0.7853982
        %vm2254 = vcmp.lt.s32.totalorder %v238, 0
        %v2255 = vand.u32 %v238, 2139095040
        %v2256 = vshrl.u32 %v2255, 23
        %v2257 = vsub.s32 %v2256, 127
        %v2258 = vand.u32 2147483647, %v238
        %v2259 = vand.u32 %v2258, 8388607
        %v2260 = vor.u32 %v2259, 8388608
        %v2261 = vsub.s32 0, %v2260
        %v2262 = vadd.s32 %v2257, 1
        %vm2263 = vcmp.gt.s32.totalorder %v2262, 0
        %v2264 = vsel %vm2263, %v2262, 0
        %v2265 = vshrl.u32 %v2264, 5
        %v2266 = vand.u32 %v2264, 31
        %v2267 = vsub.s32 32, %v2266
        %v2268 = vshrl.u32 683565275, %v2267
        %v2269 = vshll.u32 683565275, %v2266
        %v2270 = vshrl.u32 2475754826, %v2267
        %v2271 = vor.u32 %v2269, %v2270
        %v2272 = vshll.u32 2475754826, %v2266
        %v2273 = vshrl.u32 2131351028, %v2267
        %v2274 = vor.u32 %v2272, %v2273
        %v2275 = vshll.u32 2131351028, %v2266
        %v2276 = vshrl.u32 2102212464, %v2267
        %v2277 = vor.u32 %v2275, %v2276
        %v2278 = vshll.u32 2102212464, %v2266
        %v2279 = vshrl.u32 920167782, %v2267
        %v2280 = vor.u32 %v2278, %v2279
        %v2281 = vshll.u32 920167782, %v2266
        %v2282 = vshrl.u32 1326507024, %v2267
        %v2283 = vor.u32 %v2281, %v2282
        %vm2284 = vcmp.lt.s32.totalorder %v2265, 1
        %vm2285 = vcmp.lt.s32.totalorder %v2265, 2
        %vm2286 = vcmp.lt.s32.totalorder %v2265, 3
        %vm2287 = vcmp.lt.s32.totalorder %v2265, 4
        %v2288 = vsel %vm2284, %v2268, %v2271
        %v2289 = vsel %vm2287, %v2277, 2102212464
        %v2290 = vsel %vm2286, %v2274, %v2289
        %v2291 = vsel %vm2285, %v2288, %v2290
        %v2292 = vsel %vm2284, %v2271, %v2274
        %v2293 = vsel %vm2287, %v2280, 920167782
        %v2294 = vsel %vm2286, %v2277, %v2293
        %v2295 = vsel %vm2285, %v2292, %v2294
        %v2296 = vsel %vm2284, %v2274, %v2277
        %v2297 = vsel %vm2287, %v2283, 1326507024
        %v2298 = vsel %vm2286, %v2280, %v2297
        %v2299 = vsel %vm2285, %v2296, %v2298
        %v2300 = vshll.u32 %v2260, 8
        %v2301 = vmul.u32.u64.compose %v2300, %v2299
        %v2302 = vextract.low.u32 %v2301
        %v2303 = vextract.high.u32 %v2301
        %v2304 = vmul.u32.u64.compose %v2300, %v2295
        %v2305 = vextract.low.u32 %v2304
        %v2306 = vextract.high.u32 %v2304
        %v2307 = vmul.u32 %v2300, %v2291
        %v2308 = vadd.s32 %v2303, %v2305
        %vm2309 = vc.u32 %v2303, %v2305
        %v2310 = vadd.s32 %v2306, 1
        %v2311 = vsel %vm2309, %v2310, %v2306
        %v2312 = vadd.s32 %v2307, %v2311
        %v2313 = vadd.s32 %v2312, 536870912
        %v2314 = vshrl.u32 %v2313, 30
        %v2315 = vshll.u32 %v2314, 30
        %v2316 = vsub.s32 %v2312, %v2315
        %vm2317 = vcmp.lt.s32.totalorder %v2316, 0
        %v2318 = vsub.s32 0, %v2316
        %v2319 = vsel %vm2317, %v2318, %v2316
        %v2320 = vclz %v2319
        %v2321 = vsub.s32 %v2320, 2
        %vm2322 = vcmp.gt.s32.totalorder 0, %v2321
        %v2323 = vsel %vm2322, 0, %v2321
        %v2324 = vsub.s32 32, %v2323
        %v2325 = vshll.u32 %v2316, %v2323
        %v2326 = vshrl.u32 %v2308, %v2324
        %v2327 = vor.u32 %v2325, %v2326
        %v2328 = vsub.s32 4294967266, %v2323
        %v2329 = vadd.s32 %v2328, 127
        %v2330 = vshll.u32 %v2329, 23
        %v2331 = vor.u32 4788187, %v2330
        %v2332 = vand.u32 2147483647, %v2331
        %v2334 = vcvt.s32.f32 %v2327
        %v2335 = vmul.f32 %v2334, %v2332
        %v2336 = vxor.u32 %v2335, 2147483648
        %v2337 = vsel %vm2254, %v2336, %v2335
        %v2338 = vsub.s32 4, %v2314
        %v2339 = vsel %vm2254, %v2338, %v2314
        %v2340 = vsel %vm2253, %v238, %v2337
        %v2341 = vsel %vm2253, 0, %v2339
        %v2342 = vcosq.f32.pop %v2340
        %v2343 = vsinq.f32.pop %v2340
        %vm2344 = vweird.f32 %v238
        %v2345 = vand.u32 %v2341, 3
        %vm2346 = vcmp.lt.s32.totalorder %v2345, 2
        %vm2347 = vcmp.eq.s32.totalorder %v2345, 0
        %v2348 = vxor.u32 %v2343, 2147483648
        %v2349 = vsel %vm2347, %v2342, %v2348
        %vm2350 = vcmp.eq.s32.totalorder %v2345, 2
        %v2351 = vxor.u32 %v2342, 2147483648
        %v2352 = vsel %vm2350, %v2351, %v2343
        %v2353 = vsel %vm2346, %v2349, %v2352
        %v2354 = vsel %vm2344, nan, %v2353
        %v2355 = vand.u32 2147483647, %v239
        %vm2356 = vcmp.le.f32.partialorder %v2355, 0.7853982
        %vm2357 = vcmp.lt.s32.totalorder %v239, 0
        %v2358 = vand.u32 %v239, 2139095040
        %v2359 = vshrl.u32 %v2358, 23
        %v2360 = vsub.s32 %v2359, 127
        %v2361 = vand.u32 2147483647, %v239
        %v2362 = vand.u32 %v2361, 8388607
        %v2363 = vor.u32 %v2362, 8388608
        %v2364 = vsub.s32 0, %v2363
        %v2365 = vadd.s32 %v2360, 1
        %vm2366 = vcmp.gt.s32.totalorder %v2365, 0
        %v2367 = vsel %vm2366, %v2365, 0
        %v2368 = vshrl.u32 %v2367, 5
        %v2369 = vand.u32 %v2367, 31
        %v2370 = vsub.s32 32, %v2369
        %v2371 = vshrl.u32 683565275, %v2370
        %v2372 = vshll.u32 683565275, %v2369
        %v2373 = vshrl.u32 2475754826, %v2370
        %v2374 = vor.u32 %v2372, %v2373
        %v2375 = vshll.u32 2475754826, %v2369
        %v2376 = vshrl.u32 2131351028, %v2370
        %v2377 = vor.u32 %v2375, %v2376
        %v2378 = vshll.u32 2131351028, %v2369
        %v2379 = vshrl.u32 2102212464, %v2370
        %v2380 = vor.u32 %v2378, %v2379
        %v2381 = vshll.u32 2102212464, %v2369
        %v2382 = vshrl.u32 920167782, %v2370
        %v2383 = vor.u32 %v2381, %v2382
        %v2384 = vshll.u32 920167782, %v2369
        %v2385 = vshrl.u32 1326507024, %v2370
        %v2386 = vor.u32 %v2384, %v2385
        %vm2387 = vcmp.lt.s32.totalorder %v2368, 1
        %vm2388 = vcmp.lt.s32.totalorder %v2368, 2
        %vm2389 = vcmp.lt.s32.totalorder %v2368, 3
        %vm2390 = vcmp.lt.s32.totalorder %v2368, 4
        %v2391 = vsel %vm2387, %v2371, %v2374
        %v2392 = vsel %vm2390, %v2380, 2102212464
        %v2393 = vsel %vm2389, %v2377, %v2392
        %v2394 = vsel %vm2388, %v2391, %v2393
        %v2395 = vsel %vm2387, %v2374, %v2377
        %v2396 = vsel %vm2390, %v2383, 920167782
        %v2397 = vsel %vm2389, %v2380, %v2396
        %v2398 = vsel %vm2388, %v2395, %v2397
        %v2399 = vsel %vm2387, %v2377, %v2380
        %v2400 = vsel %vm2390, %v2386, 1326507024
        %v2401 = vsel %vm2389, %v2383, %v2400
        %v2402 = vsel %vm2388, %v2399, %v2401
        %v2403 = vshll.u32 %v2363, 8
        %v2404 = vmul.u32.u64.compose %v2403, %v2402
        %v2405 = vextract.low.u32 %v2404
        %v2406 = vextract.high.u32 %v2404
        %v2407 = vmul.u32.u64.compose %v2403, %v2398
        %v2408 = vextract.low.u32 %v2407
        %v2409 = vextract.high.u32 %v2407
        %v2410 = vmul.u32 %v2403, %v2394
        %v2411 = vadd.s32 %v2406, %v2408
        %vm2412 = vc.u32 %v2406, %v2408
        %v2413 = vadd.s32 %v2409, 1
        %v2414 = vsel %vm2412, %v2413, %v2409
        %v2415 = vadd.s32 %v2410, %v2414
        %v2416 = vadd.s32 %v2415, 536870912
        %v2417 = vshrl.u32 %v2416, 30
        %v2418 = vshll.u32 %v2417, 30
        %v2419 = vsub.s32 %v2415, %v2418
        %vm2420 = vcmp.lt.s32.totalorder %v2419, 0
        %v2421 = vsub.s32 0, %v2419
        %v2422 = vsel %vm2420, %v2421, %v2419
        %v2423 = vclz %v2422
        %v2424 = vsub.s32 %v2423, 2
        %vm2425 = vcmp.gt.s32.totalorder 0, %v2424
        %v2426 = vsel %vm2425, 0, %v2424
        %v2427 = vsub.s32 32, %v2426
        %v2428 = vshll.u32 %v2419, %v2426
        %v2429 = vshrl.u32 %v2411, %v2427
        %v2430 = vor.u32 %v2428, %v2429
        %v2431 = vsub.s32 4294967266, %v2426
        %v2432 = vadd.s32 %v2431, 127
        %v2433 = vshll.u32 %v2432, 23
        %v2434 = vor.u32 4788187, %v2433
        %v2435 = vand.u32 2147483647, %v2434
        %v2437 = vcvt.s32.f32 %v2430
        %v2438 = vmul.f32 %v2437, %v2435
        %v2439 = vxor.u32 %v2438, 2147483648
        %v2440 = vsel %vm2357, %v2439, %v2438
        %v2441 = vsub.s32 4, %v2417
        %v2442 = vsel %vm2357, %v2441, %v2417
        %v2443 = vsel %vm2356, %v239, %v2440
        %v2444 = vsel %vm2356, 0, %v2442
        %v2445 = vcosq.f32.pop %v2443
        %v2446 = vsinq.f32.pop %v2443
        %vm2447 = vweird.f32 %v239
        %v2448 = vand.u32 %v2444, 3
        %vm2449 = vcmp.lt.s32.totalorder %v2448, 2
        %vm2450 = vcmp.eq.s32.totalorder %v2448, 0
        %v2451 = vxor.u32 %v2446, 2147483648
        %v2452 = vsel %vm2450, %v2445, %v2451
        %vm2453 = vcmp.eq.s32.totalorder %v2448, 2
        %v2454 = vxor.u32 %v2445, 2147483648
        %v2455 = vsel %vm2453, %v2454, %v2446
        %v2456 = vsel %vm2449, %v2452, %v2455
        %v2457 = vsel %vm2447, nan, %v2456
        %v2458 = vand.u32 2147483647, %v240
        %vm2459 = vcmp.le.f32.partialorder %v2458, 0.7853982
        %vm2460 = vcmp.lt.s32.totalorder %v240, 0
        %v2461 = vand.u32 %v240, 2139095040
        %v2462 = vshrl.u32 %v2461, 23
        %v2463 = vsub.s32 %v2462, 127
        %v2464 = vand.u32 2147483647, %v240
        %v2465 = vand.u32 %v2464, 8388607
        %v2466 = vor.u32 %v2465, 8388608
        %v2467 = vsub.s32 0, %v2466
        %v2468 = vadd.s32 %v2463, 1
        %vm2469 = vcmp.gt.s32.totalorder %v2468, 0
        %v2470 = vsel %vm2469, %v2468, 0
        %v2471 = vshrl.u32 %v2470, 5
        %v2472 = vand.u32 %v2470, 31
        %v2473 = vsub.s32 32, %v2472
        %v2474 = vshrl.u32 683565275, %v2473
        %v2475 = vshll.u32 683565275, %v2472
        %v2476 = vshrl.u32 2475754826, %v2473
        %v2477 = vor.u32 %v2475, %v2476
        %v2478 = vshll.u32 2475754826, %v2472
        %v2479 = vshrl.u32 2131351028, %v2473
        %v2480 = vor.u32 %v2478, %v2479
        %v2481 = vshll.u32 2131351028, %v2472
        %v2482 = vshrl.u32 2102212464, %v2473
        %v2483 = vor.u32 %v2481, %v2482
        %v2484 = vshll.u32 2102212464, %v2472
        %v2485 = vshrl.u32 920167782, %v2473
        %v2486 = vor.u32 %v2484, %v2485
        %v2487 = vshll.u32 920167782, %v2472
        %v2488 = vshrl.u32 1326507024, %v2473
        %v2489 = vor.u32 %v2487, %v2488
        %vm2490 = vcmp.lt.s32.totalorder %v2471, 1
        %vm2491 = vcmp.lt.s32.totalorder %v2471, 2
        %vm2492 = vcmp.lt.s32.totalorder %v2471, 3
        %vm2493 = vcmp.lt.s32.totalorder %v2471, 4
        %v2494 = vsel %vm2490, %v2474, %v2477
        %v2495 = vsel %vm2493, %v2483, 2102212464
        %v2496 = vsel %vm2492, %v2480, %v2495
        %v2497 = vsel %vm2491, %v2494, %v2496
        %v2498 = vsel %vm2490, %v2477, %v2480
        %v2499 = vsel %vm2493, %v2486, 920167782
        %v2500 = vsel %vm2492, %v2483, %v2499
        %v2501 = vsel %vm2491, %v2498, %v2500
        %v2502 = vsel %vm2490, %v2480, %v2483
        %v2503 = vsel %vm2493, %v2489, 1326507024
        %v2504 = vsel %vm2492, %v2486, %v2503
        %v2505 = vsel %vm2491, %v2502, %v2504
        %v2506 = vshll.u32 %v2466, 8
        %v2507 = vmul.u32.u64.compose %v2506, %v2505
        %v2508 = vextract.low.u32 %v2507
        %v2509 = vextract.high.u32 %v2507
        %v2510 = vmul.u32.u64.compose %v2506, %v2501
        %v2511 = vextract.low.u32 %v2510
        %v2512 = vextract.high.u32 %v2510
        %v2513 = vmul.u32 %v2506, %v2497
        %v2514 = vadd.s32 %v2509, %v2511
        %vm2515 = vc.u32 %v2509, %v2511
        %v2516 = vadd.s32 %v2512, 1
        %v2517 = vsel %vm2515, %v2516, %v2512
        %v2518 = vadd.s32 %v2513, %v2517
        %v2519 = vadd.s32 %v2518, 536870912
        %v2520 = vshrl.u32 %v2519, 30
        %v2521 = vshll.u32 %v2520, 30
        %v2522 = vsub.s32 %v2518, %v2521
        %vm2523 = vcmp.lt.s32.totalorder %v2522, 0
        %v2524 = vsub.s32 0, %v2522
        %v2525 = vsel %vm2523, %v2524, %v2522
        %v2526 = vclz %v2525
        %v2527 = vsub.s32 %v2526, 2
        %vm2528 = vcmp.gt.s32.totalorder 0, %v2527
        %v2529 = vsel %vm2528, 0, %v2527
        %v2530 = vsub.s32 32, %v2529
        %v2531 = vshll.u32 %v2522, %v2529
        %v2532 = vshrl.u32 %v2514, %v2530
        %v2533 = vor.u32 %v2531, %v2532
        %v2534 = vsub.s32 4294967266, %v2529
        %v2535 = vadd.s32 %v2534, 127
        %v2536 = vshll.u32 %v2535, 23
        %v2537 = vor.u32 4788187, %v2536
        %v2538 = vand.u32 2147483647, %v2537
        %v2540 = vcvt.s32.f32 %v2533
        %v2541 = vmul.f32 %v2540, %v2538
        %v2542 = vxor.u32 %v2541, 2147483648
        %v2543 = vsel %vm2460, %v2542, %v2541
        %v2544 = vsub.s32 4, %v2520
        %v2545 = vsel %vm2460, %v2544, %v2520
        %v2546 = vsel %vm2459, %v240, %v2543
        %v2547 = vsel %vm2459, 0, %v2545
        %v2548 = vcosq.f32.pop %v2546
        %v2549 = vsinq.f32.pop %v2546
        %vm2550 = vweird.f32 %v240
        %v2551 = vand.u32 %v2547, 3
        %vm2552 = vcmp.lt.s32.totalorder %v2551, 2
        %vm2553 = vcmp.eq.s32.totalorder %v2551, 0
        %v2554 = vxor.u32 %v2549, 2147483648
        %v2555 = vsel %vm2553, %v2548, %v2554
        %vm2556 = vcmp.eq.s32.totalorder %v2551, 2
        %v2557 = vxor.u32 %v2548, 2147483648
        %v2558 = vsel %vm2556, %v2557, %v2549
        %v2559 = vsel %vm2552, %v2555, %v2558
        %v2560 = vsel %vm2550, nan, %v2559
        %v2561 = vand.u32 2147483647, %v241
        %vm2562 = vcmp.le.f32.partialorder %v2561, 0.7853982
        %vm2563 = vcmp.lt.s32.totalorder %v241, 0
        %v2564 = vand.u32 %v241, 2139095040
        %v2565 = vshrl.u32 %v2564, 23
        %v2566 = vsub.s32 %v2565, 127
        %v2567 = vand.u32 2147483647, %v241
        %v2568 = vand.u32 %v2567, 8388607
        %v2569 = vor.u32 %v2568, 8388608
        %v2570 = vsub.s32 0, %v2569
        %v2571 = vadd.s32 %v2566, 1
        %vm2572 = vcmp.gt.s32.totalorder %v2571, 0
        %v2573 = vsel %vm2572, %v2571, 0
        %v2574 = vshrl.u32 %v2573, 5
        %v2575 = vand.u32 %v2573, 31
        %v2576 = vsub.s32 32, %v2575
        %v2577 = vshrl.u32 683565275, %v2576
        %v2578 = vshll.u32 683565275, %v2575
        %v2579 = vshrl.u32 2475754826, %v2576
        %v2580 = vor.u32 %v2578, %v2579
        %v2581 = vshll.u32 2475754826, %v2575
        %v2582 = vshrl.u32 2131351028, %v2576
        %v2583 = vor.u32 %v2581, %v2582
        %v2584 = vshll.u32 2131351028, %v2575
        %v2585 = vshrl.u32 2102212464, %v2576
        %v2586 = vor.u32 %v2584, %v2585
        %v2587 = vshll.u32 2102212464, %v2575
        %v2588 = vshrl.u32 920167782, %v2576
        %v2589 = vor.u32 %v2587, %v2588
        %v2590 = vshll.u32 920167782, %v2575
        %v2591 = vshrl.u32 1326507024, %v2576
        %v2592 = vor.u32 %v2590, %v2591
        %vm2593 = vcmp.lt.s32.totalorder %v2574, 1
        %vm2594 = vcmp.lt.s32.totalorder %v2574, 2
        %vm2595 = vcmp.lt.s32.totalorder %v2574, 3
        %vm2596 = vcmp.lt.s32.totalorder %v2574, 4
        %v2597 = vsel %vm2593, %v2577, %v2580
        %v2598 = vsel %vm2596, %v2586, 2102212464
        %v2599 = vsel %vm2595, %v2583, %v2598
        %v2600 = vsel %vm2594, %v2597, %v2599
        %v2601 = vsel %vm2593, %v2580, %v2583
        %v2602 = vsel %vm2596, %v2589, 920167782
        %v2603 = vsel %vm2595, %v2586, %v2602
        %v2604 = vsel %vm2594, %v2601, %v2603
        %v2605 = vsel %vm2593, %v2583, %v2586
        %v2606 = vsel %vm2596, %v2592, 1326507024
        %v2607 = vsel %vm2595, %v2589, %v2606
        %v2608 = vsel %vm2594, %v2605, %v2607
        %v2609 = vshll.u32 %v2569, 8
        %v2610 = vmul.u32.u64.compose %v2609, %v2608
        %v2611 = vextract.low.u32 %v2610
        %v2612 = vextract.high.u32 %v2610
        %v2613 = vmul.u32.u64.compose %v2609, %v2604
        %v2614 = vextract.low.u32 %v2613
        %v2615 = vextract.high.u32 %v2613
        %v2616 = vmul.u32 %v2609, %v2600
        %v2617 = vadd.s32 %v2612, %v2614
        %vm2618 = vc.u32 %v2612, %v2614
        %v2619 = vadd.s32 %v2615, 1
        %v2620 = vsel %vm2618, %v2619, %v2615
        %v2621 = vadd.s32 %v2616, %v2620
        %v2622 = vadd.s32 %v2621, 536870912
        %v2623 = vshrl.u32 %v2622, 30
        %v2624 = vshll.u32 %v2623, 30
        %v2625 = vsub.s32 %v2621, %v2624
        %vm2626 = vcmp.lt.s32.totalorder %v2625, 0
        %v2627 = vsub.s32 0, %v2625
        %v2628 = vsel %vm2626, %v2627, %v2625
        %v2629 = vclz %v2628
        %v2630 = vsub.s32 %v2629, 2
        %vm2631 = vcmp.gt.s32.totalorder 0, %v2630
        %v2632 = vsel %vm2631, 0, %v2630
        %v2633 = vsub.s32 32, %v2632
        %v2634 = vshll.u32 %v2625, %v2632
        %v2635 = vshrl.u32 %v2617, %v2633
        %v2636 = vor.u32 %v2634, %v2635
        %v2637 = vsub.s32 4294967266, %v2632
        %v2638 = vadd.s32 %v2637, 127
        %v2639 = vshll.u32 %v2638, 23
        %v2640 = vor.u32 4788187, %v2639
        %v2641 = vand.u32 2147483647, %v2640
        %v2643 = vcvt.s32.f32 %v2636
        %v2644 = vmul.f32 %v2643, %v2641
        %v2645 = vxor.u32 %v2644, 2147483648
        %v2646 = vsel %vm2563, %v2645, %v2644
        %v2647 = vsub.s32 4, %v2623
        %v2648 = vsel %vm2563, %v2647, %v2623
        %v2649 = vsel %vm2562, %v241, %v2646
        %v2650 = vsel %vm2562, 0, %v2648
        %v2651 = vcosq.f32.pop %v2649
        %v2652 = vsinq.f32.pop %v2649
        %vm2653 = vweird.f32 %v241
        %v2654 = vand.u32 %v2650, 3
        %vm2655 = vcmp.lt.s32.totalorder %v2654, 2
        %vm2656 = vcmp.eq.s32.totalorder %v2654, 0
        %v2657 = vxor.u32 %v2652, 2147483648
        %v2658 = vsel %vm2656, %v2651, %v2657
        %vm2659 = vcmp.eq.s32.totalorder %v2654, 2
        %v2660 = vxor.u32 %v2651, 2147483648
        %v2661 = vsel %vm2659, %v2660, %v2652
        %v2662 = vsel %vm2655, %v2658, %v2661
        %v2663 = vsel %vm2653, nan, %v2662
        %v2664 = vand.u32 2147483647, %v242
        %vm2665 = vcmp.le.f32.partialorder %v2664, 0.7853982
        %vm2666 = vcmp.lt.s32.totalorder %v242, 0
        %v2667 = vand.u32 %v242, 2139095040
        %v2668 = vshrl.u32 %v2667, 23
        %v2669 = vsub.s32 %v2668, 127
        %v2670 = vand.u32 2147483647, %v242
        %v2671 = vand.u32 %v2670, 8388607
        %v2672 = vor.u32 %v2671, 8388608
        %v2673 = vsub.s32 0, %v2672
        %v2674 = vadd.s32 %v2669, 1
        %vm2675 = vcmp.gt.s32.totalorder %v2674, 0
        %v2676 = vsel %vm2675, %v2674, 0
        %v2677 = vshrl.u32 %v2676, 5
        %v2678 = vand.u32 %v2676, 31
        %v2679 = vsub.s32 32, %v2678
        %v2680 = vshrl.u32 683565275, %v2679
        %v2681 = vshll.u32 683565275, %v2678
        %v2682 = vshrl.u32 2475754826, %v2679
        %v2683 = vor.u32 %v2681, %v2682
        %v2684 = vshll.u32 2475754826, %v2678
        %v2685 = vshrl.u32 2131351028, %v2679
        %v2686 = vor.u32 %v2684, %v2685
        %v2687 = vshll.u32 2131351028, %v2678
        %v2688 = vshrl.u32 2102212464, %v2679
        %v2689 = vor.u32 %v2687, %v2688
        %v2690 = vshll.u32 2102212464, %v2678
        %v2691 = vshrl.u32 920167782, %v2679
        %v2692 = vor.u32 %v2690, %v2691
        %v2693 = vshll.u32 920167782, %v2678
        %v2694 = vshrl.u32 1326507024, %v2679
        %v2695 = vor.u32 %v2693, %v2694
        %vm2696 = vcmp.lt.s32.totalorder %v2677, 1
        %vm2697 = vcmp.lt.s32.totalorder %v2677, 2
        %vm2698 = vcmp.lt.s32.totalorder %v2677, 3
        %vm2699 = vcmp.lt.s32.totalorder %v2677, 4
        %v2700 = vsel %vm2696, %v2680, %v2683
        %v2701 = vsel %vm2699, %v2689, 2102212464
        %v2702 = vsel %vm2698, %v2686, %v2701
        %v2703 = vsel %vm2697, %v2700, %v2702
        %v2704 = vsel %vm2696, %v2683, %v2686
        %v2705 = vsel %vm2699, %v2692, 920167782
        %v2706 = vsel %vm2698, %v2689, %v2705
        %v2707 = vsel %vm2697, %v2704, %v2706
        %v2708 = vsel %vm2696, %v2686, %v2689
        %v2709 = vsel %vm2699, %v2695, 1326507024
        %v2710 = vsel %vm2698, %v2692, %v2709
        %v2711 = vsel %vm2697, %v2708, %v2710
        %v2712 = vshll.u32 %v2672, 8
        %v2713 = vmul.u32.u64.compose %v2712, %v2711
        %v2714 = vextract.low.u32 %v2713
        %v2715 = vextract.high.u32 %v2713
        %v2716 = vmul.u32.u64.compose %v2712, %v2707
        %v2717 = vextract.low.u32 %v2716
        %v2718 = vextract.high.u32 %v2716
        %v2719 = vmul.u32 %v2712, %v2703
        %v2720 = vadd.s32 %v2715, %v2717
        %vm2721 = vc.u32 %v2715, %v2717
        %v2722 = vadd.s32 %v2718, 1
        %v2723 = vsel %vm2721, %v2722, %v2718
        %v2724 = vadd.s32 %v2719, %v2723
        %v2725 = vadd.s32 %v2724, 536870912
        %v2726 = vshrl.u32 %v2725, 30
        %v2727 = vshll.u32 %v2726, 30
        %v2728 = vsub.s32 %v2724, %v2727
        %vm2729 = vcmp.lt.s32.totalorder %v2728, 0
        %v2730 = vsub.s32 0, %v2728
        %v2731 = vsel %vm2729, %v2730, %v2728
        %v2732 = vclz %v2731
        %v2733 = vsub.s32 %v2732, 2
        %vm2734 = vcmp.gt.s32.totalorder 0, %v2733
        %v2735 = vsel %vm2734, 0, %v2733
        %v2736 = vsub.s32 32, %v2735
        %v2737 = vshll.u32 %v2728, %v2735
        %v2738 = vshrl.u32 %v2720, %v2736
        %v2739 = vor.u32 %v2737, %v2738
        %v2740 = vsub.s32 4294967266, %v2735
        %v2741 = vadd.s32 %v2740, 127
        %v2742 = vshll.u32 %v2741, 23
        %v2743 = vor.u32 4788187, %v2742
        %v2744 = vand.u32 2147483647, %v2743
        %v2746 = vcvt.s32.f32 %v2739
        %v2747 = vmul.f32 %v2746, %v2744
        %v2748 = vxor.u32 %v2747, 2147483648
        %v2749 = vsel %vm2666, %v2748, %v2747
        %v2750 = vsub.s32 4, %v2726
        %v2751 = vsel %vm2666, %v2750, %v2726
        %v2752 = vsel %vm2665, %v242, %v2749
        %v2753 = vsel %vm2665, 0, %v2751
        %v2754 = vcosq.f32.pop %v2752
        %v2755 = vsinq.f32.pop %v2752
        %vm2756 = vweird.f32 %v242
        %v2757 = vand.u32 %v2753, 3
        %vm2758 = vcmp.lt.s32.totalorder %v2757, 2
        %vm2759 = vcmp.eq.s32.totalorder %v2757, 0
        %v2760 = vxor.u32 %v2755, 2147483648
        %v2761 = vsel %vm2759, %v2754, %v2760
        %vm2762 = vcmp.eq.s32.totalorder %v2757, 2
        %v2763 = vxor.u32 %v2754, 2147483648
        %v2764 = vsel %vm2762, %v2763, %v2755
        %v2765 = vsel %vm2758, %v2761, %v2764
        %v2766 = vsel %vm2756, nan, %v2765
        %v2767 = vand.u32 2147483647, %v243
        %vm2768 = vcmp.le.f32.partialorder %v2767, 0.7853982
        %vm2769 = vcmp.lt.s32.totalorder %v243, 0
        %v2770 = vand.u32 %v243, 2139095040
        %v2771 = vshrl.u32 %v2770, 23
        %v2772 = vsub.s32 %v2771, 127
        %v2773 = vand.u32 2147483647, %v243
        %v2774 = vand.u32 %v2773, 8388607
        %v2775 = vor.u32 %v2774, 8388608
        %v2776 = vsub.s32 0, %v2775
        %v2777 = vadd.s32 %v2772, 1
        %vm2778 = vcmp.gt.s32.totalorder %v2777, 0
        %v2779 = vsel %vm2778, %v2777, 0
        %v2780 = vshrl.u32 %v2779, 5
        %v2781 = vand.u32 %v2779, 31
        %v2782 = vsub.s32 32, %v2781
        %v2783 = vshrl.u32 683565275, %v2782
        %v2784 = vshll.u32 683565275, %v2781
        %v2785 = vshrl.u32 2475754826, %v2782
        %v2786 = vor.u32 %v2784, %v2785
        %v2787 = vshll.u32 2475754826, %v2781
        %v2788 = vshrl.u32 2131351028, %v2782
        %v2789 = vor.u32 %v2787, %v2788
        %v2790 = vshll.u32 2131351028, %v2781
        %v2791 = vshrl.u32 2102212464, %v2782
        %v2792 = vor.u32 %v2790, %v2791
        %v2793 = vshll.u32 2102212464, %v2781
        %v2794 = vshrl.u32 920167782, %v2782
        %v2795 = vor.u32 %v2793, %v2794
        %v2796 = vshll.u32 920167782, %v2781
        %v2797 = vshrl.u32 1326507024, %v2782
        %v2798 = vor.u32 %v2796, %v2797
        %vm2799 = vcmp.lt.s32.totalorder %v2780, 1
        %vm2800 = vcmp.lt.s32.totalorder %v2780, 2
        %vm2801 = vcmp.lt.s32.totalorder %v2780, 3
        %vm2802 = vcmp.lt.s32.totalorder %v2780, 4
        %v2803 = vsel %vm2799, %v2783, %v2786
        %v2804 = vsel %vm2802, %v2792, 2102212464
        %v2805 = vsel %vm2801, %v2789, %v2804
        %v2806 = vsel %vm2800, %v2803, %v2805
        %v2807 = vsel %vm2799, %v2786, %v2789
        %v2808 = vsel %vm2802, %v2795, 920167782
        %v2809 = vsel %vm2801, %v2792, %v2808
        %v2810 = vsel %vm2800, %v2807, %v2809
        %v2811 = vsel %vm2799, %v2789, %v2792
        %v2812 = vsel %vm2802, %v2798, 1326507024
        %v2813 = vsel %vm2801, %v2795, %v2812
        %v2814 = vsel %vm2800, %v2811, %v2813
        %v2815 = vshll.u32 %v2775, 8
        %v2816 = vmul.u32.u64.compose %v2815, %v2814
        %v2817 = vextract.low.u32 %v2816
        %v2818 = vextract.high.u32 %v2816
        %v2819 = vmul.u32.u64.compose %v2815, %v2810
        %v2820 = vextract.low.u32 %v2819
        %v2821 = vextract.high.u32 %v2819
        %v2822 = vmul.u32 %v2815, %v2806
        %v2823 = vadd.s32 %v2818, %v2820
        %vm2824 = vc.u32 %v2818, %v2820
        %v2825 = vadd.s32 %v2821, 1
        %v2826 = vsel %vm2824, %v2825, %v2821
        %v2827 = vadd.s32 %v2822, %v2826
        %v2828 = vadd.s32 %v2827, 536870912
        %v2829 = vshrl.u32 %v2828, 30
        %v2830 = vshll.u32 %v2829, 30
        %v2831 = vsub.s32 %v2827, %v2830
        %vm2832 = vcmp.lt.s32.totalorder %v2831, 0
        %v2833 = vsub.s32 0, %v2831
        %v2834 = vsel %vm2832, %v2833, %v2831
        %v2835 = vclz %v2834
        %v2836 = vsub.s32 %v2835, 2
        %vm2837 = vcmp.gt.s32.totalorder 0, %v2836
        %v2838 = vsel %vm2837, 0, %v2836
        %v2839 = vsub.s32 32, %v2838
        %v2840 = vshll.u32 %v2831, %v2838
        %v2841 = vshrl.u32 %v2823, %v2839
        %v2842 = vor.u32 %v2840, %v2841
        %v2843 = vsub.s32 4294967266, %v2838
        %v2844 = vadd.s32 %v2843, 127
        %v2845 = vshll.u32 %v2844, 23
        %v2846 = vor.u32 4788187, %v2845
        %v2847 = vand.u32 2147483647, %v2846
        %v2849 = vcvt.s32.f32 %v2842
        %v2850 = vmul.f32 %v2849, %v2847
        %v2851 = vxor.u32 %v2850, 2147483648
        %v2852 = vsel %vm2769, %v2851, %v2850
        %v2853 = vsub.s32 4, %v2829
        %v2854 = vsel %vm2769, %v2853, %v2829
        %v2855 = vsel %vm2768, %v243, %v2852
        %v2856 = vsel %vm2768, 0, %v2854
        %v2857 = vcosq.f32.pop %v2855
        %v2858 = vsinq.f32.pop %v2855
        %vm2859 = vweird.f32 %v243
        %v2860 = vand.u32 %v2856, 3
        %vm2861 = vcmp.lt.s32.totalorder %v2860, 2
        %vm2862 = vcmp.eq.s32.totalorder %v2860, 0
        %v2863 = vxor.u32 %v2858, 2147483648
        %v2864 = vsel %vm2862, %v2857, %v2863
        %vm2865 = vcmp.eq.s32.totalorder %v2860, 2
        %v2866 = vxor.u32 %v2857, 2147483648
        %v2867 = vsel %vm2865, %v2866, %v2858
        %v2868 = vsel %vm2861, %v2864, %v2867
        %v2869 = vsel %vm2859, nan, %v2868
        %v2870 = vand.u32 2147483647, %v244
        %vm2871 = vcmp.le.f32.partialorder %v2870, 0.7853982
        %vm2872 = vcmp.lt.s32.totalorder %v244, 0
        %v2873 = vand.u32 %v244, 2139095040
        %v2874 = vshrl.u32 %v2873, 23
        %v2875 = vsub.s32 %v2874, 127
        %v2876 = vand.u32 2147483647, %v244
        %v2877 = vand.u32 %v2876, 8388607
        %v2878 = vor.u32 %v2877, 8388608
        %v2879 = vsub.s32 0, %v2878
        %v2880 = vadd.s32 %v2875, 1
        %vm2881 = vcmp.gt.s32.totalorder %v2880, 0
        %v2882 = vsel %vm2881, %v2880, 0
        %v2883 = vshrl.u32 %v2882, 5
        %v2884 = vand.u32 %v2882, 31
        %v2885 = vsub.s32 32, %v2884
        %v2886 = vshrl.u32 683565275, %v2885
        %v2887 = vshll.u32 683565275, %v2884
        %v2888 = vshrl.u32 2475754826, %v2885
        %v2889 = vor.u32 %v2887, %v2888
        %v2890 = vshll.u32 2475754826, %v2884
        %v2891 = vshrl.u32 2131351028, %v2885
        %v2892 = vor.u32 %v2890, %v2891
        %v2893 = vshll.u32 2131351028, %v2884
        %v2894 = vshrl.u32 2102212464, %v2885
        %v2895 = vor.u32 %v2893, %v2894
        %v2896 = vshll.u32 2102212464, %v2884
        %v2897 = vshrl.u32 920167782, %v2885
        %v2898 = vor.u32 %v2896, %v2897
        %v2899 = vshll.u32 920167782, %v2884
        %v2900 = vshrl.u32 1326507024, %v2885
        %v2901 = vor.u32 %v2899, %v2900
        %vm2902 = vcmp.lt.s32.totalorder %v2883, 1
        %vm2903 = vcmp.lt.s32.totalorder %v2883, 2
        %vm2904 = vcmp.lt.s32.totalorder %v2883, 3
        %vm2905 = vcmp.lt.s32.totalorder %v2883, 4
        %v2906 = vsel %vm2902, %v2886, %v2889
        %v2907 = vsel %vm2905, %v2895, 2102212464
        %v2908 = vsel %vm2904, %v2892, %v2907
        %v2909 = vsel %vm2903, %v2906, %v2908
        %v2910 = vsel %vm2902, %v2889, %v2892
        %v2911 = vsel %vm2905, %v2898, 920167782
        %v2912 = vsel %vm2904, %v2895, %v2911
        %v2913 = vsel %vm2903, %v2910, %v2912
        %v2914 = vsel %vm2902, %v2892, %v2895
        %v2915 = vsel %vm2905, %v2901, 1326507024
        %v2916 = vsel %vm2904, %v2898, %v2915
        %v2917 = vsel %vm2903, %v2914, %v2916
        %v2918 = vshll.u32 %v2878, 8
        %v2919 = vmul.u32.u64.compose %v2918, %v2917
        %v2920 = vextract.low.u32 %v2919
        %v2921 = vextract.high.u32 %v2919
        %v2922 = vmul.u32.u64.compose %v2918, %v2913
        %v2923 = vextract.low.u32 %v2922
        %v2924 = vextract.high.u32 %v2922
        %v2925 = vmul.u32 %v2918, %v2909
        %v2926 = vadd.s32 %v2921, %v2923
        %vm2927 = vc.u32 %v2921, %v2923
        %v2928 = vadd.s32 %v2924, 1
        %v2929 = vsel %vm2927, %v2928, %v2924
        %v2930 = vadd.s32 %v2925, %v2929
        %v2931 = vadd.s32 %v2930, 536870912
        %v2932 = vshrl.u32 %v2931, 30
        %v2933 = vshll.u32 %v2932, 30
        %v2934 = vsub.s32 %v2930, %v2933
        %vm2935 = vcmp.lt.s32.totalorder %v2934, 0
        %v2936 = vsub.s32 0, %v2934
        %v2937 = vsel %vm2935, %v2936, %v2934
        %v2938 = vclz %v2937
        %v2939 = vsub.s32 %v2938, 2
        %vm2940 = vcmp.gt.s32.totalorder 0, %v2939
        %v2941 = vsel %vm2940, 0, %v2939
        %v2942 = vsub.s32 32, %v2941
        %v2943 = vshll.u32 %v2934, %v2941
        %v2944 = vshrl.u32 %v2926, %v2942
        %v2945 = vor.u32 %v2943, %v2944
        %v2946 = vsub.s32 4294967266, %v2941
        %v2947 = vadd.s32 %v2946, 127
        %v2948 = vshll.u32 %v2947, 23
        %v2949 = vor.u32 4788187, %v2948
        %v2950 = vand.u32 2147483647, %v2949
        %v2952 = vcvt.s32.f32 %v2945
        %v2953 = vmul.f32 %v2952, %v2950
        %v2954 = vxor.u32 %v2953, 2147483648
        %v2955 = vsel %vm2872, %v2954, %v2953
        %v2956 = vsub.s32 4, %v2932
        %v2957 = vsel %vm2872, %v2956, %v2932
        %v2958 = vsel %vm2871, %v244, %v2955
        %v2959 = vsel %vm2871, 0, %v2957
        %v2960 = vcosq.f32.pop %v2958
        %v2961 = vsinq.f32.pop %v2958
        %vm2962 = vweird.f32 %v244
        %v2963 = vand.u32 %v2959, 3
        %vm2964 = vcmp.lt.s32.totalorder %v2963, 2
        %vm2965 = vcmp.eq.s32.totalorder %v2963, 0
        %v2966 = vxor.u32 %v2961, 2147483648
        %v2967 = vsel %vm2965, %v2960, %v2966
        %vm2968 = vcmp.eq.s32.totalorder %v2963, 2
        %v2969 = vxor.u32 %v2960, 2147483648
        %v2970 = vsel %vm2968, %v2969, %v2961
        %v2971 = vsel %vm2964, %v2967, %v2970
        %v2972 = vsel %vm2962, nan, %v2971
        %v2973 = vand.u32 2147483647, %v245
        %vm2974 = vcmp.le.f32.partialorder %v2973, 0.7853982
        %vm2975 = vcmp.lt.s32.totalorder %v245, 0
        %v2976 = vand.u32 %v245, 2139095040
        %v2977 = vshrl.u32 %v2976, 23
        %v2978 = vsub.s32 %v2977, 127
        %v2979 = vand.u32 2147483647, %v245
        %v2980 = vand.u32 %v2979, 8388607
        %v2981 = vor.u32 %v2980, 8388608
        %v2982 = vsub.s32 0, %v2981
        %v2983 = vadd.s32 %v2978, 1
        %vm2984 = vcmp.gt.s32.totalorder %v2983, 0
        %v2985 = vsel %vm2984, %v2983, 0
        %v2986 = vshrl.u32 %v2985, 5
        %v2987 = vand.u32 %v2985, 31
        %v2988 = vsub.s32 32, %v2987
        %v2989 = vshrl.u32 683565275, %v2988
        %v2990 = vshll.u32 683565275, %v2987
        %v2991 = vshrl.u32 2475754826, %v2988
        %v2992 = vor.u32 %v2990, %v2991
        %v2993 = vshll.u32 2475754826, %v2987
        %v2994 = vshrl.u32 2131351028, %v2988
        %v2995 = vor.u32 %v2993, %v2994
        %v2996 = vshll.u32 2131351028, %v2987
        %v2997 = vshrl.u32 2102212464, %v2988
        %v2998 = vor.u32 %v2996, %v2997
        %v2999 = vshll.u32 2102212464, %v2987
        %v3000 = vshrl.u32 920167782, %v2988
        %v3001 = vor.u32 %v2999, %v3000
        %v3002 = vshll.u32 920167782, %v2987
        %v3003 = vshrl.u32 1326507024, %v2988
        %v3004 = vor.u32 %v3002, %v3003
        %vm3005 = vcmp.lt.s32.totalorder %v2986, 1
        %vm3006 = vcmp.lt.s32.totalorder %v2986, 2
        %vm3007 = vcmp.lt.s32.totalorder %v2986, 3
        %vm3008 = vcmp.lt.s32.totalorder %v2986, 4
        %v3009 = vsel %vm3005, %v2989, %v2992
        %v3010 = vsel %vm3008, %v2998, 2102212464
        %v3011 = vsel %vm3007, %v2995, %v3010
        %v3012 = vsel %vm3006, %v3009, %v3011
        %v3013 = vsel %vm3005, %v2992, %v2995
        %v3014 = vsel %vm3008, %v3001, 920167782
        %v3015 = vsel %vm3007, %v2998, %v3014
        %v3016 = vsel %vm3006, %v3013, %v3015
        %v3017 = vsel %vm3005, %v2995, %v2998
        %v3018 = vsel %vm3008, %v3004, 1326507024
        %v3019 = vsel %vm3007, %v3001, %v3018
        %v3020 = vsel %vm3006, %v3017, %v3019
        %v3021 = vshll.u32 %v2981, 8
        %v3022 = vmul.u32.u64.compose %v3021, %v3020
        %v3023 = vextract.low.u32 %v3022
        %v3024 = vextract.high.u32 %v3022
        %v3025 = vmul.u32.u64.compose %v3021, %v3016
        %v3026 = vextract.low.u32 %v3025
        %v3027 = vextract.high.u32 %v3025
        %v3028 = vmul.u32 %v3021, %v3012
        %v3029 = vadd.s32 %v3024, %v3026
        %vm3030 = vc.u32 %v3024, %v3026
        %v3031 = vadd.s32 %v3027, 1
        %v3032 = vsel %vm3030, %v3031, %v3027
        %v3033 = vadd.s32 %v3028, %v3032
        %v3034 = vadd.s32 %v3033, 536870912
        %v3035 = vshrl.u32 %v3034, 30
        %v3036 = vshll.u32 %v3035, 30
        %v3037 = vsub.s32 %v3033, %v3036
        %vm3038 = vcmp.lt.s32.totalorder %v3037, 0
        %v3039 = vsub.s32 0, %v3037
        %v3040 = vsel %vm3038, %v3039, %v3037
        %v3041 = vclz %v3040
        %v3042 = vsub.s32 %v3041, 2
        %vm3043 = vcmp.gt.s32.totalorder 0, %v3042
        %v3044 = vsel %vm3043, 0, %v3042
        %v3045 = vsub.s32 32, %v3044
        %v3046 = vshll.u32 %v3037, %v3044
        %v3047 = vshrl.u32 %v3029, %v3045
        %v3048 = vor.u32 %v3046, %v3047
        %v3049 = vsub.s32 4294967266, %v3044
        %v3050 = vadd.s32 %v3049, 127
        %v3051 = vshll.u32 %v3050, 23
        %v3052 = vor.u32 4788187, %v3051
        %v3053 = vand.u32 2147483647, %v3052
        %v3055 = vcvt.s32.f32 %v3048
        %v3056 = vmul.f32 %v3055, %v3053
        %v3057 = vxor.u32 %v3056, 2147483648
        %v3058 = vsel %vm2975, %v3057, %v3056
        %v3059 = vsub.s32 4, %v3035
        %v3060 = vsel %vm2975, %v3059, %v3035
        %v3061 = vsel %vm2974, %v245, %v3058
        %v3062 = vsel %vm2974, 0, %v3060
        %v3063 = vcosq.f32.pop %v3061
        %v3064 = vsinq.f32.pop %v3061
        %vm3065 = vweird.f32 %v245
        %v3066 = vand.u32 %v3062, 3
        %vm3067 = vcmp.lt.s32.totalorder %v3066, 2
        %vm3068 = vcmp.eq.s32.totalorder %v3066, 0
        %v3069 = vxor.u32 %v3064, 2147483648
        %v3070 = vsel %vm3068, %v3063, %v3069
        %vm3071 = vcmp.eq.s32.totalorder %v3066, 2
        %v3072 = vxor.u32 %v3063, 2147483648
        %v3073 = vsel %vm3071, %v3072, %v3064
        %v3074 = vsel %vm3067, %v3070, %v3073
        %v3075 = vsel %vm3065, nan, %v3074
        %v3076 = vand.u32 2147483647, %v246
        %vm3077 = vcmp.le.f32.partialorder %v3076, 0.7853982
        %vm3078 = vcmp.lt.s32.totalorder %v246, 0
        %v3079 = vand.u32 %v246, 2139095040
        %v3080 = vshrl.u32 %v3079, 23
        %v3081 = vsub.s32 %v3080, 127
        %v3082 = vand.u32 2147483647, %v246
        %v3083 = vand.u32 %v3082, 8388607
        %v3084 = vor.u32 %v3083, 8388608
        %v3085 = vsub.s32 0, %v3084
        %v3086 = vadd.s32 %v3081, 1
        %vm3087 = vcmp.gt.s32.totalorder %v3086, 0
        %v3088 = vsel %vm3087, %v3086, 0
        %v3089 = vshrl.u32 %v3088, 5
        %v3090 = vand.u32 %v3088, 31
        %v3091 = vsub.s32 32, %v3090
        %v3092 = vshrl.u32 683565275, %v3091
        %v3093 = vshll.u32 683565275, %v3090
        %v3094 = vshrl.u32 2475754826, %v3091
        %v3095 = vor.u32 %v3093, %v3094
        %v3096 = vshll.u32 2475754826, %v3090
        %v3097 = vshrl.u32 2131351028, %v3091
        %v3098 = vor.u32 %v3096, %v3097
        %v3099 = vshll.u32 2131351028, %v3090
        %v3100 = vshrl.u32 2102212464, %v3091
        %v3101 = vor.u32 %v3099, %v3100
        %v3102 = vshll.u32 2102212464, %v3090
        %v3103 = vshrl.u32 920167782, %v3091
        %v3104 = vor.u32 %v3102, %v3103
        %v3105 = vshll.u32 920167782, %v3090
        %v3106 = vshrl.u32 1326507024, %v3091
        %v3107 = vor.u32 %v3105, %v3106
        %vm3108 = vcmp.lt.s32.totalorder %v3089, 1
        %vm3109 = vcmp.lt.s32.totalorder %v3089, 2
        %vm3110 = vcmp.lt.s32.totalorder %v3089, 3
        %vm3111 = vcmp.lt.s32.totalorder %v3089, 4
        %v3112 = vsel %vm3108, %v3092, %v3095
        %v3113 = vsel %vm3111, %v3101, 2102212464
        %v3114 = vsel %vm3110, %v3098, %v3113
        %v3115 = vsel %vm3109, %v3112, %v3114
        %v3116 = vsel %vm3108, %v3095, %v3098
        %v3117 = vsel %vm3111, %v3104, 920167782
        %v3118 = vsel %vm3110, %v3101, %v3117
        %v3119 = vsel %vm3109, %v3116, %v3118
        %v3120 = vsel %vm3108, %v3098, %v3101
        %v3121 = vsel %vm3111, %v3107, 1326507024
        %v3122 = vsel %vm3110, %v3104, %v3121
        %v3123 = vsel %vm3109, %v3120, %v3122
        %v3124 = vshll.u32 %v3084, 8
        %v3125 = vmul.u32.u64.compose %v3124, %v3123
        %v3126 = vextract.low.u32 %v3125
        %v3127 = vextract.high.u32 %v3125
        %v3128 = vmul.u32.u64.compose %v3124, %v3119
        %v3129 = vextract.low.u32 %v3128
        %v3130 = vextract.high.u32 %v3128
        %v3131 = vmul.u32 %v3124, %v3115
        %v3132 = vadd.s32 %v3127, %v3129
        %vm3133 = vc.u32 %v3127, %v3129
        %v3134 = vadd.s32 %v3130, 1
        %v3135 = vsel %vm3133, %v3134, %v3130
        %v3136 = vadd.s32 %v3131, %v3135
        %v3137 = vadd.s32 %v3136, 536870912
        %v3138 = vshrl.u32 %v3137, 30
        %v3139 = vshll.u32 %v3138, 30
        %v3140 = vsub.s32 %v3136, %v3139
        %vm3141 = vcmp.lt.s32.totalorder %v3140, 0
        %v3142 = vsub.s32 0, %v3140
        %v3143 = vsel %vm3141, %v3142, %v3140
        %v3144 = vclz %v3143
        %v3145 = vsub.s32 %v3144, 2
        %vm3146 = vcmp.gt.s32.totalorder 0, %v3145
        %v3147 = vsel %vm3146, 0, %v3145
        %v3148 = vsub.s32 32, %v3147
        %v3149 = vshll.u32 %v3140, %v3147
        %v3150 = vshrl.u32 %v3132, %v3148
        %v3151 = vor.u32 %v3149, %v3150
        %v3152 = vsub.s32 4294967266, %v3147
        %v3153 = vadd.s32 %v3152, 127
        %v3154 = vshll.u32 %v3153, 23
        %v3155 = vor.u32 4788187, %v3154
        %v3156 = vand.u32 2147483647, %v3155
        %v3158 = vcvt.s32.f32 %v3151
        %v3159 = vmul.f32 %v3158, %v3156
        %v3160 = vxor.u32 %v3159, 2147483648
        %v3161 = vsel %vm3078, %v3160, %v3159
        %v3162 = vsub.s32 4, %v3138
        %v3163 = vsel %vm3078, %v3162, %v3138
        %v3164 = vsel %vm3077, %v246, %v3161
        %v3165 = vsel %vm3077, 0, %v3163
        %v3166 = vcosq.f32.pop %v3164
        %v3167 = vsinq.f32.pop %v3164
        %vm3168 = vweird.f32 %v246
        %v3169 = vand.u32 %v3165, 3
        %vm3170 = vcmp.lt.s32.totalorder %v3169, 2
        %vm3171 = vcmp.eq.s32.totalorder %v3169, 0
        %v3172 = vxor.u32 %v3167, 2147483648
        %v3173 = vsel %vm3171, %v3166, %v3172
        %vm3174 = vcmp.eq.s32.totalorder %v3169, 2
        %v3175 = vxor.u32 %v3166, 2147483648
        %v3176 = vsel %vm3174, %v3175, %v3167
        %v3177 = vsel %vm3170, %v3173, %v3176
        %v3178 = vsel %vm3168, nan, %v3177
        %v3179 = vand.u32 2147483647, %v247
        %vm3180 = vcmp.le.f32.partialorder %v3179, 0.7853982
        %vm3181 = vcmp.lt.s32.totalorder %v247, 0
        %v3182 = vand.u32 %v247, 2139095040
        %v3183 = vshrl.u32 %v3182, 23
        %v3184 = vsub.s32 %v3183, 127
        %v3185 = vand.u32 2147483647, %v247
        %v3186 = vand.u32 %v3185, 8388607
        %v3187 = vor.u32 %v3186, 8388608
        %v3188 = vsub.s32 0, %v3187
        %v3189 = vadd.s32 %v3184, 1
        %vm3190 = vcmp.gt.s32.totalorder %v3189, 0
        %v3191 = vsel %vm3190, %v3189, 0
        %v3192 = vshrl.u32 %v3191, 5
        %v3193 = vand.u32 %v3191, 31
        %v3194 = vsub.s32 32, %v3193
        %v3195 = vshrl.u32 683565275, %v3194
        %v3196 = vshll.u32 683565275, %v3193
        %v3197 = vshrl.u32 2475754826, %v3194
        %v3198 = vor.u32 %v3196, %v3197
        %v3199 = vshll.u32 2475754826, %v3193
        %v3200 = vshrl.u32 2131351028, %v3194
        %v3201 = vor.u32 %v3199, %v3200
        %v3202 = vshll.u32 2131351028, %v3193
        %v3203 = vshrl.u32 2102212464, %v3194
        %v3204 = vor.u32 %v3202, %v3203
        %v3205 = vshll.u32 2102212464, %v3193
        %v3206 = vshrl.u32 920167782, %v3194
        %v3207 = vor.u32 %v3205, %v3206
        %v3208 = vshll.u32 920167782, %v3193
        %v3209 = vshrl.u32 1326507024, %v3194
        %v3210 = vor.u32 %v3208, %v3209
        %vm3211 = vcmp.lt.s32.totalorder %v3192, 1
        %vm3212 = vcmp.lt.s32.totalorder %v3192, 2
        %vm3213 = vcmp.lt.s32.totalorder %v3192, 3
        %vm3214 = vcmp.lt.s32.totalorder %v3192, 4
        %v3215 = vsel %vm3211, %v3195, %v3198
        %v3216 = vsel %vm3214, %v3204, 2102212464
        %v3217 = vsel %vm3213, %v3201, %v3216
        %v3218 = vsel %vm3212, %v3215, %v3217
        %v3219 = vsel %vm3211, %v3198, %v3201
        %v3220 = vsel %vm3214, %v3207, 920167782
        %v3221 = vsel %vm3213, %v3204, %v3220
        %v3222 = vsel %vm3212, %v3219, %v3221
        %v3223 = vsel %vm3211, %v3201, %v3204
        %v3224 = vsel %vm3214, %v3210, 1326507024
        %v3225 = vsel %vm3213, %v3207, %v3224
        %v3226 = vsel %vm3212, %v3223, %v3225
        %v3227 = vshll.u32 %v3187, 8
        %v3228 = vmul.u32.u64.compose %v3227, %v3226
        %v3229 = vextract.low.u32 %v3228
        %v3230 = vextract.high.u32 %v3228
        %v3231 = vmul.u32.u64.compose %v3227, %v3222
        %v3232 = vextract.low.u32 %v3231
        %v3233 = vextract.high.u32 %v3231
        %v3234 = vmul.u32 %v3227, %v3218
        %v3235 = vadd.s32 %v3230, %v3232
        %vm3236 = vc.u32 %v3230, %v3232
        %v3237 = vadd.s32 %v3233, 1
        %v3238 = vsel %vm3236, %v3237, %v3233
        %v3239 = vadd.s32 %v3234, %v3238
        %v3240 = vadd.s32 %v3239, 536870912
        %v3241 = vshrl.u32 %v3240, 30
        %v3242 = vshll.u32 %v3241, 30
        %v3243 = vsub.s32 %v3239, %v3242
        %vm3244 = vcmp.lt.s32.totalorder %v3243, 0
        %v3245 = vsub.s32 0, %v3243
        %v3246 = vsel %vm3244, %v3245, %v3243
        %v3247 = vclz %v3246
        %v3248 = vsub.s32 %v3247, 2
        %vm3249 = vcmp.gt.s32.totalorder 0, %v3248
        %v3250 = vsel %vm3249, 0, %v3248
        %v3251 = vsub.s32 32, %v3250
        %v3252 = vshll.u32 %v3243, %v3250
        %v3253 = vshrl.u32 %v3235, %v3251
        %v3254 = vor.u32 %v3252, %v3253
        %v3255 = vsub.s32 4294967266, %v3250
        %v3256 = vadd.s32 %v3255, 127
        %v3257 = vshll.u32 %v3256, 23
        %v3258 = vor.u32 4788187, %v3257
        %v3259 = vand.u32 2147483647, %v3258
        %v3261 = vcvt.s32.f32 %v3254
        %v3262 = vmul.f32 %v3261, %v3259
        %v3263 = vxor.u32 %v3262, 2147483648
        %v3264 = vsel %vm3181, %v3263, %v3262
        %v3265 = vsub.s32 4, %v3241
        %v3266 = vsel %vm3181, %v3265, %v3241
        %v3267 = vsel %vm3180, %v247, %v3264
        %v3268 = vsel %vm3180, 0, %v3266
        %v3269 = vcosq.f32.pop %v3267
        %v3270 = vsinq.f32.pop %v3267
        %vm3271 = vweird.f32 %v247
        %v3272 = vand.u32 %v3268, 3
        %vm3273 = vcmp.lt.s32.totalorder %v3272, 2
        %vm3274 = vcmp.eq.s32.totalorder %v3272, 0
        %v3275 = vxor.u32 %v3270, 2147483648
        %v3276 = vsel %vm3274, %v3269, %v3275
        %vm3277 = vcmp.eq.s32.totalorder %v3272, 2
        %v3278 = vxor.u32 %v3269, 2147483648
        %v3279 = vsel %vm3277, %v3278, %v3270
        %v3280 = vsel %vm3273, %v3276, %v3279
        %v3281 = vsel %vm3271, nan, %v3280
        %v3282 = vand.u32 2147483647, %v248
        %vm3283 = vcmp.le.f32.partialorder %v3282, 0.7853982
        %vm3284 = vcmp.lt.s32.totalorder %v248, 0
        %v3285 = vand.u32 %v248, 2139095040
        %v3286 = vshrl.u32 %v3285, 23
        %v3287 = vsub.s32 %v3286, 127
        %v3288 = vand.u32 2147483647, %v248
        %v3289 = vand.u32 %v3288, 8388607
        %v3290 = vor.u32 %v3289, 8388608
        %v3291 = vsub.s32 0, %v3290
        %v3292 = vadd.s32 %v3287, 1
        %vm3293 = vcmp.gt.s32.totalorder %v3292, 0
        %v3294 = vsel %vm3293, %v3292, 0
        %v3295 = vshrl.u32 %v3294, 5
        %v3296 = vand.u32 %v3294, 31
        %v3297 = vsub.s32 32, %v3296
        %v3298 = vshrl.u32 683565275, %v3297
        %v3299 = vshll.u32 683565275, %v3296
        %v3300 = vshrl.u32 2475754826, %v3297
        %v3301 = vor.u32 %v3299, %v3300
        %v3302 = vshll.u32 2475754826, %v3296
        %v3303 = vshrl.u32 2131351028, %v3297
        %v3304 = vor.u32 %v3302, %v3303
        %v3305 = vshll.u32 2131351028, %v3296
        %v3306 = vshrl.u32 2102212464, %v3297
        %v3307 = vor.u32 %v3305, %v3306
        %v3308 = vshll.u32 2102212464, %v3296
        %v3309 = vshrl.u32 920167782, %v3297
        %v3310 = vor.u32 %v3308, %v3309
        %v3311 = vshll.u32 920167782, %v3296
        %v3312 = vshrl.u32 1326507024, %v3297
        %v3313 = vor.u32 %v3311, %v3312
        %vm3314 = vcmp.lt.s32.totalorder %v3295, 1
        %vm3315 = vcmp.lt.s32.totalorder %v3295, 2
        %vm3316 = vcmp.lt.s32.totalorder %v3295, 3
        %vm3317 = vcmp.lt.s32.totalorder %v3295, 4
        %v3318 = vsel %vm3314, %v3298, %v3301
        %v3319 = vsel %vm3317, %v3307, 2102212464
        %v3320 = vsel %vm3316, %v3304, %v3319
        %v3321 = vsel %vm3315, %v3318, %v3320
        %v3322 = vsel %vm3314, %v3301, %v3304
        %v3323 = vsel %vm3317, %v3310, 920167782
        %v3324 = vsel %vm3316, %v3307, %v3323
        %v3325 = vsel %vm3315, %v3322, %v3324
        %v3326 = vsel %vm3314, %v3304, %v3307
        %v3327 = vsel %vm3317, %v3313, 1326507024
        %v3328 = vsel %vm3316, %v3310, %v3327
        %v3329 = vsel %vm3315, %v3326, %v3328
        %v3330 = vshll.u32 %v3290, 8
        %v3331 = vmul.u32.u64.compose %v3330, %v3329
        %v3332 = vextract.low.u32 %v3331
        %v3333 = vextract.high.u32 %v3331
        %v3334 = vmul.u32.u64.compose %v3330, %v3325
        %v3335 = vextract.low.u32 %v3334
        %v3336 = vextract.high.u32 %v3334
        %v3337 = vmul.u32 %v3330, %v3321
        %v3338 = vadd.s32 %v3333, %v3335
        %vm3339 = vc.u32 %v3333, %v3335
        %v3340 = vadd.s32 %v3336, 1
        %v3341 = vsel %vm3339, %v3340, %v3336
        %v3342 = vadd.s32 %v3337, %v3341
        %v3343 = vadd.s32 %v3342, 536870912
        %v3344 = vshrl.u32 %v3343, 30
        %v3345 = vshll.u32 %v3344, 30
        %v3346 = vsub.s32 %v3342, %v3345
        %vm3347 = vcmp.lt.s32.totalorder %v3346, 0
        %v3348 = vsub.s32 0, %v3346
        %v3349 = vsel %vm3347, %v3348, %v3346
        %v3350 = vclz %v3349
        %v3351 = vsub.s32 %v3350, 2
        %vm3352 = vcmp.gt.s32.totalorder 0, %v3351
        %v3353 = vsel %vm3352, 0, %v3351
        %v3354 = vsub.s32 32, %v3353
        %v3355 = vshll.u32 %v3346, %v3353
        %v3356 = vshrl.u32 %v3338, %v3354
        %v3357 = vor.u32 %v3355, %v3356
        %v3358 = vsub.s32 4294967266, %v3353
        %v3359 = vadd.s32 %v3358, 127
        %v3360 = vshll.u32 %v3359, 23
        %v3361 = vor.u32 4788187, %v3360
        %v3362 = vand.u32 2147483647, %v3361
        %v3364 = vcvt.s32.f32 %v3357
        %v3365 = vmul.f32 %v3364, %v3362
        %v3366 = vxor.u32 %v3365, 2147483648
        %v3367 = vsel %vm3284, %v3366, %v3365
        %v3368 = vsub.s32 4, %v3344
        %v3369 = vsel %vm3284, %v3368, %v3344
        %v3370 = vsel %vm3283, %v248, %v3367
        %v3371 = vsel %vm3283, 0, %v3369
        %v3372 = vcosq.f32.pop %v3370
        %v3373 = vsinq.f32.pop %v3370
        %vm3374 = vweird.f32 %v248
        %v3375 = vand.u32 %v3371, 3
        %vm3376 = vcmp.lt.s32.totalorder %v3375, 2
        %vm3377 = vcmp.eq.s32.totalorder %v3375, 0
        %v3378 = vxor.u32 %v3373, 2147483648
        %v3379 = vsel %vm3377, %v3372, %v3378
        %vm3380 = vcmp.eq.s32.totalorder %v3375, 2
        %v3381 = vxor.u32 %v3372, 2147483648
        %v3382 = vsel %vm3380, %v3381, %v3373
        %v3383 = vsel %vm3376, %v3379, %v3382
        %v3384 = vsel %vm3374, nan, %v3383
        %v3385 = vand.u32 2147483647, %v249
        %vm3386 = vcmp.le.f32.partialorder %v3385, 0.7853982
        %vm3387 = vcmp.lt.s32.totalorder %v249, 0
        %v3388 = vand.u32 %v249, 2139095040
        %v3389 = vshrl.u32 %v3388, 23
        %v3390 = vsub.s32 %v3389, 127
        %v3391 = vand.u32 2147483647, %v249
        %v3392 = vand.u32 %v3391, 8388607
        %v3393 = vor.u32 %v3392, 8388608
        %v3394 = vsub.s32 0, %v3393
        %v3395 = vadd.s32 %v3390, 1
        %vm3396 = vcmp.gt.s32.totalorder %v3395, 0
        %v3397 = vsel %vm3396, %v3395, 0
        %v3398 = vshrl.u32 %v3397, 5
        %v3399 = vand.u32 %v3397, 31
        %v3400 = vsub.s32 32, %v3399
        %v3401 = vshrl.u32 683565275, %v3400
        %v3402 = vshll.u32 683565275, %v3399
        %v3403 = vshrl.u32 2475754826, %v3400
        %v3404 = vor.u32 %v3402, %v3403
        %v3405 = vshll.u32 2475754826, %v3399
        %v3406 = vshrl.u32 2131351028, %v3400
        %v3407 = vor.u32 %v3405, %v3406
        %v3408 = vshll.u32 2131351028, %v3399
        %v3409 = vshrl.u32 2102212464, %v3400
        %v3410 = vor.u32 %v3408, %v3409
        %v3411 = vshll.u32 2102212464, %v3399
        %v3412 = vshrl.u32 920167782, %v3400
        %v3413 = vor.u32 %v3411, %v3412
        %v3414 = vshll.u32 920167782, %v3399
        %v3415 = vshrl.u32 1326507024, %v3400
        %v3416 = vor.u32 %v3414, %v3415
        %vm3417 = vcmp.lt.s32.totalorder %v3398, 1
        %vm3418 = vcmp.lt.s32.totalorder %v3398, 2
        %vm3419 = vcmp.lt.s32.totalorder %v3398, 3
        %vm3420 = vcmp.lt.s32.totalorder %v3398, 4
        %v3421 = vsel %vm3417, %v3401, %v3404
        %v3422 = vsel %vm3420, %v3410, 2102212464
        %v3423 = vsel %vm3419, %v3407, %v3422
        %v3424 = vsel %vm3418, %v3421, %v3423
        %v3425 = vsel %vm3417, %v3404, %v3407
        %v3426 = vsel %vm3420, %v3413, 920167782
        %v3427 = vsel %vm3419, %v3410, %v3426
        %v3428 = vsel %vm3418, %v3425, %v3427
        %v3429 = vsel %vm3417, %v3407, %v3410
        %v3430 = vsel %vm3420, %v3416, 1326507024
        %v3431 = vsel %vm3419, %v3413, %v3430
        %v3432 = vsel %vm3418, %v3429, %v3431
        %v3433 = vshll.u32 %v3393, 8
        %v3434 = vmul.u32.u64.compose %v3433, %v3432
        %v3435 = vextract.low.u32 %v3434
        %v3436 = vextract.high.u32 %v3434
        %v3437 = vmul.u32.u64.compose %v3433, %v3428
        %v3438 = vextract.low.u32 %v3437
        %v3439 = vextract.high.u32 %v3437
        %v3440 = vmul.u32 %v3433, %v3424
        %v3441 = vadd.s32 %v3436, %v3438
        %vm3442 = vc.u32 %v3436, %v3438
        %v3443 = vadd.s32 %v3439, 1
        %v3444 = vsel %vm3442, %v3443, %v3439
        %v3445 = vadd.s32 %v3440, %v3444
        %v3446 = vadd.s32 %v3445, 536870912
        %v3447 = vshrl.u32 %v3446, 30
        %v3448 = vshll.u32 %v3447, 30
        %v3449 = vsub.s32 %v3445, %v3448
        %vm3450 = vcmp.lt.s32.totalorder %v3449, 0
        %v3451 = vsub.s32 0, %v3449
        %v3452 = vsel %vm3450, %v3451, %v3449
        %v3453 = vclz %v3452
        %v3454 = vsub.s32 %v3453, 2
        %vm3455 = vcmp.gt.s32.totalorder 0, %v3454
        %v3456 = vsel %vm3455, 0, %v3454
        %v3457 = vsub.s32 32, %v3456
        %v3458 = vshll.u32 %v3449, %v3456
        %v3459 = vshrl.u32 %v3441, %v3457
        %v3460 = vor.u32 %v3458, %v3459
        %v3461 = vsub.s32 4294967266, %v3456
        %v3462 = vadd.s32 %v3461, 127
        %v3463 = vshll.u32 %v3462, 23
        %v3464 = vor.u32 4788187, %v3463
        %v3465 = vand.u32 2147483647, %v3464
        %v3467 = vcvt.s32.f32 %v3460
        %v3468 = vmul.f32 %v3467, %v3465
        %v3469 = vxor.u32 %v3468, 2147483648
        %v3470 = vsel %vm3387, %v3469, %v3468
        %v3471 = vsub.s32 4, %v3447
        %v3472 = vsel %vm3387, %v3471, %v3447
        %v3473 = vsel %vm3386, %v249, %v3470
        %v3474 = vsel %vm3386, 0, %v3472
        %v3475 = vcosq.f32.pop %v3473
        %v3476 = vsinq.f32.pop %v3473
        %vm3477 = vweird.f32 %v249
        %v3478 = vand.u32 %v3474, 3
        %vm3479 = vcmp.lt.s32.totalorder %v3478, 2
        %vm3480 = vcmp.eq.s32.totalorder %v3478, 0
        %v3481 = vxor.u32 %v3476, 2147483648
        %v3482 = vsel %vm3480, %v3475, %v3481
        %vm3483 = vcmp.eq.s32.totalorder %v3478, 2
        %v3484 = vxor.u32 %v3475, 2147483648
        %v3485 = vsel %vm3483, %v3484, %v3476
        %v3486 = vsel %vm3479, %v3482, %v3485
        %v3487 = vsel %vm3477, nan, %v3486
        %v3488 = vand.u32 2147483647, %v250
        %vm3489 = vcmp.le.f32.partialorder %v3488, 0.7853982
        %vm3490 = vcmp.lt.s32.totalorder %v250, 0
        %v3491 = vand.u32 %v250, 2139095040
        %v3492 = vshrl.u32 %v3491, 23
        %v3493 = vsub.s32 %v3492, 127
        %v3494 = vand.u32 2147483647, %v250
        %v3495 = vand.u32 %v3494, 8388607
        %v3496 = vor.u32 %v3495, 8388608
        %v3497 = vsub.s32 0, %v3496
        %v3498 = vadd.s32 %v3493, 1
        %vm3499 = vcmp.gt.s32.totalorder %v3498, 0
        %v3500 = vsel %vm3499, %v3498, 0
        %v3501 = vshrl.u32 %v3500, 5
        %v3502 = vand.u32 %v3500, 31
        %v3503 = vsub.s32 32, %v3502
        %v3504 = vshrl.u32 683565275, %v3503
        %v3505 = vshll.u32 683565275, %v3502
        %v3506 = vshrl.u32 2475754826, %v3503
        %v3507 = vor.u32 %v3505, %v3506
        %v3508 = vshll.u32 2475754826, %v3502
        %v3509 = vshrl.u32 2131351028, %v3503
        %v3510 = vor.u32 %v3508, %v3509
        %v3511 = vshll.u32 2131351028, %v3502
        %v3512 = vshrl.u32 2102212464, %v3503
        %v3513 = vor.u32 %v3511, %v3512
        %v3514 = vshll.u32 2102212464, %v3502
        %v3515 = vshrl.u32 920167782, %v3503
        %v3516 = vor.u32 %v3514, %v3515
        %v3517 = vshll.u32 920167782, %v3502
        %v3518 = vshrl.u32 1326507024, %v3503
        %v3519 = vor.u32 %v3517, %v3518
        %vm3520 = vcmp.lt.s32.totalorder %v3501, 1
        %vm3521 = vcmp.lt.s32.totalorder %v3501, 2
        %vm3522 = vcmp.lt.s32.totalorder %v3501, 3
        %vm3523 = vcmp.lt.s32.totalorder %v3501, 4
        %v3524 = vsel %vm3520, %v3504, %v3507
        %v3525 = vsel %vm3523, %v3513, 2102212464
        %v3526 = vsel %vm3522, %v3510, %v3525
        %v3527 = vsel %vm3521, %v3524, %v3526
        %v3528 = vsel %vm3520, %v3507, %v3510
        %v3529 = vsel %vm3523, %v3516, 920167782
        %v3530 = vsel %vm3522, %v3513, %v3529
        %v3531 = vsel %vm3521, %v3528, %v3530
        %v3532 = vsel %vm3520, %v3510, %v3513
        %v3533 = vsel %vm3523, %v3519, 1326507024
        %v3534 = vsel %vm3522, %v3516, %v3533
        %v3535 = vsel %vm3521, %v3532, %v3534
        %v3536 = vshll.u32 %v3496, 8
        %v3537 = vmul.u32.u64.compose %v3536, %v3535
        %v3538 = vextract.low.u32 %v3537
        %v3539 = vextract.high.u32 %v3537
        %v3540 = vmul.u32.u64.compose %v3536, %v3531
        %v3541 = vextract.low.u32 %v3540
        %v3542 = vextract.high.u32 %v3540
        %v3543 = vmul.u32 %v3536, %v3527
        %v3544 = vadd.s32 %v3539, %v3541
        %vm3545 = vc.u32 %v3539, %v3541
        %v3546 = vadd.s32 %v3542, 1
        %v3547 = vsel %vm3545, %v3546, %v3542
        %v3548 = vadd.s32 %v3543, %v3547
        %v3549 = vadd.s32 %v3548, 536870912
        %v3550 = vshrl.u32 %v3549, 30
        %v3551 = vshll.u32 %v3550, 30
        %v3552 = vsub.s32 %v3548, %v3551
        %vm3553 = vcmp.lt.s32.totalorder %v3552, 0
        %v3554 = vsub.s32 0, %v3552
        %v3555 = vsel %vm3553, %v3554, %v3552
        %v3556 = vclz %v3555
        %v3557 = vsub.s32 %v3556, 2
        %vm3558 = vcmp.gt.s32.totalorder 0, %v3557
        %v3559 = vsel %vm3558, 0, %v3557
        %v3560 = vsub.s32 32, %v3559
        %v3561 = vshll.u32 %v3552, %v3559
        %v3562 = vshrl.u32 %v3544, %v3560
        %v3563 = vor.u32 %v3561, %v3562
        %v3564 = vsub.s32 4294967266, %v3559
        %v3565 = vadd.s32 %v3564, 127
        %v3566 = vshll.u32 %v3565, 23
        %v3567 = vor.u32 4788187, %v3566
        %v3568 = vand.u32 2147483647, %v3567
        %v3570 = vcvt.s32.f32 %v3563
        %v3571 = vmul.f32 %v3570, %v3568
        %v3572 = vxor.u32 %v3571, 2147483648
        %v3573 = vsel %vm3490, %v3572, %v3571
        %v3574 = vsub.s32 4, %v3550
        %v3575 = vsel %vm3490, %v3574, %v3550
        %v3576 = vsel %vm3489, %v250, %v3573
        %v3577 = vsel %vm3489, 0, %v3575
        %v3578 = vcosq.f32.pop %v3576
        %v3579 = vsinq.f32.pop %v3576
        %vm3580 = vweird.f32 %v250
        %v3581 = vand.u32 %v3577, 3
        %vm3582 = vcmp.lt.s32.totalorder %v3581, 2
        %vm3583 = vcmp.eq.s32.totalorder %v3581, 0
        %v3584 = vxor.u32 %v3579, 2147483648
        %v3585 = vsel %vm3583, %v3578, %v3584
        %vm3586 = vcmp.eq.s32.totalorder %v3581, 2
        %v3587 = vxor.u32 %v3578, 2147483648
        %v3588 = vsel %vm3586, %v3587, %v3579
        %v3589 = vsel %vm3582, %v3585, %v3588
        %v3590 = vsel %vm3580, nan, %v3589
        %v3591 = vand.u32 2147483647, %v251
        %vm3592 = vcmp.le.f32.partialorder %v3591, 0.7853982
        %vm3593 = vcmp.lt.s32.totalorder %v251, 0
        %v3594 = vand.u32 %v251, 2139095040
        %v3595 = vshrl.u32 %v3594, 23
        %v3596 = vsub.s32 %v3595, 127
        %v3597 = vand.u32 2147483647, %v251
        %v3598 = vand.u32 %v3597, 8388607
        %v3599 = vor.u32 %v3598, 8388608
        %v3600 = vsub.s32 0, %v3599
        %v3601 = vadd.s32 %v3596, 1
        %vm3602 = vcmp.gt.s32.totalorder %v3601, 0
        %v3603 = vsel %vm3602, %v3601, 0
        %v3604 = vshrl.u32 %v3603, 5
        %v3605 = vand.u32 %v3603, 31
        %v3606 = vsub.s32 32, %v3605
        %v3607 = vshrl.u32 683565275, %v3606
        %v3608 = vshll.u32 683565275, %v3605
        %v3609 = vshrl.u32 2475754826, %v3606
        %v3610 = vor.u32 %v3608, %v3609
        %v3611 = vshll.u32 2475754826, %v3605
        %v3612 = vshrl.u32 2131351028, %v3606
        %v3613 = vor.u32 %v3611, %v3612
        %v3614 = vshll.u32 2131351028, %v3605
        %v3615 = vshrl.u32 2102212464, %v3606
        %v3616 = vor.u32 %v3614, %v3615
        %v3617 = vshll.u32 2102212464, %v3605
        %v3618 = vshrl.u32 920167782, %v3606
        %v3619 = vor.u32 %v3617, %v3618
        %v3620 = vshll.u32 920167782, %v3605
        %v3621 = vshrl.u32 1326507024, %v3606
        %v3622 = vor.u32 %v3620, %v3621
        %vm3623 = vcmp.lt.s32.totalorder %v3604, 1
        %vm3624 = vcmp.lt.s32.totalorder %v3604, 2
        %vm3625 = vcmp.lt.s32.totalorder %v3604, 3
        %vm3626 = vcmp.lt.s32.totalorder %v3604, 4
        %v3627 = vsel %vm3623, %v3607, %v3610
        %v3628 = vsel %vm3626, %v3616, 2102212464
        %v3629 = vsel %vm3625, %v3613, %v3628
        %v3630 = vsel %vm3624, %v3627, %v3629
        %v3631 = vsel %vm3623, %v3610, %v3613
        %v3632 = vsel %vm3626, %v3619, 920167782
        %v3633 = vsel %vm3625, %v3616, %v3632
        %v3634 = vsel %vm3624, %v3631, %v3633
        %v3635 = vsel %vm3623, %v3613, %v3616
        %v3636 = vsel %vm3626, %v3622, 1326507024
        %v3637 = vsel %vm3625, %v3619, %v3636
        %v3638 = vsel %vm3624, %v3635, %v3637
        %v3639 = vshll.u32 %v3599, 8
        %v3640 = vmul.u32.u64.compose %v3639, %v3638
        %v3641 = vextract.low.u32 %v3640
        %v3642 = vextract.high.u32 %v3640
        %v3643 = vmul.u32.u64.compose %v3639, %v3634
        %v3644 = vextract.low.u32 %v3643
        %v3645 = vextract.high.u32 %v3643
        %v3646 = vmul.u32 %v3639, %v3630
        %v3647 = vadd.s32 %v3642, %v3644
        %vm3648 = vc.u32 %v3642, %v3644
        %v3649 = vadd.s32 %v3645, 1
        %v3650 = vsel %vm3648, %v3649, %v3645
        %v3651 = vadd.s32 %v3646, %v3650
        %v3652 = vadd.s32 %v3651, 536870912
        %v3653 = vshrl.u32 %v3652, 30
        %v3654 = vshll.u32 %v3653, 30
        %v3655 = vsub.s32 %v3651, %v3654
        %vm3656 = vcmp.lt.s32.totalorder %v3655, 0
        %v3657 = vsub.s32 0, %v3655
        %v3658 = vsel %vm3656, %v3657, %v3655
        %v3659 = vclz %v3658
        %v3660 = vsub.s32 %v3659, 2
        %vm3661 = vcmp.gt.s32.totalorder 0, %v3660
        %v3662 = vsel %vm3661, 0, %v3660
        %v3663 = vsub.s32 32, %v3662
        %v3664 = vshll.u32 %v3655, %v3662
        %v3665 = vshrl.u32 %v3647, %v3663
        %v3666 = vor.u32 %v3664, %v3665
        %v3667 = vsub.s32 4294967266, %v3662
        %v3668 = vadd.s32 %v3667, 127
        %v3669 = vshll.u32 %v3668, 23
        %v3670 = vor.u32 4788187, %v3669
        %v3671 = vand.u32 2147483647, %v3670
        %v3673 = vcvt.s32.f32 %v3666
        %v3674 = vmul.f32 %v3673, %v3671
        %v3675 = vxor.u32 %v3674, 2147483648
        %v3676 = vsel %vm3593, %v3675, %v3674
        %v3677 = vsub.s32 4, %v3653
        %v3678 = vsel %vm3593, %v3677, %v3653
        %v3679 = vsel %vm3592, %v251, %v3676
        %v3680 = vsel %vm3592, 0, %v3678
        %v3681 = vcosq.f32.pop %v3679
        %v3682 = vsinq.f32.pop %v3679
        %vm3683 = vweird.f32 %v251
        %v3684 = vand.u32 %v3680, 3
        %vm3685 = vcmp.lt.s32.totalorder %v3684, 2
        %vm3686 = vcmp.eq.s32.totalorder %v3684, 0
        %v3687 = vxor.u32 %v3682, 2147483648
        %v3688 = vsel %vm3686, %v3681, %v3687
        %vm3689 = vcmp.eq.s32.totalorder %v3684, 2
        %v3690 = vxor.u32 %v3681, 2147483648
        %v3691 = vsel %vm3689, %v3690, %v3682
        %v3692 = vsel %vm3685, %v3688, %v3691
        %v3693 = vsel %vm3683, nan, %v3692
        %v3694 = vand.u32 2147483647, %v252
        %vm3695 = vcmp.le.f32.partialorder %v3694, 0.7853982
        %vm3696 = vcmp.lt.s32.totalorder %v252, 0
        %v3697 = vand.u32 %v252, 2139095040
        %v3698 = vshrl.u32 %v3697, 23
        %v3699 = vsub.s32 %v3698, 127
        %v3700 = vand.u32 2147483647, %v252
        %v3701 = vand.u32 %v3700, 8388607
        %v3702 = vor.u32 %v3701, 8388608
        %v3703 = vsub.s32 0, %v3702
        %v3704 = vadd.s32 %v3699, 1
        %vm3705 = vcmp.gt.s32.totalorder %v3704, 0
        %v3706 = vsel %vm3705, %v3704, 0
        %v3707 = vshrl.u32 %v3706, 5
        %v3708 = vand.u32 %v3706, 31
        %v3709 = vsub.s32 32, %v3708
        %v3710 = vshrl.u32 683565275, %v3709
        %v3711 = vshll.u32 683565275, %v3708
        %v3712 = vshrl.u32 2475754826, %v3709
        %v3713 = vor.u32 %v3711, %v3712
        %v3714 = vshll.u32 2475754826, %v3708
        %v3715 = vshrl.u32 2131351028, %v3709
        %v3716 = vor.u32 %v3714, %v3715
        %v3717 = vshll.u32 2131351028, %v3708
        %v3718 = vshrl.u32 2102212464, %v3709
        %v3719 = vor.u32 %v3717, %v3718
        %v3720 = vshll.u32 2102212464, %v3708
        %v3721 = vshrl.u32 920167782, %v3709
        %v3722 = vor.u32 %v3720, %v3721
        %v3723 = vshll.u32 920167782, %v3708
        %v3724 = vshrl.u32 1326507024, %v3709
        %v3725 = vor.u32 %v3723, %v3724
        %vm3726 = vcmp.lt.s32.totalorder %v3707, 1
        %vm3727 = vcmp.lt.s32.totalorder %v3707, 2
        %vm3728 = vcmp.lt.s32.totalorder %v3707, 3
        %vm3729 = vcmp.lt.s32.totalorder %v3707, 4
        %v3730 = vsel %vm3726, %v3710, %v3713
        %v3731 = vsel %vm3729, %v3719, 2102212464
        %v3732 = vsel %vm3728, %v3716, %v3731
        %v3733 = vsel %vm3727, %v3730, %v3732
        %v3734 = vsel %vm3726, %v3713, %v3716
        %v3735 = vsel %vm3729, %v3722, 920167782
        %v3736 = vsel %vm3728, %v3719, %v3735
        %v3737 = vsel %vm3727, %v3734, %v3736
        %v3738 = vsel %vm3726, %v3716, %v3719
        %v3739 = vsel %vm3729, %v3725, 1326507024
        %v3740 = vsel %vm3728, %v3722, %v3739
        %v3741 = vsel %vm3727, %v3738, %v3740
        %v3742 = vshll.u32 %v3702, 8
        %v3743 = vmul.u32.u64.compose %v3742, %v3741
        %v3744 = vextract.low.u32 %v3743
        %v3745 = vextract.high.u32 %v3743
        %v3746 = vmul.u32.u64.compose %v3742, %v3737
        %v3747 = vextract.low.u32 %v3746
        %v3748 = vextract.high.u32 %v3746
        %v3749 = vmul.u32 %v3742, %v3733
        %v3750 = vadd.s32 %v3745, %v3747
        %vm3751 = vc.u32 %v3745, %v3747
        %v3752 = vadd.s32 %v3748, 1
        %v3753 = vsel %vm3751, %v3752, %v3748
        %v3754 = vadd.s32 %v3749, %v3753
        %v3755 = vadd.s32 %v3754, 536870912
        %v3756 = vshrl.u32 %v3755, 30
        %v3757 = vshll.u32 %v3756, 30
        %v3758 = vsub.s32 %v3754, %v3757
        %vm3759 = vcmp.lt.s32.totalorder %v3758, 0
        %v3760 = vsub.s32 0, %v3758
        %v3761 = vsel %vm3759, %v3760, %v3758
        %v3762 = vclz %v3761
        %v3763 = vsub.s32 %v3762, 2
        %vm3764 = vcmp.gt.s32.totalorder 0, %v3763
        %v3765 = vsel %vm3764, 0, %v3763
        %v3766 = vsub.s32 32, %v3765
        %v3767 = vshll.u32 %v3758, %v3765
        %v3768 = vshrl.u32 %v3750, %v3766
        %v3769 = vor.u32 %v3767, %v3768
        %v3770 = vsub.s32 4294967266, %v3765
        %v3771 = vadd.s32 %v3770, 127
        %v3772 = vshll.u32 %v3771, 23
        %v3773 = vor.u32 4788187, %v3772
        %v3774 = vand.u32 2147483647, %v3773
        %v3776 = vcvt.s32.f32 %v3769
        %v3777 = vmul.f32 %v3776, %v3774
        %v3778 = vxor.u32 %v3777, 2147483648
        %v3779 = vsel %vm3696, %v3778, %v3777
        %v3780 = vsub.s32 4, %v3756
        %v3781 = vsel %vm3696, %v3780, %v3756
        %v3782 = vsel %vm3695, %v252, %v3779
        %v3783 = vsel %vm3695, 0, %v3781
        %v3784 = vcosq.f32.pop %v3782
        %v3785 = vsinq.f32.pop %v3782
        %vm3786 = vweird.f32 %v252
        %v3787 = vand.u32 %v3783, 3
        %vm3788 = vcmp.lt.s32.totalorder %v3787, 2
        %vm3789 = vcmp.eq.s32.totalorder %v3787, 0
        %v3790 = vxor.u32 %v3785, 2147483648
        %v3791 = vsel %vm3789, %v3784, %v3790
        %vm3792 = vcmp.eq.s32.totalorder %v3787, 2
        %v3793 = vxor.u32 %v3784, 2147483648
        %v3794 = vsel %vm3792, %v3793, %v3785
        %v3795 = vsel %vm3788, %v3791, %v3794
        %v3796 = vsel %vm3786, nan, %v3795
        %v3797 = vand.u32 2147483647, %v253
        %vm3798 = vcmp.le.f32.partialorder %v3797, 0.7853982
        %vm3799 = vcmp.lt.s32.totalorder %v253, 0
        %v3800 = vand.u32 %v253, 2139095040
        %v3801 = vshrl.u32 %v3800, 23
        %v3802 = vsub.s32 %v3801, 127
        %v3803 = vand.u32 2147483647, %v253
        %v3804 = vand.u32 %v3803, 8388607
        %v3805 = vor.u32 %v3804, 8388608
        %v3806 = vsub.s32 0, %v3805
        %v3807 = vadd.s32 %v3802, 1
        %vm3808 = vcmp.gt.s32.totalorder %v3807, 0
        %v3809 = vsel %vm3808, %v3807, 0
        %v3810 = vshrl.u32 %v3809, 5
        %v3811 = vand.u32 %v3809, 31
        %v3812 = vsub.s32 32, %v3811
        %v3813 = vshrl.u32 683565275, %v3812
        %v3814 = vshll.u32 683565275, %v3811
        %v3815 = vshrl.u32 2475754826, %v3812
        %v3816 = vor.u32 %v3814, %v3815
        %v3817 = vshll.u32 2475754826, %v3811
        %v3818 = vshrl.u32 2131351028, %v3812
        %v3819 = vor.u32 %v3817, %v3818
        %v3820 = vshll.u32 2131351028, %v3811
        %v3821 = vshrl.u32 2102212464, %v3812
        %v3822 = vor.u32 %v3820, %v3821
        %v3823 = vshll.u32 2102212464, %v3811
        %v3824 = vshrl.u32 920167782, %v3812
        %v3825 = vor.u32 %v3823, %v3824
        %v3826 = vshll.u32 920167782, %v3811
        %v3827 = vshrl.u32 1326507024, %v3812
        %v3828 = vor.u32 %v3826, %v3827
        %vm3829 = vcmp.lt.s32.totalorder %v3810, 1
        %vm3830 = vcmp.lt.s32.totalorder %v3810, 2
        %vm3831 = vcmp.lt.s32.totalorder %v3810, 3
        %vm3832 = vcmp.lt.s32.totalorder %v3810, 4
        %v3833 = vsel %vm3829, %v3813, %v3816
        %v3834 = vsel %vm3832, %v3822, 2102212464
        %v3835 = vsel %vm3831, %v3819, %v3834
        %v3836 = vsel %vm3830, %v3833, %v3835
        %v3837 = vsel %vm3829, %v3816, %v3819
        %v3838 = vsel %vm3832, %v3825, 920167782
        %v3839 = vsel %vm3831, %v3822, %v3838
        %v3840 = vsel %vm3830, %v3837, %v3839
        %v3841 = vsel %vm3829, %v3819, %v3822
        %v3842 = vsel %vm3832, %v3828, 1326507024
        %v3843 = vsel %vm3831, %v3825, %v3842
        %v3844 = vsel %vm3830, %v3841, %v3843
        %v3845 = vshll.u32 %v3805, 8
        %v3846 = vmul.u32.u64.compose %v3845, %v3844
        %v3847 = vextract.low.u32 %v3846
        %v3848 = vextract.high.u32 %v3846
        %v3849 = vmul.u32.u64.compose %v3845, %v3840
        %v3850 = vextract.low.u32 %v3849
        %v3851 = vextract.high.u32 %v3849
        %v3852 = vmul.u32 %v3845, %v3836
        %v3853 = vadd.s32 %v3848, %v3850
        %vm3854 = vc.u32 %v3848, %v3850
        %v3855 = vadd.s32 %v3851, 1
        %v3856 = vsel %vm3854, %v3855, %v3851
        %v3857 = vadd.s32 %v3852, %v3856
        %v3858 = vadd.s32 %v3857, 536870912
        %v3859 = vshrl.u32 %v3858, 30
        %v3860 = vshll.u32 %v3859, 30
        %v3861 = vsub.s32 %v3857, %v3860
        %vm3862 = vcmp.lt.s32.totalorder %v3861, 0
        %v3863 = vsub.s32 0, %v3861
        %v3864 = vsel %vm3862, %v3863, %v3861
        %v3865 = vclz %v3864
        %v3866 = vsub.s32 %v3865, 2
        %vm3867 = vcmp.gt.s32.totalorder 0, %v3866
        %v3868 = vsel %vm3867, 0, %v3866
        %v3869 = vsub.s32 32, %v3868
        %v3870 = vshll.u32 %v3861, %v3868
        %v3871 = vshrl.u32 %v3853, %v3869
        %v3872 = vor.u32 %v3870, %v3871
        %v3873 = vsub.s32 4294967266, %v3868
        %v3874 = vadd.s32 %v3873, 127
        %v3875 = vshll.u32 %v3874, 23
        %v3876 = vor.u32 4788187, %v3875
        %v3877 = vand.u32 2147483647, %v3876
        %v3879 = vcvt.s32.f32 %v3872
        %v3880 = vmul.f32 %v3879, %v3877
        %v3881 = vxor.u32 %v3880, 2147483648
        %v3882 = vsel %vm3799, %v3881, %v3880
        %v3883 = vsub.s32 4, %v3859
        %v3884 = vsel %vm3799, %v3883, %v3859
        %v3885 = vsel %vm3798, %v253, %v3882
        %v3886 = vsel %vm3798, 0, %v3884
        %v3887 = vcosq.f32.pop %v3885
        %v3888 = vsinq.f32.pop %v3885
        %vm3889 = vweird.f32 %v253
        %v3890 = vand.u32 %v3886, 3
        %vm3891 = vcmp.lt.s32.totalorder %v3890, 2
        %vm3892 = vcmp.eq.s32.totalorder %v3890, 0
        %v3893 = vxor.u32 %v3888, 2147483648
        %v3894 = vsel %vm3892, %v3887, %v3893
        %vm3895 = vcmp.eq.s32.totalorder %v3890, 2
        %v3896 = vxor.u32 %v3887, 2147483648
        %v3897 = vsel %vm3895, %v3896, %v3888
        %v3898 = vsel %vm3891, %v3894, %v3897
        %v3899 = vsel %vm3889, nan, %v3898
        %v3900 = vand.u32 2147483647, %v254
        %vm3901 = vcmp.le.f32.partialorder %v3900, 0.7853982
        %vm3902 = vcmp.lt.s32.totalorder %v254, 0
        %v3903 = vand.u32 %v254, 2139095040
        %v3904 = vshrl.u32 %v3903, 23
        %v3905 = vsub.s32 %v3904, 127
        %v3906 = vand.u32 2147483647, %v254
        %v3907 = vand.u32 %v3906, 8388607
        %v3908 = vor.u32 %v3907, 8388608
        %v3909 = vsub.s32 0, %v3908
        %v3910 = vadd.s32 %v3905, 1
        %vm3911 = vcmp.gt.s32.totalorder %v3910, 0
        %v3912 = vsel %vm3911, %v3910, 0
        %v3913 = vshrl.u32 %v3912, 5
        %v3914 = vand.u32 %v3912, 31
        %v3915 = vsub.s32 32, %v3914
        %v3916 = vshrl.u32 683565275, %v3915
        %v3917 = vshll.u32 683565275, %v3914
        %v3918 = vshrl.u32 2475754826, %v3915
        %v3919 = vor.u32 %v3917, %v3918
        %v3920 = vshll.u32 2475754826, %v3914
        %v3921 = vshrl.u32 2131351028, %v3915
        %v3922 = vor.u32 %v3920, %v3921
        %v3923 = vshll.u32 2131351028, %v3914
        %v3924 = vshrl.u32 2102212464, %v3915
        %v3925 = vor.u32 %v3923, %v3924
        %v3926 = vshll.u32 2102212464, %v3914
        %v3927 = vshrl.u32 920167782, %v3915
        %v3928 = vor.u32 %v3926, %v3927
        %v3929 = vshll.u32 920167782, %v3914
        %v3930 = vshrl.u32 1326507024, %v3915
        %v3931 = vor.u32 %v3929, %v3930
        %vm3932 = vcmp.lt.s32.totalorder %v3913, 1
        %vm3933 = vcmp.lt.s32.totalorder %v3913, 2
        %vm3934 = vcmp.lt.s32.totalorder %v3913, 3
        %vm3935 = vcmp.lt.s32.totalorder %v3913, 4
        %v3936 = vsel %vm3932, %v3916, %v3919
        %v3937 = vsel %vm3935, %v3925, 2102212464
        %v3938 = vsel %vm3934, %v3922, %v3937
        %v3939 = vsel %vm3933, %v3936, %v3938
        %v3940 = vsel %vm3932, %v3919, %v3922
        %v3941 = vsel %vm3935, %v3928, 920167782
        %v3942 = vsel %vm3934, %v3925, %v3941
        %v3943 = vsel %vm3933, %v3940, %v3942
        %v3944 = vsel %vm3932, %v3922, %v3925
        %v3945 = vsel %vm3935, %v3931, 1326507024
        %v3946 = vsel %vm3934, %v3928, %v3945
        %v3947 = vsel %vm3933, %v3944, %v3946
        %v3948 = vshll.u32 %v3908, 8
        %v3949 = vmul.u32.u64.compose %v3948, %v3947
        %v3950 = vextract.low.u32 %v3949
        %v3951 = vextract.high.u32 %v3949
        %v3952 = vmul.u32.u64.compose %v3948, %v3943
        %v3953 = vextract.low.u32 %v3952
        %v3954 = vextract.high.u32 %v3952
        %v3955 = vmul.u32 %v3948, %v3939
        %v3956 = vadd.s32 %v3951, %v3953
        %vm3957 = vc.u32 %v3951, %v3953
        %v3958 = vadd.s32 %v3954, 1
        %v3959 = vsel %vm3957, %v3958, %v3954
        %v3960 = vadd.s32 %v3955, %v3959
        %v3961 = vadd.s32 %v3960, 536870912
        %v3962 = vshrl.u32 %v3961, 30
        %v3963 = vshll.u32 %v3962, 30
        %v3964 = vsub.s32 %v3960, %v3963
        %vm3965 = vcmp.lt.s32.totalorder %v3964, 0
        %v3966 = vsub.s32 0, %v3964
        %v3967 = vsel %vm3965, %v3966, %v3964
        %v3968 = vclz %v3967
        %v3969 = vsub.s32 %v3968, 2
        %vm3970 = vcmp.gt.s32.totalorder 0, %v3969
        %v3971 = vsel %vm3970, 0, %v3969
        %v3972 = vsub.s32 32, %v3971
        %v3973 = vshll.u32 %v3964, %v3971
        %v3974 = vshrl.u32 %v3956, %v3972
        %v3975 = vor.u32 %v3973, %v3974
        %v3976 = vsub.s32 4294967266, %v3971
        %v3977 = vadd.s32 %v3976, 127
        %v3978 = vshll.u32 %v3977, 23
        %v3979 = vor.u32 4788187, %v3978
        %v3980 = vand.u32 2147483647, %v3979
        %v3982 = vcvt.s32.f32 %v3975
        %v3983 = vmul.f32 %v3982, %v3980
        %v3984 = vxor.u32 %v3983, 2147483648
        %v3985 = vsel %vm3902, %v3984, %v3983
        %v3986 = vsub.s32 4, %v3962
        %v3987 = vsel %vm3902, %v3986, %v3962
        %v3988 = vsel %vm3901, %v254, %v3985
        %v3989 = vsel %vm3901, 0, %v3987
        %v3990 = vcosq.f32.pop %v3988
        %v3991 = vsinq.f32.pop %v3988
        %vm3992 = vweird.f32 %v254
        %v3993 = vand.u32 %v3989, 3
        %vm3994 = vcmp.lt.s32.totalorder %v3993, 2
        %vm3995 = vcmp.eq.s32.totalorder %v3993, 0
        %v3996 = vxor.u32 %v3991, 2147483648
        %v3997 = vsel %vm3995, %v3990, %v3996
        %vm3998 = vcmp.eq.s32.totalorder %v3993, 2
        %v3999 = vxor.u32 %v3990, 2147483648
        %v4000 = vsel %vm3998, %v3999, %v3991
        %v4001 = vsel %vm3994, %v3997, %v4000
        %v4002 = vsel %vm3992, nan, %v4001
        %v4003 = vand.u32 2147483647, %v255
        %vm4004 = vcmp.le.f32.partialorder %v4003, 0.7853982
        %vm4005 = vcmp.lt.s32.totalorder %v255, 0
        %v4006 = vand.u32 %v255, 2139095040
        %v4007 = vshrl.u32 %v4006, 23
        %v4008 = vsub.s32 %v4007, 127
        %v4009 = vand.u32 2147483647, %v255
        %v4010 = vand.u32 %v4009, 8388607
        %v4011 = vor.u32 %v4010, 8388608
        %v4012 = vsub.s32 0, %v4011
        %v4013 = vadd.s32 %v4008, 1
        %vm4014 = vcmp.gt.s32.totalorder %v4013, 0
        %v4015 = vsel %vm4014, %v4013, 0
        %v4016 = vshrl.u32 %v4015, 5
        %v4017 = vand.u32 %v4015, 31
        %v4018 = vsub.s32 32, %v4017
        %v4019 = vshrl.u32 683565275, %v4018
        %v4020 = vshll.u32 683565275, %v4017
        %v4021 = vshrl.u32 2475754826, %v4018
        %v4022 = vor.u32 %v4020, %v4021
        %v4023 = vshll.u32 2475754826, %v4017
        %v4024 = vshrl.u32 2131351028, %v4018
        %v4025 = vor.u32 %v4023, %v4024
        %v4026 = vshll.u32 2131351028, %v4017
        %v4027 = vshrl.u32 2102212464, %v4018
        %v4028 = vor.u32 %v4026, %v4027
        %v4029 = vshll.u32 2102212464, %v4017
        %v4030 = vshrl.u32 920167782, %v4018
        %v4031 = vor.u32 %v4029, %v4030
        %v4032 = vshll.u32 920167782, %v4017
        %v4033 = vshrl.u32 1326507024, %v4018
        %v4034 = vor.u32 %v4032, %v4033
        %vm4035 = vcmp.lt.s32.totalorder %v4016, 1
        %vm4036 = vcmp.lt.s32.totalorder %v4016, 2
        %vm4037 = vcmp.lt.s32.totalorder %v4016, 3
        %vm4038 = vcmp.lt.s32.totalorder %v4016, 4
        %v4039 = vsel %vm4035, %v4019, %v4022
        %v4040 = vsel %vm4038, %v4028, 2102212464
        %v4041 = vsel %vm4037, %v4025, %v4040
        %v4042 = vsel %vm4036, %v4039, %v4041
        %v4043 = vsel %vm4035, %v4022, %v4025
        %v4044 = vsel %vm4038, %v4031, 920167782
        %v4045 = vsel %vm4037, %v4028, %v4044
        %v4046 = vsel %vm4036, %v4043, %v4045
        %v4047 = vsel %vm4035, %v4025, %v4028
        %v4048 = vsel %vm4038, %v4034, 1326507024
        %v4049 = vsel %vm4037, %v4031, %v4048
        %v4050 = vsel %vm4036, %v4047, %v4049
        %v4051 = vshll.u32 %v4011, 8
        %v4052 = vmul.u32.u64.compose %v4051, %v4050
        %v4053 = vextract.low.u32 %v4052
        %v4054 = vextract.high.u32 %v4052
        %v4055 = vmul.u32.u64.compose %v4051, %v4046
        %v4056 = vextract.low.u32 %v4055
        %v4057 = vextract.high.u32 %v4055
        %v4058 = vmul.u32 %v4051, %v4042
        %v4059 = vadd.s32 %v4054, %v4056
        %vm4060 = vc.u32 %v4054, %v4056
        %v4061 = vadd.s32 %v4057, 1
        %v4062 = vsel %vm4060, %v4061, %v4057
        %v4063 = vadd.s32 %v4058, %v4062
        %v4064 = vadd.s32 %v4063, 536870912
        %v4065 = vshrl.u32 %v4064, 30
        %v4066 = vshll.u32 %v4065, 30
        %v4067 = vsub.s32 %v4063, %v4066
        %vm4068 = vcmp.lt.s32.totalorder %v4067, 0
        %v4069 = vsub.s32 0, %v4067
        %v4070 = vsel %vm4068, %v4069, %v4067
        %v4071 = vclz %v4070
        %v4072 = vsub.s32 %v4071, 2
        %vm4073 = vcmp.gt.s32.totalorder 0, %v4072
        %v4074 = vsel %vm4073, 0, %v4072
        %v4075 = vsub.s32 32, %v4074
        %v4076 = vshll.u32 %v4067, %v4074
        %v4077 = vshrl.u32 %v4059, %v4075
        %v4078 = vor.u32 %v4076, %v4077
        %v4079 = vsub.s32 4294967266, %v4074
        %v4080 = vadd.s32 %v4079, 127
        %v4081 = vshll.u32 %v4080, 23
        %v4082 = vor.u32 4788187, %v4081
        %v4083 = vand.u32 2147483647, %v4082
        %v4085 = vcvt.s32.f32 %v4078
        %v4086 = vmul.f32 %v4085, %v4083
        %v4087 = vxor.u32 %v4086, 2147483648
        %v4088 = vsel %vm4005, %v4087, %v4086
        %v4089 = vsub.s32 4, %v4065
        %v4090 = vsel %vm4005, %v4089, %v4065
        %v4091 = vsel %vm4004, %v255, %v4088
        %v4092 = vsel %vm4004, 0, %v4090
        %v4093 = vcosq.f32.pop %v4091
        %v4094 = vsinq.f32.pop %v4091
        %vm4095 = vweird.f32 %v255
        %v4096 = vand.u32 %v4092, 3
        %vm4097 = vcmp.lt.s32.totalorder %v4096, 2
        %vm4098 = vcmp.eq.s32.totalorder %v4096, 0
        %v4099 = vxor.u32 %v4094, 2147483648
        %v4100 = vsel %vm4098, %v4093, %v4099
        %vm4101 = vcmp.eq.s32.totalorder %v4096, 2
        %v4102 = vxor.u32 %v4093, 2147483648
        %v4103 = vsel %vm4101, %v4102, %v4094
        %v4104 = vsel %vm4097, %v4100, %v4103
        %v4105 = vsel %vm4095, nan, %v4104
        %v4106 = vand.u32 2147483647, %v256
        %vm4107 = vcmp.le.f32.partialorder %v4106, 0.7853982
        %vm4108 = vcmp.lt.s32.totalorder %v256, 0
        %v4109 = vand.u32 %v256, 2139095040
        %v4110 = vshrl.u32 %v4109, 23
        %v4111 = vsub.s32 %v4110, 127
        %v4112 = vand.u32 2147483647, %v256
        %v4113 = vand.u32 %v4112, 8388607
        %v4114 = vor.u32 %v4113, 8388608
        %v4115 = vsub.s32 0, %v4114
        %v4116 = vadd.s32 %v4111, 1
        %vm4117 = vcmp.gt.s32.totalorder %v4116, 0
        %v4118 = vsel %vm4117, %v4116, 0
        %v4119 = vshrl.u32 %v4118, 5
        %v4120 = vand.u32 %v4118, 31
        %v4121 = vsub.s32 32, %v4120
        %v4122 = vshrl.u32 683565275, %v4121
        %v4123 = vshll.u32 683565275, %v4120
        %v4124 = vshrl.u32 2475754826, %v4121
        %v4125 = vor.u32 %v4123, %v4124
        %v4126 = vshll.u32 2475754826, %v4120
        %v4127 = vshrl.u32 2131351028, %v4121
        %v4128 = vor.u32 %v4126, %v4127
        %v4129 = vshll.u32 2131351028, %v4120
        %v4130 = vshrl.u32 2102212464, %v4121
        %v4131 = vor.u32 %v4129, %v4130
        %v4132 = vshll.u32 2102212464, %v4120
        %v4133 = vshrl.u32 920167782, %v4121
        %v4134 = vor.u32 %v4132, %v4133
        %v4135 = vshll.u32 920167782, %v4120
        %v4136 = vshrl.u32 1326507024, %v4121
        %v4137 = vor.u32 %v4135, %v4136
        %vm4138 = vcmp.lt.s32.totalorder %v4119, 1
        %vm4139 = vcmp.lt.s32.totalorder %v4119, 2
        %vm4140 = vcmp.lt.s32.totalorder %v4119, 3
        %vm4141 = vcmp.lt.s32.totalorder %v4119, 4
        %v4142 = vsel %vm4138, %v4122, %v4125
        %v4143 = vsel %vm4141, %v4131, 2102212464
        %v4144 = vsel %vm4140, %v4128, %v4143
        %v4145 = vsel %vm4139, %v4142, %v4144
        %v4146 = vsel %vm4138, %v4125, %v4128
        %v4147 = vsel %vm4141, %v4134, 920167782
        %v4148 = vsel %vm4140, %v4131, %v4147
        %v4149 = vsel %vm4139, %v4146, %v4148
        %v4150 = vsel %vm4138, %v4128, %v4131
        %v4151 = vsel %vm4141, %v4137, 1326507024
        %v4152 = vsel %vm4140, %v4134, %v4151
        %v4153 = vsel %vm4139, %v4150, %v4152
        %v4154 = vshll.u32 %v4114, 8
        %v4155 = vmul.u32.u64.compose %v4154, %v4153
        %v4156 = vextract.low.u32 %v4155
        %v4157 = vextract.high.u32 %v4155
        %v4158 = vmul.u32.u64.compose %v4154, %v4149
        %v4159 = vextract.low.u32 %v4158
        %v4160 = vextract.high.u32 %v4158
        %v4161 = vmul.u32 %v4154, %v4145
        %v4162 = vadd.s32 %v4157, %v4159
        %vm4163 = vc.u32 %v4157, %v4159
        %v4164 = vadd.s32 %v4160, 1
        %v4165 = vsel %vm4163, %v4164, %v4160
        %v4166 = vadd.s32 %v4161, %v4165
        %v4167 = vadd.s32 %v4166, 536870912
        %v4168 = vshrl.u32 %v4167, 30
        %v4169 = vshll.u32 %v4168, 30
        %v4170 = vsub.s32 %v4166, %v4169
        %vm4171 = vcmp.lt.s32.totalorder %v4170, 0
        %v4172 = vsub.s32 0, %v4170
        %v4173 = vsel %vm4171, %v4172, %v4170
        %v4174 = vclz %v4173
        %v4175 = vsub.s32 %v4174, 2
        %vm4176 = vcmp.gt.s32.totalorder 0, %v4175
        %v4177 = vsel %vm4176, 0, %v4175
        %v4178 = vsub.s32 32, %v4177
        %v4179 = vshll.u32 %v4170, %v4177
        %v4180 = vshrl.u32 %v4162, %v4178
        %v4181 = vor.u32 %v4179, %v4180
        %v4182 = vsub.s32 4294967266, %v4177
        %v4183 = vadd.s32 %v4182, 127
        %v4184 = vshll.u32 %v4183, 23
        %v4185 = vor.u32 4788187, %v4184
        %v4186 = vand.u32 2147483647, %v4185
        %v4188 = vcvt.s32.f32 %v4181
        %v4189 = vmul.f32 %v4188, %v4186
        %v4190 = vxor.u32 %v4189, 2147483648
        %v4191 = vsel %vm4108, %v4190, %v4189
        %v4192 = vsub.s32 4, %v4168
        %v4193 = vsel %vm4108, %v4192, %v4168
        %v4194 = vsel %vm4107, %v256, %v4191
        %v4195 = vsel %vm4107, 0, %v4193
        %v4196 = vcosq.f32.pop %v4194
        %v4197 = vsinq.f32.pop %v4194
        %vm4198 = vweird.f32 %v256
        %v4199 = vand.u32 %v4195, 3
        %vm4200 = vcmp.lt.s32.totalorder %v4199, 2
        %vm4201 = vcmp.eq.s32.totalorder %v4199, 0
        %v4202 = vxor.u32 %v4197, 2147483648
        %v4203 = vsel %vm4201, %v4196, %v4202
        %vm4204 = vcmp.eq.s32.totalorder %v4199, 2
        %v4205 = vxor.u32 %v4196, 2147483648
        %v4206 = vsel %vm4204, %v4205, %v4197
        %v4207 = vsel %vm4200, %v4203, %v4206
        %v4208 = vsel %vm4198, nan, %v4207
        %4209 = vst [vmem:[%s110 + $0x8] sm:$0xff] %v2354
        %4210 = vst [vmem:[%s110 + $0x18] sm:$0xff] %v2457
        %4211 = vst [vmem:[%s110 + $0x28] sm:$0xff] %v2560
        %4212 = vst [vmem:[%s110 + $0x38] sm:$0xff] %v2663
        %4213 = vst [vmem:[%s110 + $0x48] sm:$0xff] %v2766
        %4214 = vst [vmem:[%s110 + $0x58] sm:$0xff] %v2869
        %4215 = vst [vmem:[%s110 + $0x68] sm:$0xff] %v2972
        %4216 = vst [vmem:[%s110 + $0x78] sm:$0xff] %v3075
        %4217 = vst [vmem:[%s110 + $0x88] sm:$0xff] %v3178
        %4218 = vst [vmem:[%s110 + $0x98] sm:$0xff] %v3281
        %4219 = vst [vmem:[%s110 + $0xa8] sm:$0xff] %v3384
        %4220 = vst [vmem:[%s110 + $0xb8] sm:$0xff] %v3487
        %4221 = vst [vmem:[%s110 + $0xc8] sm:$0xff] %v3590
        %4222 = vst [vmem:[%s110 + $0xd8] sm:$0xff] %v3693
        %4223 = vst [vmem:[%s110 + $0xe8] sm:$0xff] %v3796
        %4224 = vst [vmem:[%s110 + $0xf8] sm:$0xff] %v3899
        %4225 = vst [vmem:[%s110 + $0x108] sm:$0xff] %v4002
        %4226 = vst [vmem:[%s110 + $0x118] sm:$0xff] %v4105
        %4227 = vst [vmem:[%s110 + $0x128] sm:$0xff] %v4208
        %s4228 = sand.u32 %s49, 1
        %s4229 = scalar_lea.sflag [#allocation3], %s4228
        %s4230 = sand.u32 %s49, 1
        %s4231 = smul.addr %s4230, 304
        %s4232 = scalar_lea.vmem [#allocation2], %s4231
        // Predicated region
        $region25: #{tpu_custom_call.1} parent=23 // pred_check
          %p4233 = pneg %p59
        $region26: #{tpu_custom_call.1} parent=23 // pred_check_branch
          %4235 = sbr.rel (%p4233) target = $region28
        $region27: #{tpu_custom_call.1} parent=23 // pred_region
          %s4236 = smul.u32 19, %s15
          %s4238 = ssub.s32 4864, 4864
          %4239 = vsyncadd %s4229, %s4238
          %s4240 = smul.addr %s4236, 2
          %s4241 = smul.addr %s4240, 128
          %s4242 = scalar_lea.hbm %s1, %s4241
          %s4243 = sshll.u32 %s4232, 4
          %s4244 = int_to_ptr.vmem [resolvable:$true] %s4243
          %4249 = dma.vmem_to_hbm [thread:$0]  %s4244, 4864, %s4242, %s4229, 256, 256, 16
        $region28: #{tpu_custom_call.1} parent=23 // pred_fallthru
          _
      $region24: #{tpu_custom_call.1} parent=5 // pred_fallthru
        _
      %p4250 = scmp.le.s32.totalorder 2, %s10
      // Predicated region
      $region29: #{tpu_custom_call.1} parent=5 // pred_check
        %p4251 = pneg %p4250
      $region30: #{tpu_custom_call.1} parent=5 // pred_check_branch
        %4253 = sbr.rel (%p4251) target = $region32
      $region31: #{tpu_custom_call.1} parent=5 // pred_region
        %s4254 = ssub.s32 %s10, 2
        // Predicated region
        $region33: #{tpu_custom_call.1} parent=31 // pred_check
          %p4255 = pneg %p65
        $region34: #{tpu_custom_call.1} parent=31 // pred_check_branch
          %4257 = sbr.rel (%p4255) target = $region36
        $region35: #{tpu_custom_call.1} parent=31 // pred_region
          %s4258 = sand.u32 %s50, 1
          %s4259 = scalar_lea.sflag [#allocation3], %s4258
          %s4260 = sand.u32 %s50, 1
          %s4261 = smul.addr %s4260, 304
          %s4262 = scalar_lea.vmem [#allocation2], %s4261
          %4263 = dma.done %s4259, 4864
        $region36: #{tpu_custom_call.1} parent=31 // pred_fallthru
          _
      $region32: #{tpu_custom_call.1} parent=5 // pred_fallthru
        _
    $region6: #{tpu_custom_call.1} parent=1 // loop_footer
      %s14 = sadd.s32 1, %s10
    $region7: #{tpu_custom_call.1} parent=1 // loop_footer_branch
      %9 = sbr.rel target = $region3
    $region8: #{tpu_custom_call.1} parent=1 // loop_exit
      _
    %4264 = vsyncpa [#allocation3], 1
    %s4265 = scalar_lea.sflag [#allocation3], 1
    %4266 = vsyncpa %s4265, 1

</llo_original>
